<compile_context>
chip_gen: v6e
topology: v6e:2x2x1
jax: 0.10.0
libtpu: 0.0.40
codegen_flags: <defaults>
</compile_context>

<pallas_src>
import math
import functools

import jax
import jax.numpy as jnp
from jax.experimental import pallas as pl
from jax.experimental.pallas import tpu as pltpu


def _attn_block_kernel(img_ref, proto_ref,
                       wq_ref, bq_ref, wkv_ref, bkv_ref, wo_ref, bo_ref,
                       gamma_ref, beta_ref,
                       out_ref, o_heads_ref, *,
                       num_heads: int, eps: float, mxu_dtype, attn_dtype,
                       approx_recip: bool):
    x_pro = proto_ref[...]            # (bb, Nq, C) f32
    x_img = img_ref[...]              # (bb, Nk, C) f32
    bb, nq, C = x_pro.shape
    nk = x_img.shape[1]
    d = C // num_heads

    # Collapse folded batch into the row (sublane) dim so one MXU call covers
    # all batch elements for each dense projection.
    x_pro2 = x_pro.reshape(bb * nq, C)
    x_img2 = x_img.reshape(bb * nk, C)

    # Q projection (1/sqrt(d) pre-folded into wq/bq) and fused K|V projection:
    # one (bb*nk, C) @ (C, 2C) matmul on the image path; f32 accumulation and
    # f32 bias adds.
    q = jnp.dot(x_pro2.astype(mxu_dtype), wq_ref[...],
                preferred_element_type=jnp.float32) + bq_ref[...]
    kv = jnp.dot(x_img2.astype(mxu_dtype), wkv_ref[...],
                 preferred_element_type=jnp.float32) + bkv_ref[...]

    q3 = q.reshape(bb, nq, C).astype(attn_dtype)
    k3 = kv[:, :C].reshape(bb, nk, C).astype(attn_dtype)
    v3 = kv[:, C:].reshape(bb, nk, C).astype(attn_dtype)

    # Per-head attention. Each head's output lands in its contiguous lane
    # slice of the f32 VMEM scratch; the out-projection happens ONCE after
    # the loop (contraction = C), so no per-head pass through wo and no live
    # f32 accumulator across the unrolled loop.
    # TODO(synk): at large num_heads switch to lax.fori_loop with
    # pl.ds(h*d, d) + pl.multiple_of slices to bound live ranges.
    for h in range(num_heads):
        sl = slice(h * d, (h + 1) * d)
        qh = q3[:, :, sl]             # (bb, Nq, d)
        kh = k3[:, :, sl]             # (bb, Nk, d)
        vh = v3[:, :, sl]             # (bb, Nk, d)
        # NT contraction on the last axes: no explicit K transpose.
        s = jnp.einsum('bqd,bkd->bqk', qh, kh,
                       preferred_element_type=jnp.float32)       # (bb, Nq, Nk)
        s = s - jnp.max(s, axis=-1, keepdims=True)
        p = jnp.exp(s)
        denom = jnp.sum(p, axis=-1, keepdims=True)
        if approx_recip:
            p = p * pl.reciprocal(denom, approx=True)
        else:
            p = p / denom
        oh = jnp.einsum('bqk,bkd->bqd', p.astype(attn_dtype), vh,
                        preferred_element_type=jnp.float32)      # (bb, Nq, d)
        o_heads_ref[:, sl] = oh.reshape(bb * nq, d)

    # Single fused out-projection over all heads.
    o = jnp.dot(o_heads_ref[...].astype(mxu_dtype), wo_ref[...],
                preferred_element_type=jnp.float32)

    # Residual + out-projection bias + LayerNorm (biased variance), all f32.
    y = x_pro2 + o + bo_ref[...]
    mu = jnp.mean(y, axis=-1, keepdims=True)
    var = jnp.mean((y - mu) ** 2, axis=-1, keepdims=True)
    y_norm = (y - mu) * jax.lax.rsqrt(var + eps)
    out = y_norm * gamma_ref[...] + beta_ref[...]
    out_ref[...] = out.reshape(bb, nq, C).astype(out_ref.dtype)


def _tpu_generation():
    """Best-effort TPU generation sniff ('v5'/'v6'/'v7' or None)."""
    try:
        kind = jax.devices()[0].device_kind.lower()
    except Exception:
        return None
    for g in ("v7", "v6", "v5"):
        if g in kind:
            return g
    return None


def _vmem_footprint_bytes(b_block, nq, nk, C, weight_bytes):
    """Rough per-grid-step VMEM footprint (with a 2x safety factor on temps)."""
    f32 = 4
    io = 2 * b_block * (nk + 2 * nq) * C * f32           # double-buffered in/out blocks
    weights = 2 * (4 * C * C) * weight_bytes + 6 * C * f32
    inter = (b_block * nq * C * f32                       # q
             + b_block * nk * 2 * C * f32                 # k|v
             + 2 * b_block * nq * nk * f32                 # one head's scores / probs
             + b_block * nq * C * f32                      # o_heads scratch
             + 3 * b_block * nq * C * f32)                 # out-proj / residual / LN temps
    return io + weights + 2 * inter


def _pick_batch_block(B, nq, nk, C, weight_bytes, budget_bytes, min_grid_steps):
    """Largest divisor of B fitting the VMEM budget and leaving >= min_grid_steps."""
    best = 1
    for bb in range(1, B + 1):
        if B % bb != 0:
            continue
        if B // bb < min_grid_steps:
            continue
        if _vmem_footprint_bytes(bb, nq, nk, C, weight_bytes) <= budget_bytes:
            best = max(best, bb)
    return best


def img_to_prototype_attention_block(image_f, prototypes, params, *,
                                     num_heads: int, eps: float = 1e-5,
                                     b_block=None, mxu_dtype=jnp.bfloat16,
                                     attn_dtype=None, approx_recip=True):
    B, Nk, C = image_f.shape
    _, Nq, _ = prototypes.shape
    assert C % num_heads == 0
    d = C // num_heads

    gen = _tpu_generation()
    # v5e has no bf16 VALU and only one store slot: keep the tiny score/PV
    # matmuls in f32 there; projections use bf16 on the MXU everywhere.
    if attn_dtype is None:
        attn_dtype = jnp.float32 if gen == "v5" else mxu_dtype

    # Generation-aware VMEM budget: v7x has 64 MiB per TensorCore.
    if gen == "v7":
        vmem_limit = 48 << 20
        min_grid_steps = min(2, B)     # keep both v7x TensorCores busy
    else:
        vmem_limit = 64 << 20          # v5e/v6e: single TC, 128 MiB physical
        min_grid_steps = 1             # grid is a serial loop -> prefer grid = 1
    weight_bytes = jnp.dtype(mxu_dtype).itemsize

    if b_block is None:
        b_block = _pick_batch_block(B, Nq, Nk, C, weight_bytes,
                                    vmem_limit - (8 << 20), min_grid_steps)
    assert B % b_block == 0
    grid_b = B // b_block

    # Fold 1/sqrt(d) into the q projection (weight AND bias); fuse k|v weights;
    # cast weight matrices to bf16 for the MXU; biases/LayerNorm params stay f32.
    scale = 1.0 / math.sqrt(d)
    wq = (params["wq"] * scale).astype(mxu_dtype)
    bq = (params["bq"] * scale).astype(jnp.float32)
    wkv = jnp.concatenate([params["wk"], params["wv"]], axis=1).astype(mxu_dtype)
    bkv = jnp.concatenate([params["bk"], params["bv"]], axis=1).astype(jnp.float32)
    wo = params["wo"].astype(mxu_dtype)
    bo = params["bo"].astype(jnp.float32)
    gamma = params["gamma"].astype(jnp.float32)
    beta = params["beta"].astype(jnp.float32)

    kernel = functools.partial(_attn_block_kernel, num_heads=num_heads, eps=eps,
                               mxu_dtype=mxu_dtype, attn_dtype=attn_dtype,
                               approx_recip=approx_recip)

    per_batch3 = lambda b: (b, 0, 0)
    const2d = lambda b: (0, 0)

    # TODO(synk): for ViT-scale Nk (>= ~1k image tokens) add an "arbitrary"
    # grid axis over Nk with online-softmax accumulation so K/V tiles stream
    # through VMEM (mandatory on v7x's 64 MiB VMEM); unnecessary at these Nk.
    # TODO(synk): if deployed with C < 128, pad C to 128 so stores are
    # lane-dense instead of masked vst.msk.
    def _call(single_buffer_weights: bool):
        # Loop-invariant weights/biases: constant index maps, single-buffered.
        wkw = {"pipeline_mode": pl.Buffered(1)} if single_buffer_weights else {}

        def wspec(shape):
            return pl.BlockSpec(shape, const2d, **wkw)

        return pl.pallas_call(
            kernel,
            out_shape=jax.ShapeDtypeStruct((B, Nq, C), prototypes.dtype),
            grid_spec=pltpu.PrefetchScalarGridSpec(
                num_scalar_prefetch=0,
                grid=(grid_b,),
                in_specs=[
                    pl.BlockSpec((b_block, Nk, C), per_batch3),   # image_f (K/V src)
                    pl.BlockSpec((b_block, Nq, C), per_batch3),   # prototypes (Q src)
                    wspec((C, C)), wspec((1, C)),                  # q_proj (scaled)
                    wspec((C, 2 * C)), wspec((1, 2 * C)),          # fused k|v proj
                    wspec((C, C)), wspec((1, C)),                  # out_proj
                    wspec((1, C)), wspec((1, C)),                  # LN gamma, beta
                ],
                out_specs=pl.BlockSpec((b_block, Nq, C), per_batch3),
                scratch_shapes=[pltpu.VMEM((b_block * Nq, C), jnp.float32)],
            ),
            compiler_params=pltpu.CompilerParams(
                dimension_semantics=("parallel",),
                vmem_limit_bytes=vmem_limit),
        )(image_f, prototypes, wq, bq, wkv, bkv, wo, bo, gamma, beta)

    try:
        return _call(True)
    except Exception:
        # pl.Buffered(1) rejected by this jax version: fall back to default
        # double buffering of the loop-invariant weights.
        return _call(False)


def _reference(image_f, prototypes, params, *, num_heads, eps=1e-5):
    """Pure-JAX f32 reference mirroring the PyTorch forward pass."""
    B, Nk, C = image_f.shape
    _, Nq, _ = prototypes.shape
    d = C // num_heads

    def lin(x, w, b):
        return x @ w + b[0]

    q = lin(prototypes, params["wq"], params["bq"])
    k = lin(image_f, params["wk"], params["bk"])
    v = lin(image_f, params["wv"], params["bv"])

    def split(x):
        b_, n_, c_ = x.shape
        return x.reshape(b_, n_, num_heads, c_ // num_heads).transpose(0, 2, 1, 3)

    qh, kh, vh = split(q), split(k), split(v)
    attn = jnp.einsum("bhqd,bhkd->bhqk", qh, kh) / math.sqrt(d)
    attn = jax.nn.softmax(attn, axis=-1)
    out = jnp.einsum("bhqk,bhkd->bhqd", attn, vh)
    out = out.transpose(0, 2, 1, 3).reshape(B, Nq, C)
    out = lin(out, params["wo"], params["bo"])
    y = prototypes + out
    mu = jnp.mean(y, axis=-1, keepdims=True)
    var = jnp.mean((y - mu) ** 2, axis=-1, keepdims=True)
    yn = (y - mu) / jnp.sqrt(var + eps)
    return yn * params["gamma"][0] + params["beta"][0]


def make_params(key, embedding_dim):
    C = embedding_dim
    keys = jax.random.split(key, 8)
    lim = 1.0 / math.sqrt(C)

    def linear(kw, kb):
        # PyTorch Linear: weight is (out, in); store transposed (in, out).
        w = jax.random.uniform(kw, (C, C), jnp.float32, -lim, lim)
        b = jax.random.uniform(kb, (1, C), jnp.float32, -lim, lim)
        return w, b

    wq, bq = linear(keys[0], keys[1])
    wk, bk = linear(keys[2], keys[3])
    wv, bv = linear(keys[4], keys[5])
    wo, bo = linear(keys[6], keys[7])
    gamma = jnp.ones((1, C), jnp.float32)
    beta = jnp.zeros((1, C), jnp.float32)
    return dict(wq=wq, bq=bq, wk=wk, bk=bk, wv=wv, bv=bv,
                wo=wo, bo=bo, gamma=gamma, beta=beta)


if __name__ == "__main__":
    B, N_IMG, N_PROTO, C, H = 2, 16, 8, 32, 4

    key = jax.random.PRNGKey(0)
    k_img, k_proto, k_param = jax.random.split(key, 3)
    image_f = jax.random.normal(k_img, (B, N_IMG, C), jnp.float32)
    prototypes = jax.random.normal(k_proto, (B, N_PROTO, C), jnp.float32)
    params = make_params(k_param, C)

    ref = _reference(image_f, prototypes, params, num_heads=H)

    # Default (bf16 MXU operands + approx reciprocal): loose tolerance.
    out = img_to_prototype_attention_block(image_f, prototypes, params, num_heads=H)
    out = jax.block_until_ready(out)
    assert out.shape == (B, N_PROTO, C)
    assert jnp.allclose(out, ref, atol=3e-2, rtol=3e-2), \
        f"max abs err (bf16 path) {jnp.max(jnp.abs(out - ref))}"

    # Strict numerics check: full-f32 MXU path, exact softmax divide.
    out_f32 = img_to_prototype_attention_block(
        image_f, prototypes, params, num_heads=H,
        mxu_dtype=jnp.float32, attn_dtype=jnp.float32, approx_recip=False)
    out_f32 = jax.block_until_ready(out_f32)
    assert jnp.allclose(out_f32, ref, atol=1e-3, rtol=1e-3), \
        f"max abs err (f32 path) {jnp.max(jnp.abs(out_f32 - ref))}"

    print("KERNEL_OK")
</pallas_src>

<mosaic_0001>
module attributes {stable_mosaic.version = 11 : i64} {
  func.func @_attn_block_kernel(%arg0: i32, %arg1: memref<2x16x32xf32, #tpu.memory_space<vmem>>, %arg2: memref<2x8x32xf32, #tpu.memory_space<vmem>>, %arg3: memref<32x32xbf16, #tpu.memory_space<vmem>>, %arg4: memref<1x32xf32, #tpu.memory_space<vmem>>, %arg5: memref<32x64xbf16, #tpu.memory_space<vmem>>, %arg6: memref<1x64xf32, #tpu.memory_space<vmem>>, %arg7: memref<32x32xbf16, #tpu.memory_space<vmem>>, %arg8: memref<1x32xf32, #tpu.memory_space<vmem>>, %arg9: memref<1x32xf32, #tpu.memory_space<vmem>>, %arg10: memref<1x32xf32, #tpu.memory_space<vmem>>, %arg11: memref<2x8x32xf32, #tpu.memory_space<vmem>>, %arg12: memref<16x32xf32, #tpu.memory_space<vmem>>) attributes {dimension_semantics = [#tpu.dimension_semantics<parallel>], iteration_bounds = array<i64: 1>, scalar_prefetch = 0 : i64, scratch_operands = 1 : i64, tpu.core_type = #tpu.core_type<tc>, window_params = [{transform_indices = @transform_0, window_bounds = array<i64: 2, 16, 32>}, {transform_indices = @transform_1, window_bounds = array<i64: 2, 8, 32>}, {pipeline_mode = #tpu.pipeline_mode<synchronous>, transform_indices = @transform_2, window_bounds = array<i64: 32, 32>}, {pipeline_mode = #tpu.pipeline_mode<synchronous>, transform_indices = @transform_3, window_bounds = array<i64: 1, 32>}, {pipeline_mode = #tpu.pipeline_mode<synchronous>, transform_indices = @transform_4, window_bounds = array<i64: 32, 64>}, {pipeline_mode = #tpu.pipeline_mode<synchronous>, transform_indices = @transform_5, window_bounds = array<i64: 1, 64>}, {pipeline_mode = #tpu.pipeline_mode<synchronous>, transform_indices = @transform_6, window_bounds = array<i64: 32, 32>}, {pipeline_mode = #tpu.pipeline_mode<synchronous>, transform_indices = @transform_7, window_bounds = array<i64: 1, 32>}, {pipeline_mode = #tpu.pipeline_mode<synchronous>, transform_indices = @transform_8, window_bounds = array<i64: 1, 32>}, {pipeline_mode = #tpu.pipeline_mode<synchronous>, transform_indices = @transform_9, window_bounds = array<i64: 1, 32>}, {transform_indices = @transform_10, window_bounds = array<i64: 2, 8, 32>}]} {
    %c0 = arith.constant 0 : index
    %c0_0 = arith.constant 0 : index
    %c0_1 = arith.constant 0 : index
    %0 = vector.load %arg2[%c0, %c0_0, %c0_1] : memref<2x8x32xf32, #tpu.memory_space<vmem>>, vector<2x8x32xf32>
    %c0_2 = arith.constant 0 : index
    %c0_3 = arith.constant 0 : index
    %c0_4 = arith.constant 0 : index
    %1 = vector.load %arg1[%c0_2, %c0_3, %c0_4] : memref<2x16x32xf32, #tpu.memory_space<vmem>>, vector<2x16x32xf32>
    %2 = vector.shape_cast %0 : vector<2x8x32xf32> to vector<16x32xf32>
    %3 = vector.shape_cast %1 : vector<2x16x32xf32> to vector<32x32xf32>
    %4 = arith.truncf %2 : vector<16x32xf32> to vector<16x32xbf16>
    %c0_5 = arith.constant 0 : index
    %c0_6 = arith.constant 0 : index
    %5 = vector.load %arg3[%c0_5, %c0_6] : memref<32x32xbf16, #tpu.memory_space<vmem>>, vector<32x32xbf16>
    %cst = arith.constant dense<0.000000e+00> : vector<16x32xf32>
    %6 = tpu.matmul %4, %5, %cst {dimension_numbers = #tpu.dot_dimension_numbers<[1], [0], [0], [1], [0, 0, 1, 1], [], []>} : vector<16x32xbf16>, vector<32x32xbf16>, vector<16x32xf32> -> vector<16x32xf32>
    %c0_7 = arith.constant 0 : index
    %c0_8 = arith.constant 0 : index
    %7 = vector.load %arg4[%c0_7, %c0_8] : memref<1x32xf32, #tpu.memory_space<vmem>>, vector<1x32xf32>
    %8 = vector.broadcast %7 : vector<1x32xf32> to vector<16x32xf32>
    %9 = arith.addf %6, %8 : vector<16x32xf32>
    %10 = arith.truncf %3 : vector<32x32xf32> to vector<32x32xbf16>
    %c0_9 = arith.constant 0 : index
    %c0_10 = arith.constant 0 : index
    %11 = vector.load %arg5[%c0_9, %c0_10] : memref<32x64xbf16, #tpu.memory_space<vmem>>, vector<32x64xbf16>
    %cst_11 = arith.constant dense<0.000000e+00> : vector<32x64xf32>
    %12 = tpu.matmul %10, %11, %cst_11 {dimension_numbers = #tpu.dot_dimension_numbers<[1], [0], [0], [1], [0, 0, 1, 1], [], []>} : vector<32x32xbf16>, vector<32x64xbf16>, vector<32x64xf32> -> vector<32x64xf32>
    %c0_12 = arith.constant 0 : index
    %c0_13 = arith.constant 0 : index
    %13 = vector.load %arg6[%c0_12, %c0_13] : memref<1x64xf32, #tpu.memory_space<vmem>>, vector<1x64xf32>
    %14 = vector.broadcast %13 : vector<1x64xf32> to vector<32x64xf32>
    %15 = arith.addf %12, %14 : vector<32x64xf32>
    %16 = vector.shape_cast %9 : vector<16x32xf32> to vector<2x8x32xf32>
    %17 = arith.truncf %16 : vector<2x8x32xf32> to vector<2x8x32xbf16>
    %18 = vector.extract_strided_slice %15 {offsets = [0, 0], sizes = [32, 32], strides = [1, 1]} : vector<32x64xf32> to vector<32x32xf32>
    %19 = vector.shape_cast %18 : vector<32x32xf32> to vector<2x16x32xf32>
    %20 = arith.truncf %19 : vector<2x16x32xf32> to vector<2x16x32xbf16>
    %21 = vector.extract_strided_slice %15 {offsets = [0, 32], sizes = [32, 32], strides = [1, 1]} : vector<32x64xf32> to vector<32x32xf32>
    %22 = vector.shape_cast %21 : vector<32x32xf32> to vector<2x16x32xf32>
    %23 = arith.truncf %22 : vector<2x16x32xf32> to vector<2x16x32xbf16>
    %24 = vector.extract_strided_slice %17 {offsets = [0, 0, 0], sizes = [2, 8, 8], strides = [1, 1, 1]} : vector<2x8x32xbf16> to vector<2x8x8xbf16>
    %25 = vector.extract_strided_slice %20 {offsets = [0, 0, 0], sizes = [2, 16, 8], strides = [1, 1, 1]} : vector<2x16x32xbf16> to vector<2x16x8xbf16>
    %26 = vector.extract_strided_slice %23 {offsets = [0, 0, 0], sizes = [2, 16, 8], strides = [1, 1, 1]} : vector<2x16x32xbf16> to vector<2x16x8xbf16>
    "tpu.trace_start"() <{level = 10 : i32, message = "bqd,bkd->bqk"}> : () -> ()
    %cst_14 = arith.constant dense<0.000000e+00> : vector<2x8x16xf32>
    %27 = tpu.matmul %24, %25, %cst_14 {dimension_numbers = #tpu.dot_dimension_numbers<[2], [2], [1], [1], [0, 0, 0, 1, 1, 1], [0], [0]>} : vector<2x8x8xbf16>, vector<2x16x8xbf16>, vector<2x8x16xf32> -> vector<2x8x16xf32>
    "tpu.trace_stop"() : () -> ()
    %cst_15 = arith.constant dense<0xFF800000> : vector<2x8xf32>
    %28 = vector.multi_reduction <maximumf>, %27, %cst_15 [2] : vector<2x8x16xf32> to vector<2x8xf32>
    %29 = vector.shape_cast %28 : vector<2x8xf32> to vector<2x8x1xf32>
    %30 = vector.broadcast %29 : vector<2x8x1xf32> to vector<2x8x16xf32>
    %31 = arith.subf %27, %30 : vector<2x8x16xf32>
    %32 = math.exp %31 : vector<2x8x16xf32>
    %cst_16 = arith.constant dense<0.000000e+00> : vector<2x8xf32>
    %33 = vector.multi_reduction <add>, %32, %cst_16 [2] : vector<2x8x16xf32> to vector<2x8xf32>
    %34 = vector.shape_cast %33 : vector<2x8xf32> to vector<2x8x1xf32>
    %35 = tpu.reciprocal %34 {approx = true} : vector<2x8x1xf32> -> vector<2x8x1xf32>
    %36 = vector.broadcast %35 : vector<2x8x1xf32> to vector<2x8x16xf32>
    %37 = arith.mulf %32, %36 : vector<2x8x16xf32>
    %38 = arith.truncf %37 : vector<2x8x16xf32> to vector<2x8x16xbf16>
    "tpu.trace_start"() <{level = 10 : i32, message = "bqk,bkd->bqd"}> : () -> ()
    %cst_17 = arith.constant dense<0.000000e+00> : vector<2x8x8xf32>
    %39 = tpu.matmul %38, %26, %cst_17 {dimension_numbers = #tpu.dot_dimension_numbers<[2], [1], [1], [2], [0, 0, 0, 1, 1, 2], [0], [0]>} : vector<2x8x16xbf16>, vector<2x16x8xbf16>, vector<2x8x8xf32> -> vector<2x8x8xf32>
    "tpu.trace_stop"() : () -> ()
    %40 = vector.shape_cast %39 : vector<2x8x8xf32> to vector<16x8xf32>
    %c0_18 = arith.constant 0 : index
    %c0_19 = arith.constant 0 : index
    %41 = vector.load %arg12[%c0_18, %c0_19] : memref<16x32xf32, #tpu.memory_space<vmem>>, vector<16x8xf32>
    tpu.vector_store %arg12[%c0_18, %c0_19], %40 {strides = array<i32>} : memref<16x32xf32, #tpu.memory_space<vmem>>, vector<16x8xf32>,
    %42 = vector.extract_strided_slice %17 {offsets = [0, 0, 8], sizes = [2, 8, 8], strides = [1, 1, 1]} : vector<2x8x32xbf16> to vector<2x8x8xbf16>
    %43 = vector.extract_strided_slice %20 {offsets = [0, 0, 8], sizes = [2, 16, 8], strides = [1, 1, 1]} : vector<2x16x32xbf16> to vector<2x16x8xbf16>
    %44 = vector.extract_strided_slice %23 {offsets = [0, 0, 8], sizes = [2, 16, 8], strides = [1, 1, 1]} : vector<2x16x32xbf16> to vector<2x16x8xbf16>
    "tpu.trace_start"() <{level = 10 : i32, message = "bqd,bkd->bqk"}> : () -> ()
    %cst_20 = arith.constant dense<0.000000e+00> : vector<2x8x16xf32>
    %45 = tpu.matmul %42, %43, %cst_20 {dimension_numbers = #tpu.dot_dimension_numbers<[2], [2], [1], [1], [0, 0, 0, 1, 1, 1], [0], [0]>} : vector<2x8x8xbf16>, vector<2x16x8xbf16>, vector<2x8x16xf32> -> vector<2x8x16xf32>
    "tpu.trace_stop"() : () -> ()
    %cst_21 = arith.constant dense<0xFF800000> : vector<2x8xf32>
    %46 = vector.multi_reduction <maximumf>, %45, %cst_21 [2] : vector<2x8x16xf32> to vector<2x8xf32>
    %47 = vector.shape_cast %46 : vector<2x8xf32> to vector<2x8x1xf32>
    %48 = vector.broadcast %47 : vector<2x8x1xf32> to vector<2x8x16xf32>
    %49 = arith.subf %45, %48 : vector<2x8x16xf32>
    %50 = math.exp %49 : vector<2x8x16xf32>
    %cst_22 = arith.constant dense<0.000000e+00> : vector<2x8xf32>
    %51 = vector.multi_reduction <add>, %50, %cst_22 [2] : vector<2x8x16xf32> to vector<2x8xf32>
    %52 = vector.shape_cast %51 : vector<2x8xf32> to vector<2x8x1xf32>
    %53 = tpu.reciprocal %52 {approx = true} : vector<2x8x1xf32> -> vector<2x8x1xf32>
    %54 = vector.broadcast %53 : vector<2x8x1xf32> to vector<2x8x16xf32>
    %55 = arith.mulf %50, %54 : vector<2x8x16xf32>
    %56 = arith.truncf %55 : vector<2x8x16xf32> to vector<2x8x16xbf16>
    "tpu.trace_start"() <{level = 10 : i32, message = "bqk,bkd->bqd"}> : () -> ()
    %cst_23 = arith.constant dense<0.000000e+00> : vector<2x8x8xf32>
    %57 = tpu.matmul %56, %44, %cst_23 {dimension_numbers = #tpu.dot_dimension_numbers<[2], [1], [1], [2], [0, 0, 0, 1, 1, 2], [0], [0]>} : vector<2x8x16xbf16>, vector<2x16x8xbf16>, vector<2x8x8xf32> -> vector<2x8x8xf32>
    "tpu.trace_stop"() : () -> ()
    %58 = vector.shape_cast %57 : vector<2x8x8xf32> to vector<16x8xf32>
    %c0_24 = arith.constant 0 : index
    %c8 = arith.constant 8 : index
    %59 = vector.load %arg12[%c0_24, %c8] : memref<16x32xf32, #tpu.memory_space<vmem>>, vector<16x8xf32>
    tpu.vector_store %arg12[%c0_24, %c8], %58 {strides = array<i32>} : memref<16x32xf32, #tpu.memory_space<vmem>>, vector<16x8xf32>,
    %60 = vector.extract_strided_slice %17 {offsets = [0, 0, 16], sizes = [2, 8, 8], strides = [1, 1, 1]} : vector<2x8x32xbf16> to vector<2x8x8xbf16>
    %61 = vector.extract_strided_slice %20 {offsets = [0, 0, 16], sizes = [2, 16, 8], strides = [1, 1, 1]} : vector<2x16x32xbf16> to vector<2x16x8xbf16>
    %62 = vector.extract_strided_slice %23 {offsets = [0, 0, 16], sizes = [2, 16, 8], strides = [1, 1, 1]} : vector<2x16x32xbf16> to vector<2x16x8xbf16>
    "tpu.trace_start"() <{level = 10 : i32, message = "bqd,bkd->bqk"}> : () -> ()
    %cst_25 = arith.constant dense<0.000000e+00> : vector<2x8x16xf32>
    %63 = tpu.matmul %60, %61, %cst_25 {dimension_numbers = #tpu.dot_dimension_numbers<[2], [2], [1], [1], [0, 0, 0, 1, 1, 1], [0], [0]>} : vector<2x8x8xbf16>, vector<2x16x8xbf16>, vector<2x8x16xf32> -> vector<2x8x16xf32>
    "tpu.trace_stop"() : () -> ()
    %cst_26 = arith.constant dense<0xFF800000> : vector<2x8xf32>
    %64 = vector.multi_reduction <maximumf>, %63, %cst_26 [2] : vector<2x8x16xf32> to vector<2x8xf32>
    %65 = vector.shape_cast %64 : vector<2x8xf32> to vector<2x8x1xf32>
    %66 = vector.broadcast %65 : vector<2x8x1xf32> to vector<2x8x16xf32>
    %67 = arith.subf %63, %66 : vector<2x8x16xf32>
    %68 = math.exp %67 : vector<2x8x16xf32>
    %cst_27 = arith.constant dense<0.000000e+00> : vector<2x8xf32>
    %69 = vector.multi_reduction <add>, %68, %cst_27 [2] : vector<2x8x16xf32> to vector<2x8xf32>
    %70 = vector.shape_cast %69 : vector<2x8xf32> to vector<2x8x1xf32>
    %71 = tpu.reciprocal %70 {approx = true} : vector<2x8x1xf32> -> vector<2x8x1xf32>
    %72 = vector.broadcast %71 : vector<2x8x1xf32> to vector<2x8x16xf32>
    %73 = arith.mulf %68, %72 : vector<2x8x16xf32>
    %74 = arith.truncf %73 : vector<2x8x16xf32> to vector<2x8x16xbf16>
    "tpu.trace_start"() <{level = 10 : i32, message = "bqk,bkd->bqd"}> : () -> ()
    %cst_28 = arith.constant dense<0.000000e+00> : vector<2x8x8xf32>
    %75 = tpu.matmul %74, %62, %cst_28 {dimension_numbers = #tpu.dot_dimension_numbers<[2], [1], [1], [2], [0, 0, 0, 1, 1, 2], [0], [0]>} : vector<2x8x16xbf16>, vector<2x16x8xbf16>, vector<2x8x8xf32> -> vector<2x8x8xf32>
    "tpu.trace_stop"() : () -> ()
    %76 = vector.shape_cast %75 : vector<2x8x8xf32> to vector<16x8xf32>
    %c0_29 = arith.constant 0 : index
    %c16 = arith.constant 16 : index
    %77 = vector.load %arg12[%c0_29, %c16] : memref<16x32xf32, #tpu.memory_space<vmem>>, vector<16x8xf32>
    tpu.vector_store %arg12[%c0_29, %c16], %76 {strides = array<i32>} : memref<16x32xf32, #tpu.memory_space<vmem>>, vector<16x8xf32>,
    %78 = vector.extract_strided_slice %17 {offsets = [0, 0, 24], sizes = [2, 8, 8], strides = [1, 1, 1]} : vector<2x8x32xbf16> to vector<2x8x8xbf16>
    %79 = vector.extract_strided_slice %20 {offsets = [0, 0, 24], sizes = [2, 16, 8], strides = [1, 1, 1]} : vector<2x16x32xbf16> to vector<2x16x8xbf16>
    %80 = vector.extract_strided_slice %23 {offsets = [0, 0, 24], sizes = [2, 16, 8], strides = [1, 1, 1]} : vector<2x16x32xbf16> to vector<2x16x8xbf16>
    "tpu.trace_start"() <{level = 10 : i32, message = "bqd,bkd->bqk"}> : () -> ()
    %cst_30 = arith.constant dense<0.000000e+00> : vector<2x8x16xf32>
    %81 = tpu.matmul %78, %79, %cst_30 {dimension_numbers = #tpu.dot_dimension_numbers<[2], [2], [1], [1], [0, 0, 0, 1, 1, 1], [0], [0]>} : vector<2x8x8xbf16>, vector<2x16x8xbf16>, vector<2x8x16xf32> -> vector<2x8x16xf32>
    "tpu.trace_stop"() : () -> ()
    %cst_31 = arith.constant dense<0xFF800000> : vector<2x8xf32>
    %82 = vector.multi_reduction <maximumf>, %81, %cst_31 [2] : vector<2x8x16xf32> to vector<2x8xf32>
    %83 = vector.shape_cast %82 : vector<2x8xf32> to vector<2x8x1xf32>
    %84 = vector.broadcast %83 : vector<2x8x1xf32> to vector<2x8x16xf32>
    %85 = arith.subf %81, %84 : vector<2x8x16xf32>
    %86 = math.exp %85 : vector<2x8x16xf32>
    %cst_32 = arith.constant dense<0.000000e+00> : vector<2x8xf32>
    %87 = vector.multi_reduction <add>, %86, %cst_32 [2] : vector<2x8x16xf32> to vector<2x8xf32>
    %88 = vector.shape_cast %87 : vector<2x8xf32> to vector<2x8x1xf32>
    %89 = tpu.reciprocal %88 {approx = true} : vector<2x8x1xf32> -> vector<2x8x1xf32>
    %90 = vector.broadcast %89 : vector<2x8x1xf32> to vector<2x8x16xf32>
    %91 = arith.mulf %86, %90 : vector<2x8x16xf32>
    %92 = arith.truncf %91 : vector<2x8x16xf32> to vector<2x8x16xbf16>
    "tpu.trace_start"() <{level = 10 : i32, message = "bqk,bkd->bqd"}> : () -> ()
    %cst_33 = arith.constant dense<0.000000e+00> : vector<2x8x8xf32>
    %93 = tpu.matmul %92, %80, %cst_33 {dimension_numbers = #tpu.dot_dimension_numbers<[2], [1], [1], [2], [0, 0, 0, 1, 1, 2], [0], [0]>} : vector<2x8x16xbf16>, vector<2x16x8xbf16>, vector<2x8x8xf32> -> vector<2x8x8xf32>
    "tpu.trace_stop"() : () -> ()
    %94 = vector.shape_cast %93 : vector<2x8x8xf32> to vector<16x8xf32>
    %c0_34 = arith.constant 0 : index
    %c24 = arith.constant 24 : index
    %95 = vector.load %arg12[%c0_34, %c24] : memref<16x32xf32, #tpu.memory_space<vmem>>, vector<16x8xf32>
    tpu.vector_store %arg12[%c0_34, %c24], %94 {strides = array<i32>} : memref<16x32xf32, #tpu.memory_space<vmem>>, vector<16x8xf32>,
    %c0_35 = arith.constant 0 : index
    %c0_36 = arith.constant 0 : index
    %96 = vector.load %arg12[%c0_35, %c0_36] : memref<16x32xf32, #tpu.memory_space<vmem>>, vector<16x32xf32>
    %97 = arith.truncf %96 : vector<16x32xf32> to vector<16x32xbf16>
    %c0_37 = arith.constant 0 : index
    %c0_38 = arith.constant 0 : index
    %98 = vector.load %arg7[%c0_37, %c0_38] : memref<32x32xbf16, #tpu.memory_space<vmem>>, vector<32x32xbf16>
    %cst_39 = arith.constant dense<0.000000e+00> : vector<16x32xf32>
    %99 = tpu.matmul %97, %98, %cst_39 {dimension_numbers = #tpu.dot_dimension_numbers<[1], [0], [0], [1], [0, 0, 1, 1], [], []>} : vector<16x32xbf16>, vector<32x32xbf16>, vector<16x32xf32> -> vector<16x32xf32>
    %100 = arith.addf %2, %99 : vector<16x32xf32>
    %c0_40 = arith.constant 0 : index
    %c0_41 = arith.constant 0 : index
    %101 = vector.load %arg8[%c0_40, %c0_41] : memref<1x32xf32, #tpu.memory_space<vmem>>, vector<1x32xf32>
    %102 = vector.broadcast %101 : vector<1x32xf32> to vector<16x32xf32>
    %103 = arith.addf %100, %102 : vector<16x32xf32>
    %cst_42 = arith.constant dense<0.000000e+00> : vector<16xf32>
    %104 = vector.multi_reduction <add>, %103, %cst_42 [1] : vector<16x32xf32> to vector<16xf32>
    %105 = vector.shape_cast %104 : vector<16xf32> to vector<16x1xf32>
    %cst_43 = arith.constant 3.200000e+01 : f32
    %106 = vector.broadcast %cst_43 : f32 to vector<16x1xf32>
    %107 = arith.divf %105, %106 : vector<16x1xf32>
    %108 = vector.broadcast %107 : vector<16x1xf32> to vector<16x32xf32>
    %109 = arith.subf %103, %108 : vector<16x32xf32>
    %110 = arith.mulf %109, %109 : vector<16x32xf32>
    %cst_44 = arith.constant dense<0.000000e+00> : vector<16xf32>
    %111 = vector.multi_reduction <add>, %110, %cst_44 [1] : vector<16x32xf32> to vector<16xf32>
    %112 = vector.shape_cast %111 : vector<16xf32> to vector<16x1xf32>
    %cst_45 = arith.constant 3.200000e+01 : f32
    %113 = vector.broadcast %cst_45 : f32 to vector<16x1xf32>
    %114 = arith.divf %112, %113 : vector<16x1xf32>
    %115 = vector.broadcast %107 : vector<16x1xf32> to vector<16x32xf32>
    %116 = arith.subf %103, %115 : vector<16x32xf32>
    %cst_46 = arith.constant 9.99999974E-6 : f32
    %117 = vector.broadcast %cst_46 : f32 to vector<16x1xf32>
    %118 = arith.addf %114, %117 : vector<16x1xf32>
    %119 = math.rsqrt %118 : vector<16x1xf32>
    %120 = vector.broadcast %119 : vector<16x1xf32> to vector<16x32xf32>
    %121 = arith.mulf %116, %120 : vector<16x32xf32>
    %c0_47 = arith.constant 0 : index
    %c0_48 = arith.constant 0 : index
    %122 = vector.load %arg9[%c0_47, %c0_48] : memref<1x32xf32, #tpu.memory_space<vmem>>, vector<1x32xf32>
    %123 = vector.broadcast %122 : vector<1x32xf32> to vector<16x32xf32>
    %124 = arith.mulf %121, %123 : vector<16x32xf32>
    %c0_49 = arith.constant 0 : index
    %c0_50 = arith.constant 0 : index
    %125 = vector.load %arg10[%c0_49, %c0_50] : memref<1x32xf32, #tpu.memory_space<vmem>>, vector<1x32xf32>
    %126 = vector.broadcast %125 : vector<1x32xf32> to vector<16x32xf32>
    %127 = arith.addf %124, %126 : vector<16x32xf32>
    %128 = vector.shape_cast %127 : vector<16x32xf32> to vector<2x8x32xf32>
    %c0_51 = arith.constant 0 : index
    %c0_52 = arith.constant 0 : index
    %c0_53 = arith.constant 0 : index
    %129 = vector.load %arg11[%c0_51, %c0_52, %c0_53] : memref<2x8x32xf32, #tpu.memory_space<vmem>>, vector<2x8x32xf32>
    tpu.vector_store %arg11[%c0_51, %c0_52, %c0_53], %128 {strides = array<i32>} : memref<2x8x32xf32, #tpu.memory_space<vmem>>, vector<2x8x32xf32>,
    return
  }
  func.func @transform_0(%arg0: i32) -> (i32, i32, i32) {
    %c0_i32 = arith.constant 0 : i32
    %c0_i32_0 = arith.constant 0 : i32
    %c0_i32_1 = arith.constant 0 : i32
    return %arg0, %c0_i32, %c0_i32_0 : i32, i32, i32
  }
  func.func @transform_1(%arg0: i32) -> (i32, i32, i32) {
    %c0_i32 = arith.constant 0 : i32
    %c0_i32_0 = arith.constant 0 : i32
    %c0_i32_1 = arith.constant 0 : i32
    return %arg0, %c0_i32, %c0_i32_0 : i32, i32, i32
  }
  func.func @transform_2(%arg0: i32) -> (i32, i32) {
    %c0_i32 = arith.constant 0 : i32
    %c0_i32_0 = arith.constant 0 : i32
    %c0_i32_1 = arith.constant 0 : i32
    return %c0_i32, %c0_i32_0 : i32, i32
  }
  func.func @transform_3(%arg0: i32) -> (i32, i32) {
    %c0_i32 = arith.constant 0 : i32
    %c0_i32_0 = arith.constant 0 : i32
    %c0_i32_1 = arith.constant 0 : i32
    return %c0_i32, %c0_i32_0 : i32, i32
  }
  func.func @transform_4(%arg0: i32) -> (i32, i32) {
    %c0_i32 = arith.constant 0 : i32
    %c0_i32_0 = arith.constant 0 : i32
    %c0_i32_1 = arith.constant 0 : i32
    return %c0_i32, %c0_i32_0 : i32, i32
  }
  func.func @transform_5(%arg0: i32) -> (i32, i32) {
    %c0_i32 = arith.constant 0 : i32
    %c0_i32_0 = arith.constant 0 : i32
    %c0_i32_1 = arith.constant 0 : i32
    return %c0_i32, %c0_i32_0 : i32, i32
  }
  func.func @transform_6(%arg0: i32) -> (i32, i32) {
    %c0_i32 = arith.constant 0 : i32
    %c0_i32_0 = arith.constant 0 : i32
    %c0_i32_1 = arith.constant 0 : i32
    return %c0_i32, %c0_i32_0 : i32, i32
  }
  func.func @transform_7(%arg0: i32) -> (i32, i32) {
    %c0_i32 = arith.constant 0 : i32
    %c0_i32_0 = arith.constant 0 : i32
    %c0_i32_1 = arith.constant 0 : i32
    return %c0_i32, %c0_i32_0 : i32, i32
  }
  func.func @transform_8(%arg0: i32) -> (i32, i32) {
    %c0_i32 = arith.constant 0 : i32
    %c0_i32_0 = arith.constant 0 : i32
    %c0_i32_1 = arith.constant 0 : i32
    return %c0_i32, %c0_i32_0 : i32, i32
  }
  func.func @transform_9(%arg0: i32) -> (i32, i32) {
    %c0_i32 = arith.constant 0 : i32
    %c0_i32_0 = arith.constant 0 : i32
    %c0_i32_1 = arith.constant 0 : i32
    return %c0_i32, %c0_i32_0 : i32, i32
  }
  func.func @transform_10(%arg0: i32) -> (i32, i32, i32) {
    %c0_i32 = arith.constant 0 : i32
    %c0_i32_0 = arith.constant 0 : i32
    %c0_i32_1 = arith.constant 0 : i32
    return %arg0, %c0_i32, %c0_i32_0 : i32, i32, i32
  }
}

module attributes {stable_mosaic.version = 11 : i64} {
  func.func @_attn_block_kernel(%arg0: i32, %arg1: memref<2x16x32xf32, #tpu.memory_space<vmem>>, %arg2: memref<2x8x32xf32, #tpu.memory_space<vmem>>, %arg3: memref<32x32xbf16, #tpu.memory_space<vmem>>, %arg4: memref<1x32xf32, #tpu.memory_space<vmem>>, %arg5: memref<32x64xbf16, #tpu.memory_space<vmem>>, %arg6: memref<1x64xf32, #tpu.memory_space<vmem>>, %arg7: memref<32x32xbf16, #tpu.memory_space<vmem>>, %arg8: memref<1x32xf32, #tpu.memory_space<vmem>>, %arg9: memref<1x32xf32, #tpu.memory_space<vmem>>, %arg10: memref<1x32xf32, #tpu.memory_space<vmem>>, %arg11: memref<2x8x32xf32, #tpu.memory_space<vmem>>, %arg12: memref<16x32xf32, #tpu.memory_space<vmem>>) attributes {dimension_semantics = [#tpu.dimension_semantics<parallel>], iteration_bounds = array<i64: 1>, scalar_prefetch = 0 : i64, scratch_operands = 1 : i64, tpu.core_type = #tpu.core_type<tc>, window_params = [{transform_indices = @transform_0, window_bounds = array<i64: 2, 16, 32>}, {transform_indices = @transform_1, window_bounds = array<i64: 2, 8, 32>}, {pipeline_mode = #tpu.pipeline_mode<synchronous>, transform_indices = @transform_2, window_bounds = array<i64: 32, 32>}, {pipeline_mode = #tpu.pipeline_mode<synchronous>, transform_indices = @transform_3, window_bounds = array<i64: 1, 32>}, {pipeline_mode = #tpu.pipeline_mode<synchronous>, transform_indices = @transform_4, window_bounds = array<i64: 32, 64>}, {pipeline_mode = #tpu.pipeline_mode<synchronous>, transform_indices = @transform_5, window_bounds = array<i64: 1, 64>}, {pipeline_mode = #tpu.pipeline_mode<synchronous>, transform_indices = @transform_6, window_bounds = array<i64: 32, 32>}, {pipeline_mode = #tpu.pipeline_mode<synchronous>, transform_indices = @transform_7, window_bounds = array<i64: 1, 32>}, {pipeline_mode = #tpu.pipeline_mode<synchronous>, transform_indices = @transform_8, window_bounds = array<i64: 1, 32>}, {pipeline_mode = #tpu.pipeline_mode<synchronous>, transform_indices = @transform_9, window_bounds = array<i64: 1, 32>}, {transform_indices = @transform_10, window_bounds = array<i64: 2, 8, 32>}]} {
    %c0 = arith.constant 0 : index
    %c0_0 = arith.constant 0 : index
    %c0_1 = arith.constant 0 : index
    %0 = vector.load %arg2[%c0, %c0_0, %c0_1] : memref<2x8x32xf32, #tpu.memory_space<vmem>>, vector<2x8x32xf32>
    %c0_2 = arith.constant 0 : index
    %c0_3 = arith.constant 0 : index
    %c0_4 = arith.constant 0 : index
    %1 = vector.load %arg1[%c0_2, %c0_3, %c0_4] : memref<2x16x32xf32, #tpu.memory_space<vmem>>, vector<2x16x32xf32>
    %2 = vector.shape_cast %0 : vector<2x8x32xf32> to vector<16x32xf32>
    %3 = vector.shape_cast %1 : vector<2x16x32xf32> to vector<32x32xf32>
    %4 = arith.truncf %2 : vector<16x32xf32> to vector<16x32xbf16>
    %c0_5 = arith.constant 0 : index
    %c0_6 = arith.constant 0 : index
    %5 = vector.load %arg3[%c0_5, %c0_6] : memref<32x32xbf16, #tpu.memory_space<vmem>>, vector<32x32xbf16>
    %cst = arith.constant dense<0.000000e+00> : vector<16x32xf32>
    %6 = tpu.matmul %4, %5, %cst {dimension_numbers = #tpu.dot_dimension_numbers<[1], [0], [0], [1], [0, 0, 1, 1], [], []>} : vector<16x32xbf16>, vector<32x32xbf16>, vector<16x32xf32> -> vector<16x32xf32>
    %c0_7 = arith.constant 0 : index
    %c0_8 = arith.constant 0 : index
    %7 = vector.load %arg4[%c0_7, %c0_8] : memref<1x32xf32, #tpu.memory_space<vmem>>, vector<1x32xf32>
    %8 = vector.broadcast %7 : vector<1x32xf32> to vector<16x32xf32>
    %9 = arith.addf %6, %8 : vector<16x32xf32>
    %10 = arith.truncf %3 : vector<32x32xf32> to vector<32x32xbf16>
    %c0_9 = arith.constant 0 : index
    %c0_10 = arith.constant 0 : index
    %11 = vector.load %arg5[%c0_9, %c0_10] : memref<32x64xbf16, #tpu.memory_space<vmem>>, vector<32x64xbf16>
    %cst_11 = arith.constant dense<0.000000e+00> : vector<32x64xf32>
    %12 = tpu.matmul %10, %11, %cst_11 {dimension_numbers = #tpu.dot_dimension_numbers<[1], [0], [0], [1], [0, 0, 1, 1], [], []>} : vector<32x32xbf16>, vector<32x64xbf16>, vector<32x64xf32> -> vector<32x64xf32>
    %c0_12 = arith.constant 0 : index
    %c0_13 = arith.constant 0 : index
    %13 = vector.load %arg6[%c0_12, %c0_13] : memref<1x64xf32, #tpu.memory_space<vmem>>, vector<1x64xf32>
    %14 = vector.broadcast %13 : vector<1x64xf32> to vector<32x64xf32>
    %15 = arith.addf %12, %14 : vector<32x64xf32>
    %16 = vector.shape_cast %9 : vector<16x32xf32> to vector<2x8x32xf32>
    %17 = arith.truncf %16 : vector<2x8x32xf32> to vector<2x8x32xbf16>
    %18 = vector.extract_strided_slice %15 {offsets = [0, 0], sizes = [32, 32], strides = [1, 1]} : vector<32x64xf32> to vector<32x32xf32>
    %19 = vector.shape_cast %18 : vector<32x32xf32> to vector<2x16x32xf32>
    %20 = arith.truncf %19 : vector<2x16x32xf32> to vector<2x16x32xbf16>
    %21 = vector.extract_strided_slice %15 {offsets = [0, 32], sizes = [32, 32], strides = [1, 1]} : vector<32x64xf32> to vector<32x32xf32>
    %22 = vector.shape_cast %21 : vector<32x32xf32> to vector<2x16x32xf32>
    %23 = arith.truncf %22 : vector<2x16x32xf32> to vector<2x16x32xbf16>
    %24 = vector.extract_strided_slice %17 {offsets = [0, 0, 0], sizes = [2, 8, 8], strides = [1, 1, 1]} : vector<2x8x32xbf16> to vector<2x8x8xbf16>
    %25 = vector.extract_strided_slice %20 {offsets = [0, 0, 0], sizes = [2, 16, 8], strides = [1, 1, 1]} : vector<2x16x32xbf16> to vector<2x16x8xbf16>
    %26 = vector.extract_strided_slice %23 {offsets = [0, 0, 0], sizes = [2, 16, 8], strides = [1, 1, 1]} : vector<2x16x32xbf16> to vector<2x16x8xbf16>
    "tpu.trace_start"() <{level = 10 : i32, message = "bqd,bkd->bqk"}> : () -> ()
    %cst_14 = arith.constant dense<0.000000e+00> : vector<2x8x16xf32>
    %27 = tpu.matmul %24, %25, %cst_14 {dimension_numbers = #tpu.dot_dimension_numbers<[2], [2], [1], [1], [0, 0, 0, 1, 1, 1], [0], [0]>} : vector<2x8x8xbf16>, vector<2x16x8xbf16>, vector<2x8x16xf32> -> vector<2x8x16xf32>
    "tpu.trace_stop"() : () -> ()
    %cst_15 = arith.constant dense<0xFF800000> : vector<2x8xf32>
    %28 = vector.multi_reduction <maximumf>, %27, %cst_15 [2] : vector<2x8x16xf32> to vector<2x8xf32>
    %29 = vector.shape_cast %28 : vector<2x8xf32> to vector<2x8x1xf32>
    %30 = vector.broadcast %29 : vector<2x8x1xf32> to vector<2x8x16xf32>
    %31 = arith.subf %27, %30 : vector<2x8x16xf32>
    %32 = math.exp %31 : vector<2x8x16xf32>
    %cst_16 = arith.constant dense<0.000000e+00> : vector<2x8xf32>
    %33 = vector.multi_reduction <add>, %32, %cst_16 [2] : vector<2x8x16xf32> to vector<2x8xf32>
    %34 = vector.shape_cast %33 : vector<2x8xf32> to vector<2x8x1xf32>
    %35 = tpu.reciprocal %34 {approx = true} : vector<2x8x1xf32> -> vector<2x8x1xf32>
    %36 = vector.broadcast %35 : vector<2x8x1xf32> to vector<2x8x16xf32>
    %37 = arith.mulf %32, %36 : vector<2x8x16xf32>
    %38 = arith.truncf %37 : vector<2x8x16xf32> to vector<2x8x16xbf16>
    "tpu.trace_start"() <{level = 10 : i32, message = "bqk,bkd->bqd"}> : () -> ()
    %cst_17 = arith.constant dense<0.000000e+00> : vector<2x8x8xf32>
    %39 = tpu.matmul %38, %26, %cst_17 {dimension_numbers = #tpu.dot_dimension_numbers<[2], [1], [1], [2], [0, 0, 0, 1, 1, 2], [0], [0]>} : vector<2x8x16xbf16>, vector<2x16x8xbf16>, vector<2x8x8xf32> -> vector<2x8x8xf32>
    "tpu.trace_stop"() : () -> ()
    %40 = vector.shape_cast %39 : vector<2x8x8xf32> to vector<16x8xf32>
    %c0_18 = arith.constant 0 : index
    %c0_19 = arith.constant 0 : index
    %41 = vector.load %arg12[%c0_18, %c0_19] : memref<16x32xf32, #tpu.memory_space<vmem>>, vector<16x8xf32>
    tpu.vector_store %arg12[%c0_18, %c0_19], %40 {strides = array<i32>} : memref<16x32xf32, #tpu.memory_space<vmem>>, vector<16x8xf32>,
    %42 = vector.extract_strided_slice %17 {offsets = [0, 0, 8], sizes = [2, 8, 8], strides = [1, 1, 1]} : vector<2x8x32xbf16> to vector<2x8x8xbf16>
    %43 = vector.extract_strided_slice %20 {offsets = [0, 0, 8], sizes = [2, 16, 8], strides = [1, 1, 1]} : vector<2x16x32xbf16> to vector<2x16x8xbf16>
    %44 = vector.extract_strided_slice %23 {offsets = [0, 0, 8], sizes = [2, 16, 8], strides = [1, 1, 1]} : vector<2x16x32xbf16> to vector<2x16x8xbf16>
    "tpu.trace_start"() <{level = 10 : i32, message = "bqd,bkd->bqk"}> : () -> ()
    %cst_20 = arith.constant dense<0.000000e+00> : vector<2x8x16xf32>
    %45 = tpu.matmul %42, %43, %cst_20 {dimension_numbers = #tpu.dot_dimension_numbers<[2], [2], [1], [1], [0, 0, 0, 1, 1, 1], [0], [0]>} : vector<2x8x8xbf16>, vector<2x16x8xbf16>, vector<2x8x16xf32> -> vector<2x8x16xf32>
    "tpu.trace_stop"() : () -> ()
    %cst_21 = arith.constant dense<0xFF800000> : vector<2x8xf32>
    %46 = vector.multi_reduction <maximumf>, %45, %cst_21 [2] : vector<2x8x16xf32> to vector<2x8xf32>
    %47 = vector.shape_cast %46 : vector<2x8xf32> to vector<2x8x1xf32>
    %48 = vector.broadcast %47 : vector<2x8x1xf32> to vector<2x8x16xf32>
    %49 = arith.subf %45, %48 : vector<2x8x16xf32>
    %50 = math.exp %49 : vector<2x8x16xf32>
    %cst_22 = arith.constant dense<0.000000e+00> : vector<2x8xf32>
    %51 = vector.multi_reduction <add>, %50, %cst_22 [2] : vector<2x8x16xf32> to vector<2x8xf32>
    %52 = vector.shape_cast %51 : vector<2x8xf32> to vector<2x8x1xf32>
    %53 = tpu.reciprocal %52 {approx = true} : vector<2x8x1xf32> -> vector<2x8x1xf32>
    %54 = vector.broadcast %53 : vector<2x8x1xf32> to vector<2x8x16xf32>
    %55 = arith.mulf %50, %54 : vector<2x8x16xf32>
    %56 = arith.truncf %55 : vector<2x8x16xf32> to vector<2x8x16xbf16>
    "tpu.trace_start"() <{level = 10 : i32, message = "bqk,bkd->bqd"}> : () -> ()
    %cst_23 = arith.constant dense<0.000000e+00> : vector<2x8x8xf32>
    %57 = tpu.matmul %56, %44, %cst_23 {dimension_numbers = #tpu.dot_dimension_numbers<[2], [1], [1], [2], [0, 0, 0, 1, 1, 2], [0], [0]>} : vector<2x8x16xbf16>, vector<2x16x8xbf16>, vector<2x8x8xf32> -> vector<2x8x8xf32>
    "tpu.trace_stop"() : () -> ()
    %58 = vector.shape_cast %57 : vector<2x8x8xf32> to vector<16x8xf32>
    %c0_24 = arith.constant 0 : index
    %c8 = arith.constant 8 : index
    %59 = vector.load %arg12[%c0_24, %c8] : memref<16x32xf32, #tpu.memory_space<vmem>>, vector<16x8xf32>
    tpu.vector_store %arg12[%c0_24, %c8], %58 {strides = array<i32>} : memref<16x32xf32, #tpu.memory_space<vmem>>, vector<16x8xf32>,
    %60 = vector.extract_strided_slice %17 {offsets = [0, 0, 16], sizes = [2, 8, 8], strides = [1, 1, 1]} : vector<2x8x32xbf16> to vector<2x8x8xbf16>
    %61 = vector.extract_strided_slice %20 {offsets = [0, 0, 16], sizes = [2, 16, 8], strides = [1, 1, 1]} : vector<2x16x32xbf16> to vector<2x16x8xbf16>
    %62 = vector.extract_strided_slice %23 {offsets = [0, 0, 16], sizes = [2, 16, 8], strides = [1, 1, 1]} : vector<2x16x32xbf16> to vector<2x16x8xbf16>
    "tpu.trace_start"() <{level = 10 : i32, message = "bqd,bkd->bqk"}> : () -> ()
    %cst_25 = arith.constant dense<0.000000e+00> : vector<2x8x16xf32>
    %63 = tpu.matmul %60, %61, %cst_25 {dimension_numbers = #tpu.dot_dimension_numbers<[2], [2], [1], [1], [0, 0, 0, 1, 1, 1], [0], [0]>} : vector<2x8x8xbf16>, vector<2x16x8xbf16>, vector<2x8x16xf32> -> vector<2x8x16xf32>
    "tpu.trace_stop"() : () -> ()
    %cst_26 = arith.constant dense<0xFF800000> : vector<2x8xf32>
    %64 = vector.multi_reduction <maximumf>, %63, %cst_26 [2] : vector<2x8x16xf32> to vector<2x8xf32>
    %65 = vector.shape_cast %64 : vector<2x8xf32> to vector<2x8x1xf32>
    %66 = vector.broadcast %65 : vector<2x8x1xf32> to vector<2x8x16xf32>
    %67 = arith.subf %63, %66 : vector<2x8x16xf32>
    %68 = math.exp %67 : vector<2x8x16xf32>
    %cst_27 = arith.constant dense<0.000000e+00> : vector<2x8xf32>
    %69 = vector.multi_reduction <add>, %68, %cst_27 [2] : vector<2x8x16xf32> to vector<2x8xf32>
    %70 = vector.shape_cast %69 : vector<2x8xf32> to vector<2x8x1xf32>
    %71 = tpu.reciprocal %70 {approx = true} : vector<2x8x1xf32> -> vector<2x8x1xf32>
    %72 = vector.broadcast %71 : vector<2x8x1xf32> to vector<2x8x16xf32>
    %73 = arith.mulf %68, %72 : vector<2x8x16xf32>
    %74 = arith.truncf %73 : vector<2x8x16xf32> to vector<2x8x16xbf16>
    "tpu.trace_start"() <{level = 10 : i32, message = "bqk,bkd->bqd"}> : () -> ()
    %cst_28 = arith.constant dense<0.000000e+00> : vector<2x8x8xf32>
    %75 = tpu.matmul %74, %62, %cst_28 {dimension_numbers = #tpu.dot_dimension_numbers<[2], [1], [1], [2], [0, 0, 0, 1, 1, 2], [0], [0]>} : vector<2x8x16xbf16>, vector<2x16x8xbf16>, vector<2x8x8xf32> -> vector<2x8x8xf32>
    "tpu.trace_stop"() : () -> ()
    %76 = vector.shape_cast %75 : vector<2x8x8xf32> to vector<16x8xf32>
    %c0_29 = arith.constant 0 : index
    %c16 = arith.constant 16 : index
    %77 = vector.load %arg12[%c0_29, %c16] : memref<16x32xf32, #tpu.memory_space<vmem>>, vector<16x8xf32>
    tpu.vector_store %arg12[%c0_29, %c16], %76 {strides = array<i32>} : memref<16x32xf32, #tpu.memory_space<vmem>>, vector<16x8xf32>,
    %78 = vector.extract_strided_slice %17 {offsets = [0, 0, 24], sizes = [2, 8, 8], strides = [1, 1, 1]} : vector<2x8x32xbf16> to vector<2x8x8xbf16>
    %79 = vector.extract_strided_slice %20 {offsets = [0, 0, 24], sizes = [2, 16, 8], strides = [1, 1, 1]} : vector<2x16x32xbf16> to vector<2x16x8xbf16>
    %80 = vector.extract_strided_slice %23 {offsets = [0, 0, 24], sizes = [2, 16, 8], strides = [1, 1, 1]} : vector<2x16x32xbf16> to vector<2x16x8xbf16>
    "tpu.trace_start"() <{level = 10 : i32, message = "bqd,bkd->bqk"}> : () -> ()
    %cst_30 = arith.constant dense<0.000000e+00> : vector<2x8x16xf32>
    %81 = tpu.matmul %78, %79, %cst_30 {dimension_numbers = #tpu.dot_dimension_numbers<[2], [2], [1], [1], [0, 0, 0, 1, 1, 1], [0], [0]>} : vector<2x8x8xbf16>, vector<2x16x8xbf16>, vector<2x8x16xf32> -> vector<2x8x16xf32>
    "tpu.trace_stop"() : () -> ()
    %cst_31 = arith.constant dense<0xFF800000> : vector<2x8xf32>
    %82 = vector.multi_reduction <maximumf>, %81, %cst_31 [2] : vector<2x8x16xf32> to vector<2x8xf32>
    %83 = vector.shape_cast %82 : vector<2x8xf32> to vector<2x8x1xf32>
    %84 = vector.broadcast %83 : vector<2x8x1xf32> to vector<2x8x16xf32>
    %85 = arith.subf %81, %84 : vector<2x8x16xf32>
    %86 = math.exp %85 : vector<2x8x16xf32>
    %cst_32 = arith.constant dense<0.000000e+00> : vector<2x8xf32>
    %87 = vector.multi_reduction <add>, %86, %cst_32 [2] : vector<2x8x16xf32> to vector<2x8xf32>
    %88 = vector.shape_cast %87 : vector<2x8xf32> to vector<2x8x1xf32>
    %89 = tpu.reciprocal %88 {approx = true} : vector<2x8x1xf32> -> vector<2x8x1xf32>
    %90 = vector.broadcast %89 : vector<2x8x1xf32> to vector<2x8x16xf32>
    %91 = arith.mulf %86, %90 : vector<2x8x16xf32>
    %92 = arith.truncf %91 : vector<2x8x16xf32> to vector<2x8x16xbf16>
    "tpu.trace_start"() <{level = 10 : i32, message = "bqk,bkd->bqd"}> : () -> ()
    %cst_33 = arith.constant dense<0.000000e+00> : vector<2x8x8xf32>
    %93 = tpu.matmul %92, %80, %cst_33 {dimension_numbers = #tpu.dot_dimension_numbers<[2], [1], [1], [2], [0, 0, 0, 1, 1, 2], [0], [0]>} : vector<2x8x16xbf16>, vector<2x16x8xbf16>, vector<2x8x8xf32> -> vector<2x8x8xf32>
    "tpu.trace_stop"() : () -> ()
    %94 = vector.shape_cast %93 : vector<2x8x8xf32> to vector<16x8xf32>
    %c0_34 = arith.constant 0 : index
    %c24 = arith.constant 24 : index
    %95 = vector.load %arg12[%c0_34, %c24] : memref<16x32xf32, #tpu.memory_space<vmem>>, vector<16x8xf32>
    tpu.vector_store %arg12[%c0_34, %c24], %94 {strides = array<i32>} : memref<16x32xf32, #tpu.memory_space<vmem>>, vector<16x8xf32>,
    %c0_35 = arith.constant 0 : index
    %c0_36 = arith.constant 0 : index
    %96 = vector.load %arg12[%c0_35, %c0_36] : memref<16x32xf32, #tpu.memory_space<vmem>>, vector<16x32xf32>
    %97 = arith.truncf %96 : vector<16x32xf32> to vector<16x32xbf16>
    %c0_37 = arith.constant 0 : index
    %c0_38 = arith.constant 0 : index
    %98 = vector.load %arg7[%c0_37, %c0_38] : memref<32x32xbf16, #tpu.memory_space<vmem>>, vector<32x32xbf16>
    %cst_39 = arith.constant dense<0.000000e+00> : vector<16x32xf32>
    %99 = tpu.matmul %97, %98, %cst_39 {dimension_numbers = #tpu.dot_dimension_numbers<[1], [0], [0], [1], [0, 0, 1, 1], [], []>} : vector<16x32xbf16>, vector<32x32xbf16>, vector<16x32xf32> -> vector<16x32xf32>
    %100 = arith.addf %2, %99 : vector<16x32xf32>
    %c0_40 = arith.constant 0 : index
    %c0_41 = arith.constant 0 : index
    %101 = vector.load %arg8[%c0_40, %c0_41] : memref<1x32xf32, #tpu.memory_space<vmem>>, vector<1x32xf32>
    %102 = vector.broadcast %101 : vector<1x32xf32> to vector<16x32xf32>
    %103 = arith.addf %100, %102 : vector<16x32xf32>
    %cst_42 = arith.constant dense<0.000000e+00> : vector<16xf32>
    %104 = vector.multi_reduction <add>, %103, %cst_42 [1] : vector<16x32xf32> to vector<16xf32>
    %105 = vector.shape_cast %104 : vector<16xf32> to vector<16x1xf32>
    %cst_43 = arith.constant 3.200000e+01 : f32
    %106 = vector.broadcast %cst_43 : f32 to vector<16x1xf32>
    %107 = arith.divf %105, %106 : vector<16x1xf32>
    %108 = vector.broadcast %107 : vector<16x1xf32> to vector<16x32xf32>
    %109 = arith.subf %103, %108 : vector<16x32xf32>
    %110 = arith.mulf %109, %109 : vector<16x32xf32>
    %cst_44 = arith.constant dense<0.000000e+00> : vector<16xf32>
    %111 = vector.multi_reduction <add>, %110, %cst_44 [1] : vector<16x32xf32> to vector<16xf32>
    %112 = vector.shape_cast %111 : vector<16xf32> to vector<16x1xf32>
    %cst_45 = arith.constant 3.200000e+01 : f32
    %113 = vector.broadcast %cst_45 : f32 to vector<16x1xf32>
    %114 = arith.divf %112, %113 : vector<16x1xf32>
    %115 = vector.broadcast %107 : vector<16x1xf32> to vector<16x32xf32>
    %116 = arith.subf %103, %115 : vector<16x32xf32>
    %cst_46 = arith.constant 9.99999974E-6 : f32
    %117 = vector.broadcast %cst_46 : f32 to vector<16x1xf32>
    %118 = arith.addf %114, %117 : vector<16x1xf32>
    %119 = math.rsqrt %118 : vector<16x1xf32>
    %120 = vector.broadcast %119 : vector<16x1xf32> to vector<16x32xf32>
    %121 = arith.mulf %116, %120 : vector<16x32xf32>
    %c0_47 = arith.constant 0 : index
    %c0_48 = arith.constant 0 : index
    %122 = vector.load %arg9[%c0_47, %c0_48] : memref<1x32xf32, #tpu.memory_space<vmem>>, vector<1x32xf32>
    %123 = vector.broadcast %122 : vector<1x32xf32> to vector<16x32xf32>
    %124 = arith.mulf %121, %123 : vector<16x32xf32>
    %c0_49 = arith.constant 0 : index
    %c0_50 = arith.constant 0 : index
    %125 = vector.load %arg10[%c0_49, %c0_50] : memref<1x32xf32, #tpu.memory_space<vmem>>, vector<1x32xf32>
    %126 = vector.broadcast %125 : vector<1x32xf32> to vector<16x32xf32>
    %127 = arith.addf %124, %126 : vector<16x32xf32>
    %128 = vector.shape_cast %127 : vector<16x32xf32> to vector<2x8x32xf32>
    %c0_51 = arith.constant 0 : index
    %c0_52 = arith.constant 0 : index
    %c0_53 = arith.constant 0 : index
    %129 = vector.load %arg11[%c0_51, %c0_52, %c0_53] : memref<2x8x32xf32, #tpu.memory_space<vmem>>, vector<2x8x32xf32>
    tpu.vector_store %arg11[%c0_51, %c0_52, %c0_53], %128 {strides = array<i32>} : memref<2x8x32xf32, #tpu.memory_space<vmem>>, vector<2x8x32xf32>,
    return
  }
  func.func @transform_0(%arg0: i32) -> (i32, i32, i32) {
    %c0_i32 = arith.constant 0 : i32
    %c0_i32_0 = arith.constant 0 : i32
    %c0_i32_1 = arith.constant 0 : i32
    return %arg0, %c0_i32, %c0_i32_0 : i32, i32, i32
  }
  func.func @transform_1(%arg0: i32) -> (i32, i32, i32) {
    %c0_i32 = arith.constant 0 : i32
    %c0_i32_0 = arith.constant 0 : i32
    %c0_i32_1 = arith.constant 0 : i32
    return %arg0, %c0_i32, %c0_i32_0 : i32, i32, i32
  }
  func.func @transform_2(%arg0: i32) -> (i32, i32) {
    %c0_i32 = arith.constant 0 : i32
    %c0_i32_0 = arith.constant 0 : i32
    %c0_i32_1 = arith.constant 0 : i32
    return %c0_i32, %c0_i32_0 : i32, i32
  }
  func.func @transform_3(%arg0: i32) -> (i32, i32) {
    %c0_i32 = arith.constant 0 : i32
    %c0_i32_0 = arith.constant 0 : i32
    %c0_i32_1 = arith.constant 0 : i32
    return %c0_i32, %c0_i32_0 : i32, i32
  }
  func.func @transform_4(%arg0: i32) -> (i32, i32) {
    %c0_i32 = arith.constant 0 : i32
    %c0_i32_0 = arith.constant 0 : i32
    %c0_i32_1 = arith.constant 0 : i32
    return %c0_i32, %c0_i32_0 : i32, i32
  }
  func.func @transform_5(%arg0: i32) -> (i32, i32) {
    %c0_i32 = arith.constant 0 : i32
    %c0_i32_0 = arith.constant 0 : i32
    %c0_i32_1 = arith.constant 0 : i32
    return %c0_i32, %c0_i32_0 : i32, i32
  }
  func.func @transform_6(%arg0: i32) -> (i32, i32) {
    %c0_i32 = arith.constant 0 : i32
    %c0_i32_0 = arith.constant 0 : i32
    %c0_i32_1 = arith.constant 0 : i32
    return %c0_i32, %c0_i32_0 : i32, i32
  }
  func.func @transform_7(%arg0: i32) -> (i32, i32) {
    %c0_i32 = arith.constant 0 : i32
    %c0_i32_0 = arith.constant 0 : i32
    %c0_i32_1 = arith.constant 0 : i32
    return %c0_i32, %c0_i32_0 : i32, i32
  }
  func.func @transform_8(%arg0: i32) -> (i32, i32) {
    %c0_i32 = arith.constant 0 : i32
    %c0_i32_0 = arith.constant 0 : i32
    %c0_i32_1 = arith.constant 0 : i32
    return %c0_i32, %c0_i32_0 : i32, i32
  }
  func.func @transform_9(%arg0: i32) -> (i32, i32) {
    %c0_i32 = arith.constant 0 : i32
    %c0_i32_0 = arith.constant 0 : i32
    %c0_i32_1 = arith.constant 0 : i32
    return %c0_i32, %c0_i32_0 : i32, i32
  }
  func.func @transform_10(%arg0: i32) -> (i32, i32, i32) {
    %c0_i32 = arith.constant 0 : i32
    %c0_i32_0 = arith.constant 0 : i32
    %c0_i32_1 = arith.constant 0 : i32
    return %arg0, %c0_i32, %c0_i32_0 : i32, i32, i32
  }
}

</mosaic_0001>

<llo_original>
// kernel: tpu_custom_call.1
$region0: #{tpu_custom_call.1}
  #allocation0 [shape = 'u32[]', space=smem, size = 0x4, offset = 0x4, fixed_abs, tag = 'smem constant byte address 0x4 - core index']
  #allocation1 [shape = 'u32[144,128]{1,0:T(1,128)}', space=vmem, size = 0x12000, scoped, tag = 'internal scratch']
  #allocation2 [shape = 'f32[16,32]{1,0:T(8,128)}', space=vmem, size = 0x2000, scoped, tag = 'scratch operand']
  %s0 = inlined_call_operand.hbm [shape: f32[2,16,32], index: 0, kind: input, shape index: {}]
  %s1 = inlined_call_operand.hbm [shape: f32[2,8,32], index: 1, kind: input, shape index: {}]
  %s2 = inlined_call_operand.hbm [shape: bf16[32,32], index: 2, kind: input, shape index: {}]
  %s3 = inlined_call_operand.vmem [shape: f32[1,32], index: 3, kind: input, shape index: {}]
  %s4 = inlined_call_operand.hbm [shape: bf16[32,64], index: 4, kind: input, shape index: {}]
  %s5 = inlined_call_operand.vmem [shape: f32[1,64], index: 5, kind: input, shape index: {}]
  %s6 = inlined_call_operand.hbm [shape: bf16[32,32], index: 6, kind: input, shape index: {}]
  %s7 = inlined_call_operand.vmem [shape: f32[1,32], index: 7, kind: input, shape index: {}]
  %s8 = inlined_call_operand.vmem [shape: f32[1,32], index: 8, kind: input, shape index: {}]
  %s9 = inlined_call_operand.vmem [shape: f32[1,32], index: 9, kind: input, shape index: {}]
  %s10 = inlined_call_operand.hbm [shape: f32[2,8,32], index: 10, kind: output, shape index: {}]
  %s11 = sld [smem:[#allocation0]]
  $region70: #{tpu_custom_call.1} parent=0
    _
  %s13 = ssub.s32 1, %s11
  %s14 = scalar_select 0, %s13, %s11
  $region1: #{tpu_custom_call.1} parent=0
    #allocation3 [shape = 'u8[16384]{0}', space=vmem, size = 0x4000, scoped, tag = 'input window, operand 0, single buffered']
    #allocation4 [shape = 's32[1]{0}', space=sflag, size = 0x4, scoped, tag = 'scoped memory for tpu_custom_call.1']
    #allocation5 [shape = 's32[1]{0}', space=sflag, size = 0x4, scoped, tag = 'scoped memory for tpu_custom_call.1']
    #allocation6 [shape = 'u8[8192]{0}', space=vmem, size = 0x2000, scoped, tag = 'input window, operand 1, single buffered']
    #allocation7 [shape = 's32[1]{0}', space=sflag, size = 0x4, scoped, tag = 'scoped memory for tpu_custom_call.1']
    #allocation8 [shape = 'u8[8192]{0}', space=vmem, size = 0x2000, scoped, tag = 'input window, operand 2, single buffered']
    #allocation9 [shape = 'u8[8192]{0}', space=vmem, size = 0x2000, scoped, tag = 'input window, operand 4, single buffered']
    #allocation10 [shape = 's32[1]{0}', space=sflag, size = 0x4, scoped, tag = 'scoped memory for tpu_custom_call.1']
    #allocation11 [shape = 'u8[8192]{0}', space=vmem, size = 0x2000, scoped, tag = 'input window, operand 6, single buffered']
    #allocation12 [shape = 'u8[8192]{0}', space=vmem, size = 0x2000, scoped, tag = 'output window, operand 0, single buffered']
    %15 = vsyncpa [#allocation4], 0
    %16 = vsyncpa [#allocation7], 0
    %17 = vsyncpa [#allocation10], 0
    %18 = vsyncpa [#allocation5], 0
    // Predicated region
    $region2: #{tpu_custom_call.1} parent=1 // pred_check
      _
    $region3: #{tpu_custom_call.1} parent=1 // pred_check_branch
      %20 = sbr.rel (0) target = $region5
    $region4: #{tpu_custom_call.1} parent=1 // pred_region
      %s22 = ssub.s32 512, 512
      %23 = vsyncadd [#allocation4], %s22
      %s24 = sshll.u32 [#allocation3], 4
      %s25 = int_to_ptr.vmem [resolvable:$true] %s24
      %30 = dma.hbm_to_vmem [thread:$0]  %s0, 512, %s25, [#allocation4], 128, 128, 8
    $region5: #{tpu_custom_call.1} parent=1 // pred_fallthru
      _
    // Predicated region
    $region6: #{tpu_custom_call.1} parent=1 // pred_check
      _
    $region7: #{tpu_custom_call.1} parent=1 // pred_check_branch
      %32 = sbr.rel (0) target = $region9
    $region8: #{tpu_custom_call.1} parent=1 // pred_region
      %s34 = ssub.s32 256, 256
      %35 = vsyncadd [#allocation7], %s34
      %s36 = sshll.u32 [#allocation6], 4
      %s37 = int_to_ptr.vmem [resolvable:$true] %s36
      %42 = dma.hbm_to_vmem [thread:$0]  %s1, 256, %s37, [#allocation7], 128, 128, 8
    $region9: #{tpu_custom_call.1} parent=1 // pred_fallthru
      _
    // Predicated region
    $region10: #{tpu_custom_call.1} parent=1 // pred_check
      _
    $region11: #{tpu_custom_call.1} parent=1 // pred_check_branch
      %44 = sbr.rel (0) target = $region13
    $region12: #{tpu_custom_call.1} parent=1 // pred_region
      %s46 = ssub.s32 256, 256
      %47 = vsyncadd [#allocation7], %s46
      %s48 = sshll.u32 [#allocation8], 4
      %s49 = int_to_ptr.vmem [resolvable:$true] %s48
      %54 = dma.hbm_to_vmem [thread:$0]  %s2, 256, %s49, [#allocation7], 64, 64, 4
    $region13: #{tpu_custom_call.1} parent=1 // pred_fallthru
      _
    // Predicated region
    $region14: #{tpu_custom_call.1} parent=1 // pred_check
      _
    $region15: #{tpu_custom_call.1} parent=1 // pred_check_branch
      %56 = sbr.rel (0) target = $region17
    $region16: #{tpu_custom_call.1} parent=1 // pred_region
      _
    $region17: #{tpu_custom_call.1} parent=1 // pred_fallthru
      _
    // Predicated region
    $region18: #{tpu_custom_call.1} parent=1 // pred_check
      _
    $region19: #{tpu_custom_call.1} parent=1 // pred_check_branch
      %58 = sbr.rel (0) target = $region21
    $region20: #{tpu_custom_call.1} parent=1 // pred_region
      %s60 = ssub.s32 256, 256
      %61 = vsyncadd [#allocation10], %s60
      %s62 = sshll.u32 [#allocation9], 4
      %s63 = int_to_ptr.vmem [resolvable:$true] %s62
      %68 = dma.hbm_to_vmem [thread:$0]  %s4, 256, %s63, [#allocation10], 64, 64, 4
    $region21: #{tpu_custom_call.1} parent=1 // pred_fallthru
      _
    // Predicated region
    $region22: #{tpu_custom_call.1} parent=1 // pred_check
      _
    $region23: #{tpu_custom_call.1} parent=1 // pred_check_branch
      %70 = sbr.rel (0) target = $region25
    $region24: #{tpu_custom_call.1} parent=1 // pred_region
      _
    $region25: #{tpu_custom_call.1} parent=1 // pred_fallthru
      _
    // Predicated region
    $region26: #{tpu_custom_call.1} parent=1 // pred_check
      _
    $region27: #{tpu_custom_call.1} parent=1 // pred_check_branch
      %72 = sbr.rel (0) target = $region29
    $region28: #{tpu_custom_call.1} parent=1 // pred_region
      %s74 = ssub.s32 256, 256
      %75 = vsyncadd [#allocation10], %s74
      %s76 = sshll.u32 [#allocation11], 4
      %s77 = int_to_ptr.vmem [resolvable:$true] %s76
      %82 = dma.hbm_to_vmem [thread:$0]  %s6, 256, %s77, [#allocation10], 64, 64, 4
    $region29: #{tpu_custom_call.1} parent=1 // pred_fallthru
      _
    // Predicated region
    $region30: #{tpu_custom_call.1} parent=1 // pred_check
      _
    $region31: #{tpu_custom_call.1} parent=1 // pred_check_branch
      %84 = sbr.rel (0) target = $region33
    $region32: #{tpu_custom_call.1} parent=1 // pred_region
      _
    $region33: #{tpu_custom_call.1} parent=1 // pred_fallthru
      _
    // Predicated region
    $region34: #{tpu_custom_call.1} parent=1 // pred_check
      _
    $region35: #{tpu_custom_call.1} parent=1 // pred_check_branch
      %86 = sbr.rel (0) target = $region37
    $region36: #{tpu_custom_call.1} parent=1 // pred_region
      _
    $region37: #{tpu_custom_call.1} parent=1 // pred_fallthru
      _
    // Predicated region
    $region38: #{tpu_custom_call.1} parent=1 // pred_check
      _
    $region39: #{tpu_custom_call.1} parent=1 // pred_check_branch
      %88 = sbr.rel (0) target = $region41
    $region40: #{tpu_custom_call.1} parent=1 // pred_region
      _
    $region41: #{tpu_custom_call.1} parent=1 // pred_fallthru
      _
    // Predicated region
    $region42: #{tpu_custom_call.1} parent=1 // pred_check
      _
    $region43: #{tpu_custom_call.1} parent=1 // pred_check_branch
      %90 = sbr.rel (0) target = $region45
    $region44: #{tpu_custom_call.1} parent=1 // pred_region
      %91 = dma.done [#allocation4], 512
    $region45: #{tpu_custom_call.1} parent=1 // pred_fallthru
      _
    // Predicated region
    $region46: #{tpu_custom_call.1} parent=1 // pred_check
      _
    $region47: #{tpu_custom_call.1} parent=1 // pred_check_branch
      %93 = sbr.rel (0) target = $region49
    $region48: #{tpu_custom_call.1} parent=1 // pred_region
      %94 = dma.done [#allocation7], 256
    $region49: #{tpu_custom_call.1} parent=1 // pred_fallthru
      _
    // Predicated region
    $region50: #{tpu_custom_call.1} parent=1 // pred_check
      _
    $region51: #{tpu_custom_call.1} parent=1 // pred_check_branch
      %96 = sbr.rel (0) target = $region53
    $region52: #{tpu_custom_call.1} parent=1 // pred_region
      %97 = dma.done [#allocation7], 256
    $region53: #{tpu_custom_call.1} parent=1 // pred_fallthru
      _
    // Predicated region
    $region54: #{tpu_custom_call.1} parent=1 // pred_check
      _
    $region55: #{tpu_custom_call.1} parent=1 // pred_check_branch
      %99 = sbr.rel (0) target = $region57
    $region56: #{tpu_custom_call.1} parent=1 // pred_region
      %100 = dma.done [#allocation10], 256
    $region57: #{tpu_custom_call.1} parent=1 // pred_fallthru
      _
    // Predicated region
    $region58: #{tpu_custom_call.1} parent=1 // pred_check
      _
    $region59: #{tpu_custom_call.1} parent=1 // pred_check_branch
      %102 = sbr.rel (0) target = $region61
    $region60: #{tpu_custom_call.1} parent=1 // pred_region
      %103 = dma.done [#allocation10], 256
    $region61: #{tpu_custom_call.1} parent=1 // pred_fallthru
      _
    %v105 = vld [vmem:[#allocation6] sm:$0xff]
    %v106 = vld [vmem:[#allocation6 + $0x8] sm:$0xff]
    %v107 = vld [vmem:[#allocation3] sm:$0xff]
    %v108 = vld [vmem:[#allocation3 + $0x8] sm:$0xff]
    %v109 = vld [vmem:[#allocation3 + $0x10] sm:$0xff]
    %v110 = vld [vmem:[#allocation3 + $0x18] sm:$0xff]
    %v111 = vpack.c.bf16 %v106, %v105
    %v112 = vld [vmem:[#allocation8] sm:$0xf]
    %v113 = vld [vmem:[#allocation8 + $0x4] sm:$0xf]
    %v114 = vld [vmem:[#allocation8 + $0x8] sm:$0xf]
    %v115 = vld [vmem:[#allocation8 + $0xc] sm:$0xf]
    %v116 = vld [vmem:[%s3] sm:$0x1]
    %v118 = vlaneseq
    %v119 = vshrl.u32 %v118, 7
    %v120 = vsub.s32 0, %v119
    %v121 = vrot.slane %v116, %v120
    %v127 = vunpack.c.l.b16 %v112
    %v128 = vunpack.c.l.b16 %v113
    %v129 = vunpack.c.l.b16 %v114
    %v130 = vunpack.c.l.b16 %v115
    %v131 = vpack.c.b16 %v128, %v127
    %v132 = vpack.c.b16 %v130, %v129
    %vm135 = vcmask 261120
    %v137 = vsel %vm135, %v111, 0
    %139 = vmatprep.subr.bf16.mxu0 0
    %140 = vmatpush1.bf16.msra.mxu0 0
    %141 = vmatprep.subr.bf16.mxu0 0
    %142 = vmatpush1.bf16.msra.mxu0 0
    %143 = vmatprep.subr.bf16.mxu0 0
    %144 = vmatpush1.bf16.msra.mxu0 0
    %145 = vmatprep.subr.bf16.mxu0 0
    %146 = vmatpush1.bf16.msra.mxu0 0
    %147 = vmatprep.subr.bf16.mxu0 0
    %148 = vmatpush1.bf16.msra.mxu0 0
    %149 = vmatprep.subr.bf16.mxu0 0
    %150 = vmatpush1.bf16.msra.mxu0 0
    %151 = vmatprep.subr.bf16.mxu0 0
    %152 = vmatpush1.bf16.msra.mxu0 %v132
    %153 = vmatprep.subr.bf16.mxu0 0
    %154 = vmatpush1.bf16.msra.mxu0 %v131
    %155 = vmatprep.subr.bf16.mxu0 0
    %156 = vmatpush2.bf16.msra.mxu0 0
    %157 = vmatprep.subr.bf16.mxu0 0
    %158 = vmatpush2.bf16.msra.mxu0 0
    %159 = vmatprep.subr.bf16.mxu0 0
    %160 = vmatpush2.bf16.msra.mxu0 0
    %161 = vmatprep.subr.bf16.mxu0 0
    %162 = vmatpush2.bf16.msra.mxu0 0
    %163 = vmatprep.subr.bf16.mxu0 0
    %164 = vmatpush2.bf16.msra.mxu0 0
    %165 = vmatprep.subr.bf16.mxu0 0
    %166 = vmatpush2.bf16.msra.mxu0 0
    %167 = vmatprep.subr.bf16.mxu0 0
    %168 = vmatpush2.bf16.msra.mxu0 0
    %169 = vmatprep.subr.bf16.mxu0 0
    %170 = vmatpush2.bf16.msra.mxu0 0
    %171 = vmatprep.mubr.bf16.mxu0 0
    %172 = vmatmul.mubr.bf16.gmra.mxu0 %v137
    %v173 = vpop.f32.mrf.mxu0
    %v174 = vadd.f32 %v121, %v173
    %v175 = vpop.f32.mrf.mxu0
    %v176 = vpop.f32.mrf.mxu0
    %v177 = vadd.f32 %v121, %v176
    %v178 = vpop.f32.mrf.mxu0
    %179 = vdwg.mxu0
    %v180 = vpack.c.bf16 %v108, %v107
    %v181 = vpack.c.bf16 %v110, %v109
    %v182 = vld [vmem:[#allocation9] sm:$0xf]
    %v183 = vld [vmem:[#allocation9 + $0x4] sm:$0xf]
    %v184 = vld [vmem:[#allocation9 + $0x8] sm:$0xf]
    %v185 = vld [vmem:[#allocation9 + $0xc] sm:$0xf]
    %v186 = vld [vmem:[%s5] sm:$0x1]
    %v188 = vlaneseq
    %v189 = vshrl.u32 %v188, 7
    %v190 = vsub.s32 0, %v189
    %v191 = vrot.slane %v186, %v190
    %v197 = vunpack.c.l.b16 %v182
    %v198 = vunpack.c.l.b16 %v183
    %v199 = vunpack.c.l.b16 %v184
    %v200 = vunpack.c.l.b16 %v185
    %v201 = vpack.c.b16 %v198, %v197
    %v202 = vpack.c.b16 %v200, %v199
    %v206 = vsel %vm135, %v180, 0
    %v209 = vsel %vm135, %v181, 0
    %211 = vmatprep.subr.bf16.mxu0 0
    %212 = vmatpush1.bf16.msra.mxu0 0
    %213 = vmatprep.subr.bf16.mxu0 0
    %214 = vmatpush1.bf16.msra.mxu0 0
    %215 = vmatprep.subr.bf16.mxu0 0
    %216 = vmatpush1.bf16.msra.mxu0 0
    %217 = vmatprep.subr.bf16.mxu0 0
    %218 = vmatpush1.bf16.msra.mxu0 0
    %219 = vmatprep.subr.bf16.mxu0 0
    %220 = vmatpush1.bf16.msra.mxu0 0
    %221 = vmatprep.subr.bf16.mxu0 0
    %222 = vmatpush1.bf16.msra.mxu0 0
    %223 = vmatprep.subr.bf16.mxu0 0
    %224 = vmatpush1.bf16.msra.mxu0 %v202
    %225 = vmatprep.subr.bf16.mxu0 0
    %226 = vmatpush1.bf16.msra.mxu0 %v201
    %227 = vmatprep.subr.bf16.mxu0 0
    %228 = vmatpush2.bf16.msra.mxu0 0
    %229 = vmatprep.subr.bf16.mxu0 0
    %230 = vmatpush2.bf16.msra.mxu0 0
    %231 = vmatprep.subr.bf16.mxu0 0
    %232 = vmatpush2.bf16.msra.mxu0 0
    %233 = vmatprep.subr.bf16.mxu0 0
    %234 = vmatpush2.bf16.msra.mxu0 0
    %235 = vmatprep.subr.bf16.mxu0 0
    %236 = vmatpush2.bf16.msra.mxu0 0
    %237 = vmatprep.subr.bf16.mxu0 0
    %238 = vmatpush2.bf16.msra.mxu0 0
    %239 = vmatprep.subr.bf16.mxu0 0
    %240 = vmatpush2.bf16.msra.mxu0 0
    %241 = vmatprep.subr.bf16.mxu0 0
    %242 = vmatpush2.bf16.msra.mxu0 0
    %243 = vmatprep.mubr.bf16.mxu0 0
    %244 = vmatmul.mubr.bf16.gmra.mxu0 %v206
    %v245 = vpop.f32.mrf.mxu0
    %v246 = vadd.f32 %v191, %v245
    %v247 = vpop.f32.mrf.mxu0
    %v248 = vpop.f32.mrf.mxu0
    %v249 = vadd.f32 %v191, %v248
    %v250 = vpop.f32.mrf.mxu0
    %251 = vmatprep.mubr.bf16.mxu0 0
    %252 = vmatmul.mubr.bf16.gmra.mxu0 %v209
    %v253 = vpop.f32.mrf.mxu0
    %v254 = vadd.f32 %v191, %v253
    %v255 = vpop.f32.mrf.mxu0
    %v256 = vpop.f32.mrf.mxu0
    %v257 = vadd.f32 %v191, %v256
    %v258 = vpop.f32.mrf.mxu0
    %259 = vdwg.mxu0
    %v260 = vpack.c.bf16 %v174, %v174
    %v261 = vpack.c.bf16 %v177, %v177
    %v262 = vpack.c.bf16 %v249, %v246
    %v263 = vpack.c.bf16 %v257, %v254
    %vm264 = vcmask 64512
    %v266 = vsel %vm264, %v260, 0
    %v269 = vsel %vm264, %v262, 0
    %271 = vmatprep.subr.bf16.mxu0 0
    %272 = vmatpush1.bf16.xpose.msra.mxu0 0
    %273 = vmatprep.subr.bf16.mxu0 0
    %274 = vmatpush1.bf16.xpose.msra.mxu0 0
    %275 = vmatprep.subr.bf16.mxu0 0
    %276 = vmatpush1.bf16.xpose.msra.mxu0 0
    %277 = vmatprep.subr.bf16.mxu0 0
    %278 = vmatpush1.bf16.xpose.msra.mxu0 0
    %279 = vmatprep.subr.bf16.mxu0 0
    %280 = vmatpush1.bf16.xpose.msra.mxu0 0
    %281 = vmatprep.subr.bf16.mxu0 0
    %282 = vmatpush1.bf16.xpose.msra.mxu0 0
    %283 = vmatprep.subr.bf16.mxu0 0
    %284 = vmatpush1.bf16.xpose.msra.mxu0 0
    %285 = vmatprep.subr.bf16.mxu0 0
    %286 = vmatpush1.bf16.xpose.msra.mxu0 %v269
    %287 = vmatprep.subr.bf16.mxu0 0
    %288 = vmatpush2.bf16.xpose.msra.mxu0 0
    %289 = vmatprep.subr.bf16.mxu0 0
    %290 = vmatpush2.bf16.xpose.msra.mxu0 0
    %291 = vmatprep.subr.bf16.mxu0 0
    %292 = vmatpush2.bf16.xpose.msra.mxu0 0
    %293 = vmatprep.subr.bf16.mxu0 0
    %294 = vmatpush2.bf16.xpose.msra.mxu0 0
    %295 = vmatprep.subr.bf16.mxu0 0
    %296 = vmatpush2.bf16.xpose.msra.mxu0 0
    %297 = vmatprep.subr.bf16.mxu0 0
    %298 = vmatpush2.bf16.xpose.msra.mxu0 0
    %299 = vmatprep.subr.bf16.mxu0 0
    %300 = vmatpush2.bf16.xpose.msra.mxu0 0
    %301 = vmatprep.subr.bf16.mxu0 0
    %302 = vmatpush2.bf16.xpose.msra.mxu0 0
    %303 = vmatprep.mubr.bf16.mxu0 0
    %304 = vmatmul.mubr.bf16.gmra.mxu0 %v266
    %v305 = vpop.f32.mrf.mxu0
    %v306 = vadd.f32 0.0, %v305
    %v307 = vpop.f32.mrf.mxu0
    %v308 = vpop.f32.mrf.mxu0
    %v309 = vpop.f32.mrf.mxu0
    %310 = vdwg.mxu0
    %v312 = vsel %vm264, %v261, 0
    %v315 = vsel %vm264, %v263, 0
    %317 = vmatprep.subr.bf16.mxu0 0
    %318 = vmatpush1.bf16.xpose.msra.mxu0 0
    %319 = vmatprep.subr.bf16.mxu0 0
    %320 = vmatpush1.bf16.xpose.msra.mxu0 0
    %321 = vmatprep.subr.bf16.mxu0 0
    %322 = vmatpush1.bf16.xpose.msra.mxu0 0
    %323 = vmatprep.subr.bf16.mxu0 0
    %324 = vmatpush1.bf16.xpose.msra.mxu0 0
    %325 = vmatprep.subr.bf16.mxu0 0
    %326 = vmatpush1.bf16.xpose.msra.mxu0 0
    %327 = vmatprep.subr.bf16.mxu0 0
    %328 = vmatpush1.bf16.xpose.msra.mxu0 0
    %329 = vmatprep.subr.bf16.mxu0 0
    %330 = vmatpush1.bf16.xpose.msra.mxu0 0
    %331 = vmatprep.subr.bf16.mxu0 0
    %332 = vmatpush1.bf16.xpose.msra.mxu0 %v315
    %333 = vmatprep.subr.bf16.mxu0 0
    %334 = vmatpush2.bf16.xpose.msra.mxu0 0
    %335 = vmatprep.subr.bf16.mxu0 0
    %336 = vmatpush2.bf16.xpose.msra.mxu0 0
    %337 = vmatprep.subr.bf16.mxu0 0
    %338 = vmatpush2.bf16.xpose.msra.mxu0 0
    %339 = vmatprep.subr.bf16.mxu0 0
    %340 = vmatpush2.bf16.xpose.msra.mxu0 0
    %341 = vmatprep.subr.bf16.mxu0 0
    %342 = vmatpush2.bf16.xpose.msra.mxu0 0
    %343 = vmatprep.subr.bf16.mxu0 0
    %344 = vmatpush2.bf16.xpose.msra.mxu0 0
    %345 = vmatprep.subr.bf16.mxu0 0
    %346 = vmatpush2.bf16.xpose.msra.mxu0 0
    %347 = vmatprep.subr.bf16.mxu0 0
    %348 = vmatpush2.bf16.xpose.msra.mxu0 0
    %349 = vmatprep.mubr.bf16.mxu0 0
    %350 = vmatmul.mubr.bf16.gmra.mxu0 %v312
    %v351 = vpop.f32.mrf.mxu0
    %v352 = vadd.f32 0.0, %v351
    %v353 = vpop.f32.mrf.mxu0
    %v354 = vpop.f32.mrf.mxu0
    %v355 = vpop.f32.mrf.mxu0
    %356 = vdwg.mxu0
    %vm357 = vcmask 130048
    %v358 = vsel %vm357, %v306, -inf
    %359 = vmax.xlane.f32.xlu0 %v358
    %v360 = vpop.xlane.xlu0 %359
    %v361 = vsel %vm357, %v352, -inf
    %362 = vmax.xlane.f32.xlu0 %v361
    %v363 = vpop.xlane.xlu0 %362
    %v364 = vsub.f32 %v306, %v360
    %v365 = vsub.f32 %v352, %v363
    %v366 = vmul.f32 %v364, 1.442695
    %v367 = vpow.pop %v366
    %v368 = vmul.f32 %v365, 1.442695
    %v369 = vpow.pop %v368
    %v370 = vsel %vm357, %v367, 0.0
    %371 = vadd.xlane.f32.xlu0 %v370
    %v372 = vpop.xlane.xlu0 %371
    %v373 = vsel %vm357, %v369, 0.0
    %374 = vadd.xlane.f32.xlu0 %v373
    %v375 = vpop.xlane.xlu0 %374
    %v376 = vrcp.pop %v372
    %v377 = vrcp.pop %v375
    %v378 = vmul.f32 %v367, %v376
    %v379 = vmul.f32 %v369, %v377
    %v380 = vpack.c.bf16 %v378, %v378
    %v381 = vpack.c.bf16 %v379, %v379
    %383 = vrot.lane.b32.xlu0 %v262, 96
    %v384 = vpop.permute.xlu0 %383
    %v387 = vsel %vm357, %v380, 0
    %389 = vmatprep.subr.bf16.mxu0 0
    %390 = vmatpush1.bf16.msra.mxu0 0
    %391 = vmatprep.subr.bf16.mxu0 0
    %392 = vmatpush1.bf16.msra.mxu0 0
    %393 = vmatprep.subr.bf16.mxu0 0
    %394 = vmatpush1.bf16.msra.mxu0 0
    %395 = vmatprep.subr.bf16.mxu0 0
    %396 = vmatpush1.bf16.msra.mxu0 0
    %397 = vmatprep.subr.bf16.mxu0 0
    %398 = vmatpush1.bf16.msra.mxu0 0
    %399 = vmatprep.subr.bf16.mxu0 0
    %400 = vmatpush1.bf16.msra.mxu0 0
    %401 = vmatprep.subr.bf16.mxu0 0
    %402 = vmatpush1.bf16.msra.mxu0 0
    %403 = vmatprep.subr.bf16.mxu0 0
    %404 = vmatpush1.bf16.msra.mxu0 %v384
    %405 = vmatprep.subr.bf16.mxu0 0
    %406 = vmatpush2.bf16.msra.mxu0 0
    %407 = vmatprep.subr.bf16.mxu0 0
    %408 = vmatpush2.bf16.msra.mxu0 0
    %409 = vmatprep.subr.bf16.mxu0 0
    %410 = vmatpush2.bf16.msra.mxu0 0
    %411 = vmatprep.subr.bf16.mxu0 0
    %412 = vmatpush2.bf16.msra.mxu0 0
    %413 = vmatprep.subr.bf16.mxu0 0
    %414 = vmatpush2.bf16.msra.mxu0 0
    %415 = vmatprep.subr.bf16.mxu0 0
    %416 = vmatpush2.bf16.msra.mxu0 0
    %417 = vmatprep.subr.bf16.mxu0 0
    %418 = vmatpush2.bf16.msra.mxu0 0
    %419 = vmatprep.subr.bf16.mxu0 0
    %420 = vmatpush2.bf16.msra.mxu0 0
    %421 = vmatprep.mubr.bf16.mxu0 0
    %422 = vmatmul.mubr.bf16.gmra.mxu0 %v387
    %v423 = vpop.f32.mrf.mxu0
    %v424 = vadd.f32 0.0, %v423
    %v425 = vpop.f32.mrf.mxu0
    %v426 = vpop.f32.mrf.mxu0
    %v427 = vpop.f32.mrf.mxu0
    %428 = vdwg.mxu0
    %430 = vrot.lane.b32.xlu0 %v263, 96
    %v431 = vpop.permute.xlu0 %430
    %v434 = vsel %vm357, %v381, 0
    %436 = vmatprep.subr.bf16.mxu0 0
    %437 = vmatpush1.bf16.msra.mxu0 0
    %438 = vmatprep.subr.bf16.mxu0 0
    %439 = vmatpush1.bf16.msra.mxu0 0
    %440 = vmatprep.subr.bf16.mxu0 0
    %441 = vmatpush1.bf16.msra.mxu0 0
    %442 = vmatprep.subr.bf16.mxu0 0
    %443 = vmatpush1.bf16.msra.mxu0 0
    %444 = vmatprep.subr.bf16.mxu0 0
    %445 = vmatpush1.bf16.msra.mxu0 0
    %446 = vmatprep.subr.bf16.mxu0 0
    %447 = vmatpush1.bf16.msra.mxu0 0
    %448 = vmatprep.subr.bf16.mxu0 0
    %449 = vmatpush1.bf16.msra.mxu0 0
    %450 = vmatprep.subr.bf16.mxu0 0
    %451 = vmatpush1.bf16.msra.mxu0 %v431
    %452 = vmatprep.subr.bf16.mxu0 0
    %453 = vmatpush2.bf16.msra.mxu0 0
    %454 = vmatprep.subr.bf16.mxu0 0
    %455 = vmatpush2.bf16.msra.mxu0 0
    %456 = vmatprep.subr.bf16.mxu0 0
    %457 = vmatpush2.bf16.msra.mxu0 0
    %458 = vmatprep.subr.bf16.mxu0 0
    %459 = vmatpush2.bf16.msra.mxu0 0
    %460 = vmatprep.subr.bf16.mxu0 0
    %461 = vmatpush2.bf16.msra.mxu0 0
    %462 = vmatprep.subr.bf16.mxu0 0
    %463 = vmatpush2.bf16.msra.mxu0 0
    %464 = vmatprep.subr.bf16.mxu0 0
    %465 = vmatpush2.bf16.msra.mxu0 0
    %466 = vmatprep.subr.bf16.mxu0 0
    %467 = vmatpush2.bf16.msra.mxu0 0
    %468 = vmatprep.mubr.bf16.mxu0 0
    %469 = vmatmul.mubr.bf16.gmra.mxu0 %v434
    %v470 = vpop.f32.mrf.mxu0
    %v471 = vadd.f32 0.0, %v470
    %v472 = vpop.f32.mrf.mxu0
    %v473 = vpop.f32.mrf.mxu0
    %v474 = vpop.f32.mrf.mxu0
    %475 = vdwg.mxu0
    %476 = vst.msk [vmem:[#allocation2] sm:$0xff] %vm264, %v424
    %477 = vst.msk [vmem:[#allocation2 + $0x8] sm:$0xff] %vm264, %v471
    %479 = vrot.lane.b32.xlu0 %v260, 120
    %v480 = vpop.permute.xlu0 %479
    %481 = vrot.lane.b32.xlu0 %v262, 120
    %v482 = vpop.permute.xlu0 %481
    %v484 = vsel %vm264, %v480, 0
    %v487 = vsel %vm264, %v482, 0
    %489 = vmatprep.subr.bf16.mxu0 0
    %490 = vmatpush1.bf16.xpose.msra.mxu0 0
    %491 = vmatprep.subr.bf16.mxu0 0
    %492 = vmatpush1.bf16.xpose.msra.mxu0 0
    %493 = vmatprep.subr.bf16.mxu0 0
    %494 = vmatpush1.bf16.xpose.msra.mxu0 0
    %495 = vmatprep.subr.bf16.mxu0 0
    %496 = vmatpush1.bf16.xpose.msra.mxu0 0
    %497 = vmatprep.subr.bf16.mxu0 0
    %498 = vmatpush1.bf16.xpose.msra.mxu0 0
    %499 = vmatprep.subr.bf16.mxu0 0
    %500 = vmatpush1.bf16.xpose.msra.mxu0 0
    %501 = vmatprep.subr.bf16.mxu0 0
    %502 = vmatpush1.bf16.xpose.msra.mxu0 0
    %503 = vmatprep.subr.bf16.mxu0 0
    %504 = vmatpush1.bf16.xpose.msra.mxu0 %v487
    %505 = vmatprep.subr.bf16.mxu0 0
    %506 = vmatpush2.bf16.xpose.msra.mxu0 0
    %507 = vmatprep.subr.bf16.mxu0 0
    %508 = vmatpush2.bf16.xpose.msra.mxu0 0
    %509 = vmatprep.subr.bf16.mxu0 0
    %510 = vmatpush2.bf16.xpose.msra.mxu0 0
    %511 = vmatprep.subr.bf16.mxu0 0
    %512 = vmatpush2.bf16.xpose.msra.mxu0 0
    %513 = vmatprep.subr.bf16.mxu0 0
    %514 = vmatpush2.bf16.xpose.msra.mxu0 0
    %515 = vmatprep.subr.bf16.mxu0 0
    %516 = vmatpush2.bf16.xpose.msra.mxu0 0
    %517 = vmatprep.subr.bf16.mxu0 0
    %518 = vmatpush2.bf16.xpose.msra.mxu0 0
    %519 = vmatprep.subr.bf16.mxu0 0
    %520 = vmatpush2.bf16.xpose.msra.mxu0 0
    %521 = vmatprep.mubr.bf16.mxu0 0
    %522 = vmatmul.mubr.bf16.gmra.mxu0 %v484
    %v523 = vpop.f32.mrf.mxu0
    %v524 = vadd.f32 0.0, %v523
    %v525 = vpop.f32.mrf.mxu0
    %v526 = vpop.f32.mrf.mxu0
    %v527 = vpop.f32.mrf.mxu0
    %528 = vdwg.mxu0
    %530 = vrot.lane.b32.xlu0 %v261, 120
    %v531 = vpop.permute.xlu0 %530
    %532 = vrot.lane.b32.xlu0 %v263, 120
    %v533 = vpop.permute.xlu0 %532
    %v535 = vsel %vm264, %v531, 0
    %v538 = vsel %vm264, %v533, 0
    %540 = vmatprep.subr.bf16.mxu0 0
    %541 = vmatpush1.bf16.xpose.msra.mxu0 0
    %542 = vmatprep.subr.bf16.mxu0 0
    %543 = vmatpush1.bf16.xpose.msra.mxu0 0
    %544 = vmatprep.subr.bf16.mxu0 0
    %545 = vmatpush1.bf16.xpose.msra.mxu0 0
    %546 = vmatprep.subr.bf16.mxu0 0
    %547 = vmatpush1.bf16.xpose.msra.mxu0 0
    %548 = vmatprep.subr.bf16.mxu0 0
    %549 = vmatpush1.bf16.xpose.msra.mxu0 0
    %550 = vmatprep.subr.bf16.mxu0 0
    %551 = vmatpush1.bf16.xpose.msra.mxu0 0
    %552 = vmatprep.subr.bf16.mxu0 0
    %553 = vmatpush1.bf16.xpose.msra.mxu0 0
    %554 = vmatprep.subr.bf16.mxu0 0
    %555 = vmatpush1.bf16.xpose.msra.mxu0 %v538
    %556 = vmatprep.subr.bf16.mxu0 0
    %557 = vmatpush2.bf16.xpose.msra.mxu0 0
    %558 = vmatprep.subr.bf16.mxu0 0
    %559 = vmatpush2.bf16.xpose.msra.mxu0 0
    %560 = vmatprep.subr.bf16.mxu0 0
    %561 = vmatpush2.bf16.xpose.msra.mxu0 0
    %562 = vmatprep.subr.bf16.mxu0 0
    %563 = vmatpush2.bf16.xpose.msra.mxu0 0
    %564 = vmatprep.subr.bf16.mxu0 0
    %565 = vmatpush2.bf16.xpose.msra.mxu0 0
    %566 = vmatprep.subr.bf16.mxu0 0
    %567 = vmatpush2.bf16.xpose.msra.mxu0 0
    %568 = vmatprep.subr.bf16.mxu0 0
    %569 = vmatpush2.bf16.xpose.msra.mxu0 0
    %570 = vmatprep.subr.bf16.mxu0 0
    %571 = vmatpush2.bf16.xpose.msra.mxu0 0
    %572 = vmatprep.mubr.bf16.mxu0 0
    %573 = vmatmul.mubr.bf16.gmra.mxu0 %v535
    %v574 = vpop.f32.mrf.mxu0
    %v575 = vadd.f32 0.0, %v574
    %v576 = vpop.f32.mrf.mxu0
    %v577 = vpop.f32.mrf.mxu0
    %v578 = vpop.f32.mrf.mxu0
    %579 = vdwg.mxu0
    %v580 = vsel %vm357, %v524, -inf
    %581 = vmax.xlane.f32.xlu0 %v580
    %v582 = vpop.xlane.xlu0 %581
    %v583 = vsel %vm357, %v575, -inf
    %584 = vmax.xlane.f32.xlu0 %v583
    %v585 = vpop.xlane.xlu0 %584
    %v586 = vsub.f32 %v524, %v582
    %v587 = vsub.f32 %v575, %v585
    %v588 = vmul.f32 %v586, 1.442695
    %v589 = vpow.pop %v588
    %v590 = vmul.f32 %v587, 1.442695
    %v591 = vpow.pop %v590
    %v592 = vsel %vm357, %v589, 0.0
    %593 = vadd.xlane.f32.xlu0 %v592
    %v594 = vpop.xlane.xlu0 %593
    %v595 = vsel %vm357, %v591, 0.0
    %596 = vadd.xlane.f32.xlu0 %v595
    %v597 = vpop.xlane.xlu0 %596
    %v598 = vrcp.pop %v594
    %v599 = vrcp.pop %v597
    %v600 = vmul.f32 %v589, %v598
    %v601 = vmul.f32 %v591, %v599
    %v602 = vpack.c.bf16 %v600, %v600
    %v603 = vpack.c.bf16 %v601, %v601
    %604 = vrot.lane.b32.xlu0 %v262, 88
    %v605 = vpop.permute.xlu0 %604
    %v608 = vsel %vm357, %v602, 0
    %610 = vmatprep.subr.bf16.mxu0 0
    %611 = vmatpush1.bf16.msra.mxu0 0
    %612 = vmatprep.subr.bf16.mxu0 0
    %613 = vmatpush1.bf16.msra.mxu0 0
    %614 = vmatprep.subr.bf16.mxu0 0
    %615 = vmatpush1.bf16.msra.mxu0 0
    %616 = vmatprep.subr.bf16.mxu0 0
    %617 = vmatpush1.bf16.msra.mxu0 0
    %618 = vmatprep.subr.bf16.mxu0 0
    %619 = vmatpush1.bf16.msra.mxu0 0
    %620 = vmatprep.subr.bf16.mxu0 0
    %621 = vmatpush1.bf16.msra.mxu0 0
    %622 = vmatprep.subr.bf16.mxu0 0
    %623 = vmatpush1.bf16.msra.mxu0 0
    %624 = vmatprep.subr.bf16.mxu0 0
    %625 = vmatpush1.bf16.msra.mxu0 %v605
    %626 = vmatprep.subr.bf16.mxu0 0
    %627 = vmatpush2.bf16.msra.mxu0 0
    %628 = vmatprep.subr.bf16.mxu0 0
    %629 = vmatpush2.bf16.msra.mxu0 0
    %630 = vmatprep.subr.bf16.mxu0 0
    %631 = vmatpush2.bf16.msra.mxu0 0
    %632 = vmatprep.subr.bf16.mxu0 0
    %633 = vmatpush2.bf16.msra.mxu0 0
    %634 = vmatprep.subr.bf16.mxu0 0
    %635 = vmatpush2.bf16.msra.mxu0 0
    %636 = vmatprep.subr.bf16.mxu0 0
    %637 = vmatpush2.bf16.msra.mxu0 0
    %638 = vmatprep.subr.bf16.mxu0 0
    %639 = vmatpush2.bf16.msra.mxu0 0
    %640 = vmatprep.subr.bf16.mxu0 0
    %641 = vmatpush2.bf16.msra.mxu0 0
    %642 = vmatprep.mubr.bf16.mxu0 0
    %643 = vmatmul.mubr.bf16.gmra.mxu0 %v608
    %v644 = vpop.f32.mrf.mxu0
    %v645 = vadd.f32 0.0, %v644
    %v646 = vpop.f32.mrf.mxu0
    %v647 = vpop.f32.mrf.mxu0
    %v648 = vpop.f32.mrf.mxu0
    %649 = vdwg.mxu0
    %650 = vrot.lane.b32.xlu0 %v263, 88
    %v651 = vpop.permute.xlu0 %650
    %v654 = vsel %vm357, %v603, 0
    %656 = vmatprep.subr.bf16.mxu0 0
    %657 = vmatpush1.bf16.msra.mxu0 0
    %658 = vmatprep.subr.bf16.mxu0 0
    %659 = vmatpush1.bf16.msra.mxu0 0
    %660 = vmatprep.subr.bf16.mxu0 0
    %661 = vmatpush1.bf16.msra.mxu0 0
    %662 = vmatprep.subr.bf16.mxu0 0
    %663 = vmatpush1.bf16.msra.mxu0 0
    %664 = vmatprep.subr.bf16.mxu0 0
    %665 = vmatpush1.bf16.msra.mxu0 0
    %666 = vmatprep.subr.bf16.mxu0 0
    %667 = vmatpush1.bf16.msra.mxu0 0
    %668 = vmatprep.subr.bf16.mxu0 0
    %669 = vmatpush1.bf16.msra.mxu0 0
    %670 = vmatprep.subr.bf16.mxu0 0
    %671 = vmatpush1.bf16.msra.mxu0 %v651
    %672 = vmatprep.subr.bf16.mxu0 0
    %673 = vmatpush2.bf16.msra.mxu0 0
    %674 = vmatprep.subr.bf16.mxu0 0
    %675 = vmatpush2.bf16.msra.mxu0 0
    %676 = vmatprep.subr.bf16.mxu0 0
    %677 = vmatpush2.bf16.msra.mxu0 0
    %678 = vmatprep.subr.bf16.mxu0 0
    %679 = vmatpush2.bf16.msra.mxu0 0
    %680 = vmatprep.subr.bf16.mxu0 0
    %681 = vmatpush2.bf16.msra.mxu0 0
    %682 = vmatprep.subr.bf16.mxu0 0
    %683 = vmatpush2.bf16.msra.mxu0 0
    %684 = vmatprep.subr.bf16.mxu0 0
    %685 = vmatpush2.bf16.msra.mxu0 0
    %686 = vmatprep.subr.bf16.mxu0 0
    %687 = vmatpush2.bf16.msra.mxu0 0
    %688 = vmatprep.mubr.bf16.mxu0 0
    %689 = vmatmul.mubr.bf16.gmra.mxu0 %v654
    %v690 = vpop.f32.mrf.mxu0
    %v691 = vadd.f32 0.0, %v690
    %v692 = vpop.f32.mrf.mxu0
    %v693 = vpop.f32.mrf.mxu0
    %v694 = vpop.f32.mrf.mxu0
    %695 = vdwg.mxu0
    %698 = vrot.lane.b32.xlu0 %v645, 8
    %v699 = vpop.permute.xlu0 %698
    %700 = vrot.lane.b32.xlu0 %v691, 8
    %v701 = vpop.permute.xlu0 %700
    %vm704 = vcmask 130112
    %705 = vst.msk [vmem:[#allocation2] sm:$0xff] %vm704, %v699
    %706 = vst.msk [vmem:[#allocation2 + $0x8] sm:$0xff] %vm704, %v701
    %707 = vrot.lane.b32.xlu0 %v260, 112
    %v708 = vpop.permute.xlu0 %707
    %709 = vrot.lane.b32.xlu0 %v262, 112
    %v710 = vpop.permute.xlu0 %709
    %v712 = vsel %vm264, %v708, 0
    %v715 = vsel %vm264, %v710, 0
    %717 = vmatprep.subr.bf16.mxu0 0
    %718 = vmatpush1.bf16.xpose.msra.mxu0 0
    %719 = vmatprep.subr.bf16.mxu0 0
    %720 = vmatpush1.bf16.xpose.msra.mxu0 0
    %721 = vmatprep.subr.bf16.mxu0 0
    %722 = vmatpush1.bf16.xpose.msra.mxu0 0
    %723 = vmatprep.subr.bf16.mxu0 0
    %724 = vmatpush1.bf16.xpose.msra.mxu0 0
    %725 = vmatprep.subr.bf16.mxu0 0
    %726 = vmatpush1.bf16.xpose.msra.mxu0 0
    %727 = vmatprep.subr.bf16.mxu0 0
    %728 = vmatpush1.bf16.xpose.msra.mxu0 0
    %729 = vmatprep.subr.bf16.mxu0 0
    %730 = vmatpush1.bf16.xpose.msra.mxu0 0
    %731 = vmatprep.subr.bf16.mxu0 0
    %732 = vmatpush1.bf16.xpose.msra.mxu0 %v715
    %733 = vmatprep.subr.bf16.mxu0 0
    %734 = vmatpush2.bf16.xpose.msra.mxu0 0
    %735 = vmatprep.subr.bf16.mxu0 0
    %736 = vmatpush2.bf16.xpose.msra.mxu0 0
    %737 = vmatprep.subr.bf16.mxu0 0
    %738 = vmatpush2.bf16.xpose.msra.mxu0 0
    %739 = vmatprep.subr.bf16.mxu0 0
    %740 = vmatpush2.bf16.xpose.msra.mxu0 0
    %741 = vmatprep.subr.bf16.mxu0 0
    %742 = vmatpush2.bf16.xpose.msra.mxu0 0
    %743 = vmatprep.subr.bf16.mxu0 0
    %744 = vmatpush2.bf16.xpose.msra.mxu0 0
    %745 = vmatprep.subr.bf16.mxu0 0
    %746 = vmatpush2.bf16.xpose.msra.mxu0 0
    %747 = vmatprep.subr.bf16.mxu0 0
    %748 = vmatpush2.bf16.xpose.msra.mxu0 0
    %749 = vmatprep.mubr.bf16.mxu0 0
    %750 = vmatmul.mubr.bf16.gmra.mxu0 %v712
    %v751 = vpop.f32.mrf.mxu0
    %v752 = vadd.f32 0.0, %v751
    %v753 = vpop.f32.mrf.mxu0
    %v754 = vpop.f32.mrf.mxu0
    %v755 = vpop.f32.mrf.mxu0
    %756 = vdwg.mxu0
    %757 = vrot.lane.b32.xlu0 %v261, 112
    %v758 = vpop.permute.xlu0 %757
    %759 = vrot.lane.b32.xlu0 %v263, 112
    %v760 = vpop.permute.xlu0 %759
    %v762 = vsel %vm264, %v758, 0
    %v765 = vsel %vm264, %v760, 0
    %767 = vmatprep.subr.bf16.mxu0 0
    %768 = vmatpush1.bf16.xpose.msra.mxu0 0
    %769 = vmatprep.subr.bf16.mxu0 0
    %770 = vmatpush1.bf16.xpose.msra.mxu0 0
    %771 = vmatprep.subr.bf16.mxu0 0
    %772 = vmatpush1.bf16.xpose.msra.mxu0 0
    %773 = vmatprep.subr.bf16.mxu0 0
    %774 = vmatpush1.bf16.xpose.msra.mxu0 0
    %775 = vmatprep.subr.bf16.mxu0 0
    %776 = vmatpush1.bf16.xpose.msra.mxu0 0
    %777 = vmatprep.subr.bf16.mxu0 0
    %778 = vmatpush1.bf16.xpose.msra.mxu0 0
    %779 = vmatprep.subr.bf16.mxu0 0
    %780 = vmatpush1.bf16.xpose.msra.mxu0 0
    %781 = vmatprep.subr.bf16.mxu0 0
    %782 = vmatpush1.bf16.xpose.msra.mxu0 %v765
    %783 = vmatprep.subr.bf16.mxu0 0
    %784 = vmatpush2.bf16.xpose.msra.mxu0 0
    %785 = vmatprep.subr.bf16.mxu0 0
    %786 = vmatpush2.bf16.xpose.msra.mxu0 0
    %787 = vmatprep.subr.bf16.mxu0 0
    %788 = vmatpush2.bf16.xpose.msra.mxu0 0
    %789 = vmatprep.subr.bf16.mxu0 0
    %790 = vmatpush2.bf16.xpose.msra.mxu0 0
    %791 = vmatprep.subr.bf16.mxu0 0
    %792 = vmatpush2.bf16.xpose.msra.mxu0 0
    %793 = vmatprep.subr.bf16.mxu0 0
    %794 = vmatpush2.bf16.xpose.msra.mxu0 0
    %795 = vmatprep.subr.bf16.mxu0 0
    %796 = vmatpush2.bf16.xpose.msra.mxu0 0
    %797 = vmatprep.subr.bf16.mxu0 0
    %798 = vmatpush2.bf16.xpose.msra.mxu0 0
    %799 = vmatprep.mubr.bf16.mxu0 0
    %800 = vmatmul.mubr.bf16.gmra.mxu0 %v762
    %v801 = vpop.f32.mrf.mxu0
    %v802 = vadd.f32 0.0, %v801
    %v803 = vpop.f32.mrf.mxu0
    %v804 = vpop.f32.mrf.mxu0
    %v805 = vpop.f32.mrf.mxu0
    %806 = vdwg.mxu0
    %v807 = vsel %vm357, %v752, -inf
    %808 = vmax.xlane.f32.xlu0 %v807
    %v809 = vpop.xlane.xlu0 %808
    %v810 = vsel %vm357, %v802, -inf
    %811 = vmax.xlane.f32.xlu0 %v810
    %v812 = vpop.xlane.xlu0 %811
    %v813 = vsub.f32 %v752, %v809
    %v814 = vsub.f32 %v802, %v812
    %v815 = vmul.f32 %v813, 1.442695
    %v816 = vpow.pop %v815
    %v817 = vmul.f32 %v814, 1.442695
    %v818 = vpow.pop %v817
    %v819 = vsel %vm357, %v816, 0.0
    %820 = vadd.xlane.f32.xlu0 %v819
    %v821 = vpop.xlane.xlu0 %820
    %v822 = vsel %vm357, %v818, 0.0
    %823 = vadd.xlane.f32.xlu0 %v822
    %v824 = vpop.xlane.xlu0 %823
    %v825 = vrcp.pop %v821
    %v826 = vrcp.pop %v824
    %v827 = vmul.f32 %v816, %v825
    %v828 = vmul.f32 %v818, %v826
    %v829 = vpack.c.bf16 %v827, %v827
    %v830 = vpack.c.bf16 %v828, %v828
    %831 = vrot.lane.b32.xlu0 %v262, 80
    %v832 = vpop.permute.xlu0 %831
    %v835 = vsel %vm357, %v829, 0
    %837 = vmatprep.subr.bf16.mxu0 0
    %838 = vmatpush1.bf16.msra.mxu0 0
    %839 = vmatprep.subr.bf16.mxu0 0
    %840 = vmatpush1.bf16.msra.mxu0 0
    %841 = vmatprep.subr.bf16.mxu0 0
    %842 = vmatpush1.bf16.msra.mxu0 0
    %843 = vmatprep.subr.bf16.mxu0 0
    %844 = vmatpush1.bf16.msra.mxu0 0
    %845 = vmatprep.subr.bf16.mxu0 0
    %846 = vmatpush1.bf16.msra.mxu0 0
    %847 = vmatprep.subr.bf16.mxu0 0
    %848 = vmatpush1.bf16.msra.mxu0 0
    %849 = vmatprep.subr.bf16.mxu0 0
    %850 = vmatpush1.bf16.msra.mxu0 0
    %851 = vmatprep.subr.bf16.mxu0 0
    %852 = vmatpush1.bf16.msra.mxu0 %v832
    %853 = vmatprep.subr.bf16.mxu0 0
    %854 = vmatpush2.bf16.msra.mxu0 0
    %855 = vmatprep.subr.bf16.mxu0 0
    %856 = vmatpush2.bf16.msra.mxu0 0
    %857 = vmatprep.subr.bf16.mxu0 0
    %858 = vmatpush2.bf16.msra.mxu0 0
    %859 = vmatprep.subr.bf16.mxu0 0
    %860 = vmatpush2.bf16.msra.mxu0 0
    %861 = vmatprep.subr.bf16.mxu0 0
    %862 = vmatpush2.bf16.msra.mxu0 0
    %863 = vmatprep.subr.bf16.mxu0 0
    %864 = vmatpush2.bf16.msra.mxu0 0
    %865 = vmatprep.subr.bf16.mxu0 0
    %866 = vmatpush2.bf16.msra.mxu0 0
    %867 = vmatprep.subr.bf16.mxu0 0
    %868 = vmatpush2.bf16.msra.mxu0 0
    %869 = vmatprep.mubr.bf16.mxu0 0
    %870 = vmatmul.mubr.bf16.gmra.mxu0 %v835
    %v871 = vpop.f32.mrf.mxu0
    %v872 = vadd.f32 0.0, %v871
    %v873 = vpop.f32.mrf.mxu0
    %v874 = vpop.f32.mrf.mxu0
    %v875 = vpop.f32.mrf.mxu0
    %876 = vdwg.mxu0
    %877 = vrot.lane.b32.xlu0 %v263, 80
    %v878 = vpop.permute.xlu0 %877
    %v881 = vsel %vm357, %v830, 0
    %883 = vmatprep.subr.bf16.mxu0 0
    %884 = vmatpush1.bf16.msra.mxu0 0
    %885 = vmatprep.subr.bf16.mxu0 0
    %886 = vmatpush1.bf16.msra.mxu0 0
    %887 = vmatprep.subr.bf16.mxu0 0
    %888 = vmatpush1.bf16.msra.mxu0 0
    %889 = vmatprep.subr.bf16.mxu0 0
    %890 = vmatpush1.bf16.msra.mxu0 0
    %891 = vmatprep.subr.bf16.mxu0 0
    %892 = vmatpush1.bf16.msra.mxu0 0
    %893 = vmatprep.subr.bf16.mxu0 0
    %894 = vmatpush1.bf16.msra.mxu0 0
    %895 = vmatprep.subr.bf16.mxu0 0
    %896 = vmatpush1.bf16.msra.mxu0 0
    %897 = vmatprep.subr.bf16.mxu0 0
    %898 = vmatpush1.bf16.msra.mxu0 %v878
    %899 = vmatprep.subr.bf16.mxu0 0
    %900 = vmatpush2.bf16.msra.mxu0 0
    %901 = vmatprep.subr.bf16.mxu0 0
    %902 = vmatpush2.bf16.msra.mxu0 0
    %903 = vmatprep.subr.bf16.mxu0 0
    %904 = vmatpush2.bf16.msra.mxu0 0
    %905 = vmatprep.subr.bf16.mxu0 0
    %906 = vmatpush2.bf16.msra.mxu0 0
    %907 = vmatprep.subr.bf16.mxu0 0
    %908 = vmatpush2.bf16.msra.mxu0 0
    %909 = vmatprep.subr.bf16.mxu0 0
    %910 = vmatpush2.bf16.msra.mxu0 0
    %911 = vmatprep.subr.bf16.mxu0 0
    %912 = vmatpush2.bf16.msra.mxu0 0
    %913 = vmatprep.subr.bf16.mxu0 0
    %914 = vmatpush2.bf16.msra.mxu0 0
    %915 = vmatprep.mubr.bf16.mxu0 0
    %916 = vmatmul.mubr.bf16.gmra.mxu0 %v881
    %v917 = vpop.f32.mrf.mxu0
    %v918 = vadd.f32 0.0, %v917
    %v919 = vpop.f32.mrf.mxu0
    %v920 = vpop.f32.mrf.mxu0
    %v921 = vpop.f32.mrf.mxu0
    %922 = vdwg.mxu0
    %925 = vrot.lane.b32.xlu0 %v872, 16
    %v926 = vpop.permute.xlu0 %925
    %927 = vrot.lane.b32.xlu0 %v918, 16
    %v928 = vpop.permute.xlu0 %927
    %vm931 = vcmask 195712
    %932 = vst.msk [vmem:[#allocation2] sm:$0xff] %vm931, %v926
    %933 = vst.msk [vmem:[#allocation2 + $0x8] sm:$0xff] %vm931, %v928
    %934 = vrot.lane.b32.xlu0 %v260, 104
    %v935 = vpop.permute.xlu0 %934
    %936 = vrot.lane.b32.xlu0 %v262, 104
    %v937 = vpop.permute.xlu0 %936
    %v939 = vsel %vm264, %v935, 0
    %v942 = vsel %vm264, %v937, 0
    %944 = vmatprep.subr.bf16.mxu0 0
    %945 = vmatpush1.bf16.xpose.msra.mxu0 0
    %946 = vmatprep.subr.bf16.mxu0 0
    %947 = vmatpush1.bf16.xpose.msra.mxu0 0
    %948 = vmatprep.subr.bf16.mxu0 0
    %949 = vmatpush1.bf16.xpose.msra.mxu0 0
    %950 = vmatprep.subr.bf16.mxu0 0
    %951 = vmatpush1.bf16.xpose.msra.mxu0 0
    %952 = vmatprep.subr.bf16.mxu0 0
    %953 = vmatpush1.bf16.xpose.msra.mxu0 0
    %954 = vmatprep.subr.bf16.mxu0 0
    %955 = vmatpush1.bf16.xpose.msra.mxu0 0
    %956 = vmatprep.subr.bf16.mxu0 0
    %957 = vmatpush1.bf16.xpose.msra.mxu0 0
    %958 = vmatprep.subr.bf16.mxu0 0
    %959 = vmatpush1.bf16.xpose.msra.mxu0 %v942
    %960 = vmatprep.subr.bf16.mxu0 0
    %961 = vmatpush2.bf16.xpose.msra.mxu0 0
    %962 = vmatprep.subr.bf16.mxu0 0
    %963 = vmatpush2.bf16.xpose.msra.mxu0 0
    %964 = vmatprep.subr.bf16.mxu0 0
    %965 = vmatpush2.bf16.xpose.msra.mxu0 0
    %966 = vmatprep.subr.bf16.mxu0 0
    %967 = vmatpush2.bf16.xpose.msra.mxu0 0
    %968 = vmatprep.subr.bf16.mxu0 0
    %969 = vmatpush2.bf16.xpose.msra.mxu0 0
    %970 = vmatprep.subr.bf16.mxu0 0
    %971 = vmatpush2.bf16.xpose.msra.mxu0 0
    %972 = vmatprep.subr.bf16.mxu0 0
    %973 = vmatpush2.bf16.xpose.msra.mxu0 0
    %974 = vmatprep.subr.bf16.mxu0 0
    %975 = vmatpush2.bf16.xpose.msra.mxu0 0
    %976 = vmatprep.mubr.bf16.mxu0 0
    %977 = vmatmul.mubr.bf16.gmra.mxu0 %v939
    %v978 = vpop.f32.mrf.mxu0
    %v979 = vadd.f32 0.0, %v978
    %v980 = vpop.f32.mrf.mxu0
    %v981 = vpop.f32.mrf.mxu0
    %v982 = vpop.f32.mrf.mxu0
    %983 = vdwg.mxu0
    %984 = vrot.lane.b32.xlu0 %v261, 104
    %v985 = vpop.permute.xlu0 %984
    %986 = vrot.lane.b32.xlu0 %v263, 104
    %v987 = vpop.permute.xlu0 %986
    %v989 = vsel %vm264, %v985, 0
    %v992 = vsel %vm264, %v987, 0
    %994 = vmatprep.subr.bf16.mxu0 0
    %995 = vmatpush1.bf16.xpose.msra.mxu0 0
    %996 = vmatprep.subr.bf16.mxu0 0
    %997 = vmatpush1.bf16.xpose.msra.mxu0 0
    %998 = vmatprep.subr.bf16.mxu0 0
    %999 = vmatpush1.bf16.xpose.msra.mxu0 0
    %1000 = vmatprep.subr.bf16.mxu0 0
    %1001 = vmatpush1.bf16.xpose.msra.mxu0 0
    %1002 = vmatprep.subr.bf16.mxu0 0
    %1003 = vmatpush1.bf16.xpose.msra.mxu0 0
    %1004 = vmatprep.subr.bf16.mxu0 0
    %1005 = vmatpush1.bf16.xpose.msra.mxu0 0
    %1006 = vmatprep.subr.bf16.mxu0 0
    %1007 = vmatpush1.bf16.xpose.msra.mxu0 0
    %1008 = vmatprep.subr.bf16.mxu0 0
    %1009 = vmatpush1.bf16.xpose.msra.mxu0 %v992
    %1010 = vmatprep.subr.bf16.mxu0 0
    %1011 = vmatpush2.bf16.xpose.msra.mxu0 0
    %1012 = vmatprep.subr.bf16.mxu0 0
    %1013 = vmatpush2.bf16.xpose.msra.mxu0 0
    %1014 = vmatprep.subr.bf16.mxu0 0
    %1015 = vmatpush2.bf16.xpose.msra.mxu0 0
    %1016 = vmatprep.subr.bf16.mxu0 0
    %1017 = vmatpush2.bf16.xpose.msra.mxu0 0
    %1018 = vmatprep.subr.bf16.mxu0 0
    %1019 = vmatpush2.bf16.xpose.msra.mxu0 0
    %1020 = vmatprep.subr.bf16.mxu0 0
    %1021 = vmatpush2.bf16.xpose.msra.mxu0 0
    %1022 = vmatprep.subr.bf16.mxu0 0
    %1023 = vmatpush2.bf16.xpose.msra.mxu0 0
    %1024 = vmatprep.subr.bf16.mxu0 0
    %1025 = vmatpush2.bf16.xpose.msra.mxu0 0
    %1026 = vmatprep.mubr.bf16.mxu0 0
    %1027 = vmatmul.mubr.bf16.gmra.mxu0 %v989
    %v1028 = vpop.f32.mrf.mxu0
    %v1029 = vadd.f32 0.0, %v1028
    %v1030 = vpop.f32.mrf.mxu0
    %v1031 = vpop.f32.mrf.mxu0
    %v1032 = vpop.f32.mrf.mxu0
    %1033 = vdwg.mxu0
    %v1034 = vsel %vm357, %v979, -inf
    %1035 = vmax.xlane.f32.xlu0 %v1034
    %v1036 = vpop.xlane.xlu0 %1035
    %v1037 = vsel %vm357, %v1029, -inf
    %1038 = vmax.xlane.f32.xlu0 %v1037
    %v1039 = vpop.xlane.xlu0 %1038
    %v1040 = vsub.f32 %v979, %v1036
    %v1041 = vsub.f32 %v1029, %v1039
    %v1042 = vmul.f32 %v1040, 1.442695
    %v1043 = vpow.pop %v1042
    %v1044 = vmul.f32 %v1041, 1.442695
    %v1045 = vpow.pop %v1044
    %v1046 = vsel %vm357, %v1043, 0.0
    %1047 = vadd.xlane.f32.xlu0 %v1046
    %v1048 = vpop.xlane.xlu0 %1047
    %v1049 = vsel %vm357, %v1045, 0.0
    %1050 = vadd.xlane.f32.xlu0 %v1049
    %v1051 = vpop.xlane.xlu0 %1050
    %v1052 = vrcp.pop %v1048
    %v1053 = vrcp.pop %v1051
    %v1054 = vmul.f32 %v1043, %v1052
    %v1055 = vmul.f32 %v1045, %v1053
    %v1056 = vpack.c.bf16 %v1054, %v1054
    %v1057 = vpack.c.bf16 %v1055, %v1055
    %1058 = vrot.lane.b32.xlu0 %v262, 72
    %v1059 = vpop.permute.xlu0 %1058
    %v1062 = vsel %vm357, %v1056, 0
    %1064 = vmatprep.subr.bf16.mxu0 0
    %1065 = vmatpush1.bf16.msra.mxu0 0
    %1066 = vmatprep.subr.bf16.mxu0 0
    %1067 = vmatpush1.bf16.msra.mxu0 0
    %1068 = vmatprep.subr.bf16.mxu0 0
    %1069 = vmatpush1.bf16.msra.mxu0 0
    %1070 = vmatprep.subr.bf16.mxu0 0
    %1071 = vmatpush1.bf16.msra.mxu0 0
    %1072 = vmatprep.subr.bf16.mxu0 0
    %1073 = vmatpush1.bf16.msra.mxu0 0
    %1074 = vmatprep.subr.bf16.mxu0 0
    %1075 = vmatpush1.bf16.msra.mxu0 0
    %1076 = vmatprep.subr.bf16.mxu0 0
    %1077 = vmatpush1.bf16.msra.mxu0 0
    %1078 = vmatprep.subr.bf16.mxu0 0
    %1079 = vmatpush1.bf16.msra.mxu0 %v1059
    %1080 = vmatprep.subr.bf16.mxu0 0
    %1081 = vmatpush2.bf16.msra.mxu0 0
    %1082 = vmatprep.subr.bf16.mxu0 0
    %1083 = vmatpush2.bf16.msra.mxu0 0
    %1084 = vmatprep.subr.bf16.mxu0 0
    %1085 = vmatpush2.bf16.msra.mxu0 0
    %1086 = vmatprep.subr.bf16.mxu0 0
    %1087 = vmatpush2.bf16.msra.mxu0 0
    %1088 = vmatprep.subr.bf16.mxu0 0
    %1089 = vmatpush2.bf16.msra.mxu0 0
    %1090 = vmatprep.subr.bf16.mxu0 0
    %1091 = vmatpush2.bf16.msra.mxu0 0
    %1092 = vmatprep.subr.bf16.mxu0 0
    %1093 = vmatpush2.bf16.msra.mxu0 0
    %1094 = vmatprep.subr.bf16.mxu0 0
    %1095 = vmatpush2.bf16.msra.mxu0 0
    %1096 = vmatprep.mubr.bf16.mxu0 0
    %1097 = vmatmul.mubr.bf16.gmra.mxu0 %v1062
    %v1098 = vpop.f32.mrf.mxu0
    %v1099 = vadd.f32 0.0, %v1098
    %v1100 = vpop.f32.mrf.mxu0
    %v1101 = vpop.f32.mrf.mxu0
    %v1102 = vpop.f32.mrf.mxu0
    %1103 = vdwg.mxu0
    %1104 = vrot.lane.b32.xlu0 %v263, 72
    %v1105 = vpop.permute.xlu0 %1104
    %v1108 = vsel %vm357, %v1057, 0
    %1110 = vmatprep.subr.bf16.mxu0 0
    %1111 = vmatpush1.bf16.msra.mxu0 0
    %1112 = vmatprep.subr.bf16.mxu0 0
    %1113 = vmatpush1.bf16.msra.mxu0 0
    %1114 = vmatprep.subr.bf16.mxu0 0
    %1115 = vmatpush1.bf16.msra.mxu0 0
    %1116 = vmatprep.subr.bf16.mxu0 0
    %1117 = vmatpush1.bf16.msra.mxu0 0
    %1118 = vmatprep.subr.bf16.mxu0 0
    %1119 = vmatpush1.bf16.msra.mxu0 0
    %1120 = vmatprep.subr.bf16.mxu0 0
    %1121 = vmatpush1.bf16.msra.mxu0 0
    %1122 = vmatprep.subr.bf16.mxu0 0
    %1123 = vmatpush1.bf16.msra.mxu0 0
    %1124 = vmatprep.subr.bf16.mxu0 0
    %1125 = vmatpush1.bf16.msra.mxu0 %v1105
    %1126 = vmatprep.subr.bf16.mxu0 0
    %1127 = vmatpush2.bf16.msra.mxu0 0
    %1128 = vmatprep.subr.bf16.mxu0 0
    %1129 = vmatpush2.bf16.msra.mxu0 0
    %1130 = vmatprep.subr.bf16.mxu0 0
    %1131 = vmatpush2.bf16.msra.mxu0 0
    %1132 = vmatprep.subr.bf16.mxu0 0
    %1133 = vmatpush2.bf16.msra.mxu0 0
    %1134 = vmatprep.subr.bf16.mxu0 0
    %1135 = vmatpush2.bf16.msra.mxu0 0
    %1136 = vmatprep.subr.bf16.mxu0 0
    %1137 = vmatpush2.bf16.msra.mxu0 0
    %1138 = vmatprep.subr.bf16.mxu0 0
    %1139 = vmatpush2.bf16.msra.mxu0 0
    %1140 = vmatprep.subr.bf16.mxu0 0
    %1141 = vmatpush2.bf16.msra.mxu0 0
    %1142 = vmatprep.mubr.bf16.mxu0 0
    %1143 = vmatmul.mubr.bf16.gmra.mxu0 %v1108
    %v1144 = vpop.f32.mrf.mxu0
    %v1145 = vadd.f32 0.0, %v1144
    %v1146 = vpop.f32.mrf.mxu0
    %v1147 = vpop.f32.mrf.mxu0
    %v1148 = vpop.f32.mrf.mxu0
    %1149 = vdwg.mxu0
    %1152 = vrot.lane.b32.xlu0 %v1099, 24
    %v1153 = vpop.permute.xlu0 %1152
    %1154 = vrot.lane.b32.xlu0 %v1145, 24
    %v1155 = vpop.permute.xlu0 %1154
    %vm1158 = vcmask 261312
    %1159 = vst.msk [vmem:[#allocation2] sm:$0xff] %vm1158, %v1153
    %1160 = vst.msk [vmem:[#allocation2 + $0x8] sm:$0xff] %vm1158, %v1155
    %v1161 = vld [vmem:[#allocation2] sm:$0xff]
    %v1162 = vld [vmem:[#allocation2 + $0x8] sm:$0xff]
    %v1163 = vpack.c.bf16 %v1162, %v1161
    %v1164 = vld [vmem:[#allocation11] sm:$0xf]
    %v1165 = vld [vmem:[#allocation11 + $0x4] sm:$0xf]
    %v1166 = vld [vmem:[#allocation11 + $0x8] sm:$0xf]
    %v1167 = vld [vmem:[#allocation11 + $0xc] sm:$0xf]
    %v1172 = vunpack.c.l.b16 %v1164
    %v1173 = vunpack.c.l.b16 %v1165
    %v1174 = vunpack.c.l.b16 %v1166
    %v1175 = vunpack.c.l.b16 %v1167
    %v1176 = vpack.c.b16 %v1173, %v1172
    %v1177 = vpack.c.b16 %v1175, %v1174
    %v1181 = vsel %vm135, %v1163, 0
    %1183 = vmatprep.subr.bf16.mxu0 0
    %1184 = vmatpush1.bf16.msra.mxu0 0
    %1185 = vmatprep.subr.bf16.mxu0 0
    %1186 = vmatpush1.bf16.msra.mxu0 0
    %1187 = vmatprep.subr.bf16.mxu0 0
    %1188 = vmatpush1.bf16.msra.mxu0 0
    %1189 = vmatprep.subr.bf16.mxu0 0
    %1190 = vmatpush1.bf16.msra.mxu0 0
    %1191 = vmatprep.subr.bf16.mxu0 0
    %1192 = vmatpush1.bf16.msra.mxu0 0
    %1193 = vmatprep.subr.bf16.mxu0 0
    %1194 = vmatpush1.bf16.msra.mxu0 0
    %1195 = vmatprep.subr.bf16.mxu0 0
    %1196 = vmatpush1.bf16.msra.mxu0 %v1177
    %1197 = vmatprep.subr.bf16.mxu0 0
    %1198 = vmatpush1.bf16.msra.mxu0 %v1176
    %1199 = vmatprep.subr.bf16.mxu0 0
    %1200 = vmatpush2.bf16.msra.mxu0 0
    %1201 = vmatprep.subr.bf16.mxu0 0
    %1202 = vmatpush2.bf16.msra.mxu0 0
    %1203 = vmatprep.subr.bf16.mxu0 0
    %1204 = vmatpush2.bf16.msra.mxu0 0
    %1205 = vmatprep.subr.bf16.mxu0 0
    %1206 = vmatpush2.bf16.msra.mxu0 0
    %1207 = vmatprep.subr.bf16.mxu0 0
    %1208 = vmatpush2.bf16.msra.mxu0 0
    %1209 = vmatprep.subr.bf16.mxu0 0
    %1210 = vmatpush2.bf16.msra.mxu0 0
    %1211 = vmatprep.subr.bf16.mxu0 0
    %1212 = vmatpush2.bf16.msra.mxu0 0
    %1213 = vmatprep.subr.bf16.mxu0 0
    %1214 = vmatpush2.bf16.msra.mxu0 0
    %1215 = vmatprep.mubr.bf16.mxu0 0
    %1216 = vmatmul.mubr.bf16.gmra.mxu0 %v1181
    %v1217 = vpop.f32.mrf.mxu0
    %v1218 = vadd.f32 0.0, %v1217
    %v1219 = vpop.f32.mrf.mxu0
    %v1220 = vpop.f32.mrf.mxu0
    %v1221 = vadd.f32 0.0, %v1220
    %v1222 = vpop.f32.mrf.mxu0
    %1223 = vdwg.mxu0
    %v1224 = vadd.f32 %v105, %v1218
    %v1225 = vadd.f32 %v106, %v1221
    %v1226 = vld [vmem:[%s7] sm:$0x1]
    %v1228 = vlaneseq
    %v1229 = vshrl.u32 %v1228, 7
    %v1230 = vsub.s32 0, %v1229
    %v1231 = vrot.slane %v1226, %v1230
    %v1233 = vadd.f32 %v1224, %v1231
    %v1234 = vadd.f32 %v1225, %v1231
    %v1235 = vsel %vm135, %v1233, 0.0
    %1236 = vadd.xlane.f32.xlu0 %v1235
    %v1237 = vpop.xlane.xlu0 %1236
    %v1238 = vsel %vm135, %v1234, 0.0
    %1239 = vadd.xlane.f32.xlu0 %v1238
    %v1240 = vpop.xlane.xlu0 %1239
    %v1241 = vrcp.pop 32.0
    %v1242 = vmul.f32 %v1237, %v1241
    %v1243 = vmul.f32 %v1240, %v1241
    %v1244 = vsub.f32 %v1233, %v1242
    %v1245 = vsub.f32 %v1234, %v1243
    %v1246 = vmul.f32 %v1244, %v1244
    %v1247 = vmul.f32 %v1245, %v1245
    %v1248 = vsel %vm135, %v1246, 0.0
    %1249 = vadd.xlane.f32.xlu0 %v1248
    %v1250 = vpop.xlane.xlu0 %1249
    %v1251 = vsel %vm135, %v1247, 0.0
    %1252 = vadd.xlane.f32.xlu0 %v1251
    %v1253 = vpop.xlane.xlu0 %1252
    %v1254 = vmul.f32 %v1250, %v1241
    %v1255 = vmul.f32 %v1253, %v1241
    %v1256 = vadd.f32 %v1254, 1e-05
    %v1257 = vadd.f32 %v1255, 1e-05
    %v1258 = vrsqrt.pop %v1256
    %v1259 = vrsqrt.pop %v1257
    %v1260 = vmul.f32 %v1244, %v1258
    %v1261 = vmul.f32 %v1245, %v1259
    %v1262 = vld [vmem:[%s8] sm:$0x1]
    %v1264 = vlaneseq
    %v1265 = vshrl.u32 %v1264, 7
    %v1266 = vsub.s32 0, %v1265
    %v1267 = vrot.slane %v1262, %v1266
    %v1269 = vmul.f32 %v1260, %v1267
    %v1270 = vmul.f32 %v1261, %v1267
    %v1271 = vld [vmem:[%s9] sm:$0x1]
    %v1273 = vlaneseq
    %v1274 = vshrl.u32 %v1273, 7
    %v1275 = vsub.s32 0, %v1274
    %v1276 = vrot.slane %v1271, %v1275
    %v1278 = vadd.f32 %v1269, %v1276
    %v1279 = vadd.f32 %v1270, %v1276
    %1280 = vst.msk [vmem:[#allocation12] sm:$0xff] %vm135, %v1278
    %1281 = vst.msk [vmem:[#allocation12 + $0x8] sm:$0xff] %vm135, %v1279
    // Predicated region
    $region62: #{tpu_custom_call.1} parent=1 // pred_check
      _
    $region63: #{tpu_custom_call.1} parent=1 // pred_check_branch
      %1283 = sbr.rel (0) target = $region65
    $region64: #{tpu_custom_call.1} parent=1 // pred_region
      %s1285 = ssub.s32 256, 256
      %1286 = vsyncadd [#allocation5], %s1285
      %s1287 = sshll.u32 [#allocation12], 4
      %s1288 = int_to_ptr.vmem [resolvable:$true] %s1287
      %1293 = dma.vmem_to_hbm [thread:$0]  %s1288, 256, %s10, [#allocation5], 128, 128, 8
    $region65: #{tpu_custom_call.1} parent=1 // pred_fallthru
      _
    // Predicated region
    $region66: #{tpu_custom_call.1} parent=1 // pred_check
      _
    $region67: #{tpu_custom_call.1} parent=1 // pred_check_branch
      %1295 = sbr.rel (0) target = $region69
    $region68: #{tpu_custom_call.1} parent=1 // pred_region
      %1296 = dma.done [#allocation5], 256
    $region69: #{tpu_custom_call.1} parent=1 // pred_fallthru
      _
    %1297 = vsyncpa [#allocation4], 1
    %1298 = vsyncpa [#allocation7], 1
    %1299 = vsyncpa [#allocation10], 1
    %1300 = vsyncpa [#allocation5], 1

// kernel: tpu_custom_call.1
$region0: #{tpu_custom_call.1}
  #allocation0 [shape = 'u32[]', space=smem, size = 0x4, offset = 0x4, fixed_abs, tag = 'smem constant byte address 0x4 - core index']
  #allocation1 [shape = 'u32[144,128]{1,0:T(1,128)}', space=vmem, size = 0x12000, scoped, tag = 'internal scratch']
  #allocation2 [shape = 'f32[16,32]{1,0:T(8,128)}', space=vmem, size = 0x2000, scoped, tag = 'scratch operand']
  %s0 = inlined_call_operand.hbm [shape: f32[2,16,32], index: 0, kind: input, shape index: {}]
  %s1 = inlined_call_operand.hbm [shape: f32[2,8,32], index: 1, kind: input, shape index: {}]
  %s2 = inlined_call_operand.hbm [shape: bf16[32,32], index: 2, kind: input, shape index: {}]
  %s3 = inlined_call_operand.vmem [shape: f32[1,32], index: 3, kind: input, shape index: {}]
  %s4 = inlined_call_operand.hbm [shape: bf16[32,64], index: 4, kind: input, shape index: {}]
  %s5 = inlined_call_operand.vmem [shape: f32[1,64], index: 5, kind: input, shape index: {}]
  %s6 = inlined_call_operand.hbm [shape: bf16[32,32], index: 6, kind: input, shape index: {}]
  %s7 = inlined_call_operand.vmem [shape: f32[1,32], index: 7, kind: input, shape index: {}]
  %s8 = inlined_call_operand.vmem [shape: f32[1,32], index: 8, kind: input, shape index: {}]
  %s9 = inlined_call_operand.vmem [shape: f32[1,32], index: 9, kind: input, shape index: {}]
  %s10 = inlined_call_operand.hbm [shape: f32[2,8,32], index: 10, kind: output, shape index: {}]
  %s11 = sld [smem:[#allocation0]]
  $region70: #{tpu_custom_call.1} parent=0
    _
  %s13 = ssub.s32 1, %s11
  %s14 = scalar_select 0, %s13, %s11
  $region1: #{tpu_custom_call.1} parent=0
    #allocation3 [shape = 'u8[16384]{0}', space=vmem, size = 0x4000, scoped, tag = 'input window, operand 0, single buffered']
    #allocation4 [shape = 's32[1]{0}', space=sflag, size = 0x4, scoped, tag = 'scoped memory for tpu_custom_call.1']
    #allocation5 [shape = 's32[1]{0}', space=sflag, size = 0x4, scoped, tag = 'scoped memory for tpu_custom_call.1']
    #allocation6 [shape = 'u8[8192]{0}', space=vmem, size = 0x2000, scoped, tag = 'input window, operand 1, single buffered']
    #allocation7 [shape = 's32[1]{0}', space=sflag, size = 0x4, scoped, tag = 'scoped memory for tpu_custom_call.1']
    #allocation8 [shape = 'u8[8192]{0}', space=vmem, size = 0x2000, scoped, tag = 'input window, operand 2, single buffered']
    #allocation9 [shape = 'u8[8192]{0}', space=vmem, size = 0x2000, scoped, tag = 'input window, operand 4, single buffered']
    #allocation10 [shape = 's32[1]{0}', space=sflag, size = 0x4, scoped, tag = 'scoped memory for tpu_custom_call.1']
    #allocation11 [shape = 'u8[8192]{0}', space=vmem, size = 0x2000, scoped, tag = 'input window, operand 6, single buffered']
    #allocation12 [shape = 'u8[8192]{0}', space=vmem, size = 0x2000, scoped, tag = 'output window, operand 0, single buffered']
    %15 = vsyncpa [#allocation4], 0
    %16 = vsyncpa [#allocation7], 0
    %17 = vsyncpa [#allocation10], 0
    %18 = vsyncpa [#allocation5], 0
    // Predicated region
    $region2: #{tpu_custom_call.1} parent=1 // pred_check
      _
    $region3: #{tpu_custom_call.1} parent=1 // pred_check_branch
      %20 = sbr.rel (0) target = $region5
    $region4: #{tpu_custom_call.1} parent=1 // pred_region
      %s22 = ssub.s32 512, 512
      %23 = vsyncadd [#allocation4], %s22
      %s24 = sshll.u32 [#allocation3], 4
      %s25 = int_to_ptr.vmem [resolvable:$true] %s24
      %30 = dma.hbm_to_vmem [thread:$0]  %s0, 512, %s25, [#allocation4], 128, 128, 8
    $region5: #{tpu_custom_call.1} parent=1 // pred_fallthru
      _
    // Predicated region
    $region6: #{tpu_custom_call.1} parent=1 // pred_check
      _
    $region7: #{tpu_custom_call.1} parent=1 // pred_check_branch
      %32 = sbr.rel (0) target = $region9
    $region8: #{tpu_custom_call.1} parent=1 // pred_region
      %s34 = ssub.s32 256, 256
      %35 = vsyncadd [#allocation7], %s34
      %s36 = sshll.u32 [#allocation6], 4
      %s37 = int_to_ptr.vmem [resolvable:$true] %s36
      %42 = dma.hbm_to_vmem [thread:$0]  %s1, 256, %s37, [#allocation7], 128, 128, 8
    $region9: #{tpu_custom_call.1} parent=1 // pred_fallthru
      _
    // Predicated region
    $region10: #{tpu_custom_call.1} parent=1 // pred_check
      _
    $region11: #{tpu_custom_call.1} parent=1 // pred_check_branch
      %44 = sbr.rel (0) target = $region13
    $region12: #{tpu_custom_call.1} parent=1 // pred_region
      %s46 = ssub.s32 256, 256
      %47 = vsyncadd [#allocation7], %s46
      %s48 = sshll.u32 [#allocation8], 4
      %s49 = int_to_ptr.vmem [resolvable:$true] %s48
      %54 = dma.hbm_to_vmem [thread:$0]  %s2, 256, %s49, [#allocation7], 64, 64, 4
    $region13: #{tpu_custom_call.1} parent=1 // pred_fallthru
      _
    // Predicated region
    $region14: #{tpu_custom_call.1} parent=1 // pred_check
      _
    $region15: #{tpu_custom_call.1} parent=1 // pred_check_branch
      %56 = sbr.rel (0) target = $region17
    $region16: #{tpu_custom_call.1} parent=1 // pred_region
      _
    $region17: #{tpu_custom_call.1} parent=1 // pred_fallthru
      _
    // Predicated region
    $region18: #{tpu_custom_call.1} parent=1 // pred_check
      _
    $region19: #{tpu_custom_call.1} parent=1 // pred_check_branch
      %58 = sbr.rel (0) target = $region21
    $region20: #{tpu_custom_call.1} parent=1 // pred_region
      %s60 = ssub.s32 256, 256
      %61 = vsyncadd [#allocation10], %s60
      %s62 = sshll.u32 [#allocation9], 4
      %s63 = int_to_ptr.vmem [resolvable:$true] %s62
      %68 = dma.hbm_to_vmem [thread:$0]  %s4, 256, %s63, [#allocation10], 64, 64, 4
    $region21: #{tpu_custom_call.1} parent=1 // pred_fallthru
      _
    // Predicated region
    $region22: #{tpu_custom_call.1} parent=1 // pred_check
      _
    $region23: #{tpu_custom_call.1} parent=1 // pred_check_branch
      %70 = sbr.rel (0) target = $region25
    $region24: #{tpu_custom_call.1} parent=1 // pred_region
      _
    $region25: #{tpu_custom_call.1} parent=1 // pred_fallthru
      _
    // Predicated region
    $region26: #{tpu_custom_call.1} parent=1 // pred_check
      _
    $region27: #{tpu_custom_call.1} parent=1 // pred_check_branch
      %72 = sbr.rel (0) target = $region29
    $region28: #{tpu_custom_call.1} parent=1 // pred_region
      %s74 = ssub.s32 256, 256
      %75 = vsyncadd [#allocation10], %s74
      %s76 = sshll.u32 [#allocation11], 4
      %s77 = int_to_ptr.vmem [resolvable:$true] %s76
      %82 = dma.hbm_to_vmem [thread:$0]  %s6, 256, %s77, [#allocation10], 64, 64, 4
    $region29: #{tpu_custom_call.1} parent=1 // pred_fallthru
      _
    // Predicated region
    $region30: #{tpu_custom_call.1} parent=1 // pred_check
      _
    $region31: #{tpu_custom_call.1} parent=1 // pred_check_branch
      %84 = sbr.rel (0) target = $region33
    $region32: #{tpu_custom_call.1} parent=1 // pred_region
      _
    $region33: #{tpu_custom_call.1} parent=1 // pred_fallthru
      _
    // Predicated region
    $region34: #{tpu_custom_call.1} parent=1 // pred_check
      _
    $region35: #{tpu_custom_call.1} parent=1 // pred_check_branch
      %86 = sbr.rel (0) target = $region37
    $region36: #{tpu_custom_call.1} parent=1 // pred_region
      _
    $region37: #{tpu_custom_call.1} parent=1 // pred_fallthru
      _
    // Predicated region
    $region38: #{tpu_custom_call.1} parent=1 // pred_check
      _
    $region39: #{tpu_custom_call.1} parent=1 // pred_check_branch
      %88 = sbr.rel (0) target = $region41
    $region40: #{tpu_custom_call.1} parent=1 // pred_region
      _
    $region41: #{tpu_custom_call.1} parent=1 // pred_fallthru
      _
    // Predicated region
    $region42: #{tpu_custom_call.1} parent=1 // pred_check
      _
    $region43: #{tpu_custom_call.1} parent=1 // pred_check_branch
      %90 = sbr.rel (0) target = $region45
    $region44: #{tpu_custom_call.1} parent=1 // pred_region
      %91 = dma.done [#allocation4], 512
    $region45: #{tpu_custom_call.1} parent=1 // pred_fallthru
      _
    // Predicated region
    $region46: #{tpu_custom_call.1} parent=1 // pred_check
      _
    $region47: #{tpu_custom_call.1} parent=1 // pred_check_branch
      %93 = sbr.rel (0) target = $region49
    $region48: #{tpu_custom_call.1} parent=1 // pred_region
      %94 = dma.done [#allocation7], 256
    $region49: #{tpu_custom_call.1} parent=1 // pred_fallthru
      _
    // Predicated region
    $region50: #{tpu_custom_call.1} parent=1 // pred_check
      _
    $region51: #{tpu_custom_call.1} parent=1 // pred_check_branch
      %96 = sbr.rel (0) target = $region53
    $region52: #{tpu_custom_call.1} parent=1 // pred_region
      %97 = dma.done [#allocation7], 256
    $region53: #{tpu_custom_call.1} parent=1 // pred_fallthru
      _
    // Predicated region
    $region54: #{tpu_custom_call.1} parent=1 // pred_check
      _
    $region55: #{tpu_custom_call.1} parent=1 // pred_check_branch
      %99 = sbr.rel (0) target = $region57
    $region56: #{tpu_custom_call.1} parent=1 // pred_region
      %100 = dma.done [#allocation10], 256
    $region57: #{tpu_custom_call.1} parent=1 // pred_fallthru
      _
    // Predicated region
    $region58: #{tpu_custom_call.1} parent=1 // pred_check
      _
    $region59: #{tpu_custom_call.1} parent=1 // pred_check_branch
      %102 = sbr.rel (0) target = $region61
    $region60: #{tpu_custom_call.1} parent=1 // pred_region
      %103 = dma.done [#allocation10], 256
    $region61: #{tpu_custom_call.1} parent=1 // pred_fallthru
      _
    %v105 = vld [vmem:[#allocation6] sm:$0xff]
    %v106 = vld [vmem:[#allocation6 + $0x8] sm:$0xff]
    %v107 = vld [vmem:[#allocation3] sm:$0xff]
    %v108 = vld [vmem:[#allocation3 + $0x8] sm:$0xff]
    %v109 = vld [vmem:[#allocation3 + $0x10] sm:$0xff]
    %v110 = vld [vmem:[#allocation3 + $0x18] sm:$0xff]
    %v111 = vpack.c.bf16 %v106, %v105
    %v112 = vld [vmem:[#allocation8] sm:$0xf]
    %v113 = vld [vmem:[#allocation8 + $0x4] sm:$0xf]
    %v114 = vld [vmem:[#allocation8 + $0x8] sm:$0xf]
    %v115 = vld [vmem:[#allocation8 + $0xc] sm:$0xf]
    %v116 = vld [vmem:[%s3] sm:$0x1]
    %v118 = vlaneseq
    %v119 = vshrl.u32 %v118, 7
    %v120 = vsub.s32 0, %v119
    %v121 = vrot.slane %v116, %v120
    %v127 = vunpack.c.l.b16 %v112
    %v128 = vunpack.c.l.b16 %v113
    %v129 = vunpack.c.l.b16 %v114
    %v130 = vunpack.c.l.b16 %v115
    %v131 = vpack.c.b16 %v128, %v127
    %v132 = vpack.c.b16 %v130, %v129
    %vm135 = vcmask 261120
    %v137 = vsel %vm135, %v111, 0
    %139 = vmatprep.subr.bf16.mxu0 0
    %140 = vmatpush1.bf16.msra.mxu0 0
    %141 = vmatprep.subr.bf16.mxu0 0
    %142 = vmatpush1.bf16.msra.mxu0 0
    %143 = vmatprep.subr.bf16.mxu0 0
    %144 = vmatpush1.bf16.msra.mxu0 0
    %145 = vmatprep.subr.bf16.mxu0 0
    %146 = vmatpush1.bf16.msra.mxu0 0
    %147 = vmatprep.subr.bf16.mxu0 0
    %148 = vmatpush1.bf16.msra.mxu0 0
    %149 = vmatprep.subr.bf16.mxu0 0
    %150 = vmatpush1.bf16.msra.mxu0 0
    %151 = vmatprep.subr.bf16.mxu0 0
    %152 = vmatpush1.bf16.msra.mxu0 %v132
    %153 = vmatprep.subr.bf16.mxu0 0
    %154 = vmatpush1.bf16.msra.mxu0 %v131
    %155 = vmatprep.subr.bf16.mxu0 0
    %156 = vmatpush2.bf16.msra.mxu0 0
    %157 = vmatprep.subr.bf16.mxu0 0
    %158 = vmatpush2.bf16.msra.mxu0 0
    %159 = vmatprep.subr.bf16.mxu0 0
    %160 = vmatpush2.bf16.msra.mxu0 0
    %161 = vmatprep.subr.bf16.mxu0 0
    %162 = vmatpush2.bf16.msra.mxu0 0
    %163 = vmatprep.subr.bf16.mxu0 0
    %164 = vmatpush2.bf16.msra.mxu0 0
    %165 = vmatprep.subr.bf16.mxu0 0
    %166 = vmatpush2.bf16.msra.mxu0 0
    %167 = vmatprep.subr.bf16.mxu0 0
    %168 = vmatpush2.bf16.msra.mxu0 0
    %169 = vmatprep.subr.bf16.mxu0 0
    %170 = vmatpush2.bf16.msra.mxu0 0
    %171 = vmatprep.mubr.bf16.mxu0 0
    %172 = vmatmul.mubr.bf16.gmra.mxu0 %v137
    %v173 = vpop.f32.mrf.mxu0
    %v174 = vadd.f32 %v121, %v173
    %v175 = vpop.f32.mrf.mxu0
    %v176 = vpop.f32.mrf.mxu0
    %v177 = vadd.f32 %v121, %v176
    %v178 = vpop.f32.mrf.mxu0
    %179 = vdwg.mxu0
    %v180 = vpack.c.bf16 %v108, %v107
    %v181 = vpack.c.bf16 %v110, %v109
    %v182 = vld [vmem:[#allocation9] sm:$0xf]
    %v183 = vld [vmem:[#allocation9 + $0x4] sm:$0xf]
    %v184 = vld [vmem:[#allocation9 + $0x8] sm:$0xf]
    %v185 = vld [vmem:[#allocation9 + $0xc] sm:$0xf]
    %v186 = vld [vmem:[%s5] sm:$0x1]
    %v188 = vlaneseq
    %v189 = vshrl.u32 %v188, 7
    %v190 = vsub.s32 0, %v189
    %v191 = vrot.slane %v186, %v190
    %v197 = vunpack.c.l.b16 %v182
    %v198 = vunpack.c.l.b16 %v183
    %v199 = vunpack.c.l.b16 %v184
    %v200 = vunpack.c.l.b16 %v185
    %v201 = vpack.c.b16 %v198, %v197
    %v202 = vpack.c.b16 %v200, %v199
    %v206 = vsel %vm135, %v180, 0
    %v209 = vsel %vm135, %v181, 0
    %211 = vmatprep.subr.bf16.mxu0 0
    %212 = vmatpush1.bf16.msra.mxu0 0
    %213 = vmatprep.subr.bf16.mxu0 0
    %214 = vmatpush1.bf16.msra.mxu0 0
    %215 = vmatprep.subr.bf16.mxu0 0
    %216 = vmatpush1.bf16.msra.mxu0 0
    %217 = vmatprep.subr.bf16.mxu0 0
    %218 = vmatpush1.bf16.msra.mxu0 0
    %219 = vmatprep.subr.bf16.mxu0 0
    %220 = vmatpush1.bf16.msra.mxu0 0
    %221 = vmatprep.subr.bf16.mxu0 0
    %222 = vmatpush1.bf16.msra.mxu0 0
    %223 = vmatprep.subr.bf16.mxu0 0
    %224 = vmatpush1.bf16.msra.mxu0 %v202
    %225 = vmatprep.subr.bf16.mxu0 0
    %226 = vmatpush1.bf16.msra.mxu0 %v201
    %227 = vmatprep.subr.bf16.mxu0 0
    %228 = vmatpush2.bf16.msra.mxu0 0
    %229 = vmatprep.subr.bf16.mxu0 0
    %230 = vmatpush2.bf16.msra.mxu0 0
    %231 = vmatprep.subr.bf16.mxu0 0
    %232 = vmatpush2.bf16.msra.mxu0 0
    %233 = vmatprep.subr.bf16.mxu0 0
    %234 = vmatpush2.bf16.msra.mxu0 0
    %235 = vmatprep.subr.bf16.mxu0 0
    %236 = vmatpush2.bf16.msra.mxu0 0
    %237 = vmatprep.subr.bf16.mxu0 0
    %238 = vmatpush2.bf16.msra.mxu0 0
    %239 = vmatprep.subr.bf16.mxu0 0
    %240 = vmatpush2.bf16.msra.mxu0 0
    %241 = vmatprep.subr.bf16.mxu0 0
    %242 = vmatpush2.bf16.msra.mxu0 0
    %243 = vmatprep.mubr.bf16.mxu0 0
    %244 = vmatmul.mubr.bf16.gmra.mxu0 %v206
    %v245 = vpop.f32.mrf.mxu0
    %v246 = vadd.f32 %v191, %v245
    %v247 = vpop.f32.mrf.mxu0
    %v248 = vpop.f32.mrf.mxu0
    %v249 = vadd.f32 %v191, %v248
    %v250 = vpop.f32.mrf.mxu0
    %251 = vmatprep.mubr.bf16.mxu0 0
    %252 = vmatmul.mubr.bf16.gmra.mxu0 %v209
    %v253 = vpop.f32.mrf.mxu0
    %v254 = vadd.f32 %v191, %v253
    %v255 = vpop.f32.mrf.mxu0
    %v256 = vpop.f32.mrf.mxu0
    %v257 = vadd.f32 %v191, %v256
    %v258 = vpop.f32.mrf.mxu0
    %259 = vdwg.mxu0
    %v260 = vpack.c.bf16 %v174, %v174
    %v261 = vpack.c.bf16 %v177, %v177
    %v262 = vpack.c.bf16 %v249, %v246
    %v263 = vpack.c.bf16 %v257, %v254
    %vm264 = vcmask 64512
    %v266 = vsel %vm264, %v260, 0
    %v269 = vsel %vm264, %v262, 0
    %271 = vmatprep.subr.bf16.mxu0 0
    %272 = vmatpush1.bf16.xpose.msra.mxu0 0
    %273 = vmatprep.subr.bf16.mxu0 0
    %274 = vmatpush1.bf16.xpose.msra.mxu0 0
    %275 = vmatprep.subr.bf16.mxu0 0
    %276 = vmatpush1.bf16.xpose.msra.mxu0 0
    %277 = vmatprep.subr.bf16.mxu0 0
    %278 = vmatpush1.bf16.xpose.msra.mxu0 0
    %279 = vmatprep.subr.bf16.mxu0 0
    %280 = vmatpush1.bf16.xpose.msra.mxu0 0
    %281 = vmatprep.subr.bf16.mxu0 0
    %282 = vmatpush1.bf16.xpose.msra.mxu0 0
    %283 = vmatprep.subr.bf16.mxu0 0
    %284 = vmatpush1.bf16.xpose.msra.mxu0 0
    %285 = vmatprep.subr.bf16.mxu0 0
    %286 = vmatpush1.bf16.xpose.msra.mxu0 %v269
    %287 = vmatprep.subr.bf16.mxu0 0
    %288 = vmatpush2.bf16.xpose.msra.mxu0 0
    %289 = vmatprep.subr.bf16.mxu0 0
    %290 = vmatpush2.bf16.xpose.msra.mxu0 0
    %291 = vmatprep.subr.bf16.mxu0 0
    %292 = vmatpush2.bf16.xpose.msra.mxu0 0
    %293 = vmatprep.subr.bf16.mxu0 0
    %294 = vmatpush2.bf16.xpose.msra.mxu0 0
    %295 = vmatprep.subr.bf16.mxu0 0
    %296 = vmatpush2.bf16.xpose.msra.mxu0 0
    %297 = vmatprep.subr.bf16.mxu0 0
    %298 = vmatpush2.bf16.xpose.msra.mxu0 0
    %299 = vmatprep.subr.bf16.mxu0 0
    %300 = vmatpush2.bf16.xpose.msra.mxu0 0
    %301 = vmatprep.subr.bf16.mxu0 0
    %302 = vmatpush2.bf16.xpose.msra.mxu0 0
    %303 = vmatprep.mubr.bf16.mxu0 0
    %304 = vmatmul.mubr.bf16.gmra.mxu0 %v266
    %v305 = vpop.f32.mrf.mxu0
    %v306 = vadd.f32 0.0, %v305
    %v307 = vpop.f32.mrf.mxu0
    %v308 = vpop.f32.mrf.mxu0
    %v309 = vpop.f32.mrf.mxu0
    %310 = vdwg.mxu0
    %v312 = vsel %vm264, %v261, 0
    %v315 = vsel %vm264, %v263, 0
    %317 = vmatprep.subr.bf16.mxu0 0
    %318 = vmatpush1.bf16.xpose.msra.mxu0 0
    %319 = vmatprep.subr.bf16.mxu0 0
    %320 = vmatpush1.bf16.xpose.msra.mxu0 0
    %321 = vmatprep.subr.bf16.mxu0 0
    %322 = vmatpush1.bf16.xpose.msra.mxu0 0
    %323 = vmatprep.subr.bf16.mxu0 0
    %324 = vmatpush1.bf16.xpose.msra.mxu0 0
    %325 = vmatprep.subr.bf16.mxu0 0
    %326 = vmatpush1.bf16.xpose.msra.mxu0 0
    %327 = vmatprep.subr.bf16.mxu0 0
    %328 = vmatpush1.bf16.xpose.msra.mxu0 0
    %329 = vmatprep.subr.bf16.mxu0 0
    %330 = vmatpush1.bf16.xpose.msra.mxu0 0
    %331 = vmatprep.subr.bf16.mxu0 0
    %332 = vmatpush1.bf16.xpose.msra.mxu0 %v315
    %333 = vmatprep.subr.bf16.mxu0 0
    %334 = vmatpush2.bf16.xpose.msra.mxu0 0
    %335 = vmatprep.subr.bf16.mxu0 0
    %336 = vmatpush2.bf16.xpose.msra.mxu0 0
    %337 = vmatprep.subr.bf16.mxu0 0
    %338 = vmatpush2.bf16.xpose.msra.mxu0 0
    %339 = vmatprep.subr.bf16.mxu0 0
    %340 = vmatpush2.bf16.xpose.msra.mxu0 0
    %341 = vmatprep.subr.bf16.mxu0 0
    %342 = vmatpush2.bf16.xpose.msra.mxu0 0
    %343 = vmatprep.subr.bf16.mxu0 0
    %344 = vmatpush2.bf16.xpose.msra.mxu0 0
    %345 = vmatprep.subr.bf16.mxu0 0
    %346 = vmatpush2.bf16.xpose.msra.mxu0 0
    %347 = vmatprep.subr.bf16.mxu0 0
    %348 = vmatpush2.bf16.xpose.msra.mxu0 0
    %349 = vmatprep.mubr.bf16.mxu0 0
    %350 = vmatmul.mubr.bf16.gmra.mxu0 %v312
    %v351 = vpop.f32.mrf.mxu0
    %v352 = vadd.f32 0.0, %v351
    %v353 = vpop.f32.mrf.mxu0
    %v354 = vpop.f32.mrf.mxu0
    %v355 = vpop.f32.mrf.mxu0
    %356 = vdwg.mxu0
    %vm357 = vcmask 130048
    %v358 = vsel %vm357, %v306, -inf
    %359 = vmax.xlane.f32.xlu0 %v358
    %v360 = vpop.xlane.xlu0 %359
    %v361 = vsel %vm357, %v352, -inf
    %362 = vmax.xlane.f32.xlu0 %v361
    %v363 = vpop.xlane.xlu0 %362
    %v364 = vsub.f32 %v306, %v360
    %v365 = vsub.f32 %v352, %v363
    %v366 = vmul.f32 %v364, 1.442695
    %v367 = vpow.pop %v366
    %v368 = vmul.f32 %v365, 1.442695
    %v369 = vpow.pop %v368
    %v370 = vsel %vm357, %v367, 0.0
    %371 = vadd.xlane.f32.xlu0 %v370
    %v372 = vpop.xlane.xlu0 %371
    %v373 = vsel %vm357, %v369, 0.0
    %374 = vadd.xlane.f32.xlu0 %v373
    %v375 = vpop.xlane.xlu0 %374
    %v376 = vrcp.pop %v372
    %v377 = vrcp.pop %v375
    %v378 = vmul.f32 %v367, %v376
    %v379 = vmul.f32 %v369, %v377
    %v380 = vpack.c.bf16 %v378, %v378
    %v381 = vpack.c.bf16 %v379, %v379
    %383 = vrot.lane.b32.xlu0 %v262, 96
    %v384 = vpop.permute.xlu0 %383
    %v387 = vsel %vm357, %v380, 0
    %389 = vmatprep.subr.bf16.mxu0 0
    %390 = vmatpush1.bf16.msra.mxu0 0
    %391 = vmatprep.subr.bf16.mxu0 0
    %392 = vmatpush1.bf16.msra.mxu0 0
    %393 = vmatprep.subr.bf16.mxu0 0
    %394 = vmatpush1.bf16.msra.mxu0 0
    %395 = vmatprep.subr.bf16.mxu0 0
    %396 = vmatpush1.bf16.msra.mxu0 0
    %397 = vmatprep.subr.bf16.mxu0 0
    %398 = vmatpush1.bf16.msra.mxu0 0
    %399 = vmatprep.subr.bf16.mxu0 0
    %400 = vmatpush1.bf16.msra.mxu0 0
    %401 = vmatprep.subr.bf16.mxu0 0
    %402 = vmatpush1.bf16.msra.mxu0 0
    %403 = vmatprep.subr.bf16.mxu0 0
    %404 = vmatpush1.bf16.msra.mxu0 %v384
    %405 = vmatprep.subr.bf16.mxu0 0
    %406 = vmatpush2.bf16.msra.mxu0 0
    %407 = vmatprep.subr.bf16.mxu0 0
    %408 = vmatpush2.bf16.msra.mxu0 0
    %409 = vmatprep.subr.bf16.mxu0 0
    %410 = vmatpush2.bf16.msra.mxu0 0
    %411 = vmatprep.subr.bf16.mxu0 0
    %412 = vmatpush2.bf16.msra.mxu0 0
    %413 = vmatprep.subr.bf16.mxu0 0
    %414 = vmatpush2.bf16.msra.mxu0 0
    %415 = vmatprep.subr.bf16.mxu0 0
    %416 = vmatpush2.bf16.msra.mxu0 0
    %417 = vmatprep.subr.bf16.mxu0 0
    %418 = vmatpush2.bf16.msra.mxu0 0
    %419 = vmatprep.subr.bf16.mxu0 0
    %420 = vmatpush2.bf16.msra.mxu0 0
    %421 = vmatprep.mubr.bf16.mxu0 0
    %422 = vmatmul.mubr.bf16.gmra.mxu0 %v387
    %v423 = vpop.f32.mrf.mxu0
    %v424 = vadd.f32 0.0, %v423
    %v425 = vpop.f32.mrf.mxu0
    %v426 = vpop.f32.mrf.mxu0
    %v427 = vpop.f32.mrf.mxu0
    %428 = vdwg.mxu0
    %430 = vrot.lane.b32.xlu0 %v263, 96
    %v431 = vpop.permute.xlu0 %430
    %v434 = vsel %vm357, %v381, 0
    %436 = vmatprep.subr.bf16.mxu0 0
    %437 = vmatpush1.bf16.msra.mxu0 0
    %438 = vmatprep.subr.bf16.mxu0 0
    %439 = vmatpush1.bf16.msra.mxu0 0
    %440 = vmatprep.subr.bf16.mxu0 0
    %441 = vmatpush1.bf16.msra.mxu0 0
    %442 = vmatprep.subr.bf16.mxu0 0
    %443 = vmatpush1.bf16.msra.mxu0 0
    %444 = vmatprep.subr.bf16.mxu0 0
    %445 = vmatpush1.bf16.msra.mxu0 0
    %446 = vmatprep.subr.bf16.mxu0 0
    %447 = vmatpush1.bf16.msra.mxu0 0
    %448 = vmatprep.subr.bf16.mxu0 0
    %449 = vmatpush1.bf16.msra.mxu0 0
    %450 = vmatprep.subr.bf16.mxu0 0
    %451 = vmatpush1.bf16.msra.mxu0 %v431
    %452 = vmatprep.subr.bf16.mxu0 0
    %453 = vmatpush2.bf16.msra.mxu0 0
    %454 = vmatprep.subr.bf16.mxu0 0
    %455 = vmatpush2.bf16.msra.mxu0 0
    %456 = vmatprep.subr.bf16.mxu0 0
    %457 = vmatpush2.bf16.msra.mxu0 0
    %458 = vmatprep.subr.bf16.mxu0 0
    %459 = vmatpush2.bf16.msra.mxu0 0
    %460 = vmatprep.subr.bf16.mxu0 0
    %461 = vmatpush2.bf16.msra.mxu0 0
    %462 = vmatprep.subr.bf16.mxu0 0
    %463 = vmatpush2.bf16.msra.mxu0 0
    %464 = vmatprep.subr.bf16.mxu0 0
    %465 = vmatpush2.bf16.msra.mxu0 0
    %466 = vmatprep.subr.bf16.mxu0 0
    %467 = vmatpush2.bf16.msra.mxu0 0
    %468 = vmatprep.mubr.bf16.mxu0 0
    %469 = vmatmul.mubr.bf16.gmra.mxu0 %v434
    %v470 = vpop.f32.mrf.mxu0
    %v471 = vadd.f32 0.0, %v470
    %v472 = vpop.f32.mrf.mxu0
    %v473 = vpop.f32.mrf.mxu0
    %v474 = vpop.f32.mrf.mxu0
    %475 = vdwg.mxu0
    %476 = vst.msk [vmem:[#allocation2] sm:$0xff] %vm264, %v424
    %477 = vst.msk [vmem:[#allocation2 + $0x8] sm:$0xff] %vm264, %v471
    %479 = vrot.lane.b32.xlu0 %v260, 120
    %v480 = vpop.permute.xlu0 %479
    %481 = vrot.lane.b32.xlu0 %v262, 120
    %v482 = vpop.permute.xlu0 %481
    %v484 = vsel %vm264, %v480, 0
    %v487 = vsel %vm264, %v482, 0
    %489 = vmatprep.subr.bf16.mxu0 0
    %490 = vmatpush1.bf16.xpose.msra.mxu0 0
    %491 = vmatprep.subr.bf16.mxu0 0
    %492 = vmatpush1.bf16.xpose.msra.mxu0 0
    %493 = vmatprep.subr.bf16.mxu0 0
    %494 = vmatpush1.bf16.xpose.msra.mxu0 0
    %495 = vmatprep.subr.bf16.mxu0 0
    %496 = vmatpush1.bf16.xpose.msra.mxu0 0
    %497 = vmatprep.subr.bf16.mxu0 0
    %498 = vmatpush1.bf16.xpose.msra.mxu0 0
    %499 = vmatprep.subr.bf16.mxu0 0
    %500 = vmatpush1.bf16.xpose.msra.mxu0 0
    %501 = vmatprep.subr.bf16.mxu0 0
    %502 = vmatpush1.bf16.xpose.msra.mxu0 0
    %503 = vmatprep.subr.bf16.mxu0 0
    %504 = vmatpush1.bf16.xpose.msra.mxu0 %v487
    %505 = vmatprep.subr.bf16.mxu0 0
    %506 = vmatpush2.bf16.xpose.msra.mxu0 0
    %507 = vmatprep.subr.bf16.mxu0 0
    %508 = vmatpush2.bf16.xpose.msra.mxu0 0
    %509 = vmatprep.subr.bf16.mxu0 0
    %510 = vmatpush2.bf16.xpose.msra.mxu0 0
    %511 = vmatprep.subr.bf16.mxu0 0
    %512 = vmatpush2.bf16.xpose.msra.mxu0 0
    %513 = vmatprep.subr.bf16.mxu0 0
    %514 = vmatpush2.bf16.xpose.msra.mxu0 0
    %515 = vmatprep.subr.bf16.mxu0 0
    %516 = vmatpush2.bf16.xpose.msra.mxu0 0
    %517 = vmatprep.subr.bf16.mxu0 0
    %518 = vmatpush2.bf16.xpose.msra.mxu0 0
    %519 = vmatprep.subr.bf16.mxu0 0
    %520 = vmatpush2.bf16.xpose.msra.mxu0 0
    %521 = vmatprep.mubr.bf16.mxu0 0
    %522 = vmatmul.mubr.bf16.gmra.mxu0 %v484
    %v523 = vpop.f32.mrf.mxu0
    %v524 = vadd.f32 0.0, %v523
    %v525 = vpop.f32.mrf.mxu0
    %v526 = vpop.f32.mrf.mxu0
    %v527 = vpop.f32.mrf.mxu0
    %528 = vdwg.mxu0
    %530 = vrot.lane.b32.xlu0 %v261, 120
    %v531 = vpop.permute.xlu0 %530
    %532 = vrot.lane.b32.xlu0 %v263, 120
    %v533 = vpop.permute.xlu0 %532
    %v535 = vsel %vm264, %v531, 0
    %v538 = vsel %vm264, %v533, 0
    %540 = vmatprep.subr.bf16.mxu0 0
    %541 = vmatpush1.bf16.xpose.msra.mxu0 0
    %542 = vmatprep.subr.bf16.mxu0 0
    %543 = vmatpush1.bf16.xpose.msra.mxu0 0
    %544 = vmatprep.subr.bf16.mxu0 0
    %545 = vmatpush1.bf16.xpose.msra.mxu0 0
    %546 = vmatprep.subr.bf16.mxu0 0
    %547 = vmatpush1.bf16.xpose.msra.mxu0 0
    %548 = vmatprep.subr.bf16.mxu0 0
    %549 = vmatpush1.bf16.xpose.msra.mxu0 0
    %550 = vmatprep.subr.bf16.mxu0 0
    %551 = vmatpush1.bf16.xpose.msra.mxu0 0
    %552 = vmatprep.subr.bf16.mxu0 0
    %553 = vmatpush1.bf16.xpose.msra.mxu0 0
    %554 = vmatprep.subr.bf16.mxu0 0
    %555 = vmatpush1.bf16.xpose.msra.mxu0 %v538
    %556 = vmatprep.subr.bf16.mxu0 0
    %557 = vmatpush2.bf16.xpose.msra.mxu0 0
    %558 = vmatprep.subr.bf16.mxu0 0
    %559 = vmatpush2.bf16.xpose.msra.mxu0 0
    %560 = vmatprep.subr.bf16.mxu0 0
    %561 = vmatpush2.bf16.xpose.msra.mxu0 0
    %562 = vmatprep.subr.bf16.mxu0 0
    %563 = vmatpush2.bf16.xpose.msra.mxu0 0
    %564 = vmatprep.subr.bf16.mxu0 0
    %565 = vmatpush2.bf16.xpose.msra.mxu0 0
    %566 = vmatprep.subr.bf16.mxu0 0
    %567 = vmatpush2.bf16.xpose.msra.mxu0 0
    %568 = vmatprep.subr.bf16.mxu0 0
    %569 = vmatpush2.bf16.xpose.msra.mxu0 0
    %570 = vmatprep.subr.bf16.mxu0 0
    %571 = vmatpush2.bf16.xpose.msra.mxu0 0
    %572 = vmatprep.mubr.bf16.mxu0 0
    %573 = vmatmul.mubr.bf16.gmra.mxu0 %v535
    %v574 = vpop.f32.mrf.mxu0
    %v575 = vadd.f32 0.0, %v574
    %v576 = vpop.f32.mrf.mxu0
    %v577 = vpop.f32.mrf.mxu0
    %v578 = vpop.f32.mrf.mxu0
    %579 = vdwg.mxu0
    %v580 = vsel %vm357, %v524, -inf
    %581 = vmax.xlane.f32.xlu0 %v580
    %v582 = vpop.xlane.xlu0 %581
    %v583 = vsel %vm357, %v575, -inf
    %584 = vmax.xlane.f32.xlu0 %v583
    %v585 = vpop.xlane.xlu0 %584
    %v586 = vsub.f32 %v524, %v582
    %v587 = vsub.f32 %v575, %v585
    %v588 = vmul.f32 %v586, 1.442695
    %v589 = vpow.pop %v588
    %v590 = vmul.f32 %v587, 1.442695
    %v591 = vpow.pop %v590
    %v592 = vsel %vm357, %v589, 0.0
    %593 = vadd.xlane.f32.xlu0 %v592
    %v594 = vpop.xlane.xlu0 %593
    %v595 = vsel %vm357, %v591, 0.0
    %596 = vadd.xlane.f32.xlu0 %v595
    %v597 = vpop.xlane.xlu0 %596
    %v598 = vrcp.pop %v594
    %v599 = vrcp.pop %v597
    %v600 = vmul.f32 %v589, %v598
    %v601 = vmul.f32 %v591, %v599
    %v602 = vpack.c.bf16 %v600, %v600
    %v603 = vpack.c.bf16 %v601, %v601
    %604 = vrot.lane.b32.xlu0 %v262, 88
    %v605 = vpop.permute.xlu0 %604
    %v608 = vsel %vm357, %v602, 0
    %610 = vmatprep.subr.bf16.mxu0 0
    %611 = vmatpush1.bf16.msra.mxu0 0
    %612 = vmatprep.subr.bf16.mxu0 0
    %613 = vmatpush1.bf16.msra.mxu0 0
    %614 = vmatprep.subr.bf16.mxu0 0
    %615 = vmatpush1.bf16.msra.mxu0 0
    %616 = vmatprep.subr.bf16.mxu0 0
    %617 = vmatpush1.bf16.msra.mxu0 0
    %618 = vmatprep.subr.bf16.mxu0 0
    %619 = vmatpush1.bf16.msra.mxu0 0
    %620 = vmatprep.subr.bf16.mxu0 0
    %621 = vmatpush1.bf16.msra.mxu0 0
    %622 = vmatprep.subr.bf16.mxu0 0
    %623 = vmatpush1.bf16.msra.mxu0 0
    %624 = vmatprep.subr.bf16.mxu0 0
    %625 = vmatpush1.bf16.msra.mxu0 %v605
    %626 = vmatprep.subr.bf16.mxu0 0
    %627 = vmatpush2.bf16.msra.mxu0 0
    %628 = vmatprep.subr.bf16.mxu0 0
    %629 = vmatpush2.bf16.msra.mxu0 0
    %630 = vmatprep.subr.bf16.mxu0 0
    %631 = vmatpush2.bf16.msra.mxu0 0
    %632 = vmatprep.subr.bf16.mxu0 0
    %633 = vmatpush2.bf16.msra.mxu0 0
    %634 = vmatprep.subr.bf16.mxu0 0
    %635 = vmatpush2.bf16.msra.mxu0 0
    %636 = vmatprep.subr.bf16.mxu0 0
    %637 = vmatpush2.bf16.msra.mxu0 0
    %638 = vmatprep.subr.bf16.mxu0 0
    %639 = vmatpush2.bf16.msra.mxu0 0
    %640 = vmatprep.subr.bf16.mxu0 0
    %641 = vmatpush2.bf16.msra.mxu0 0
    %642 = vmatprep.mubr.bf16.mxu0 0
    %643 = vmatmul.mubr.bf16.gmra.mxu0 %v608
    %v644 = vpop.f32.mrf.mxu0
    %v645 = vadd.f32 0.0, %v644
    %v646 = vpop.f32.mrf.mxu0
    %v647 = vpop.f32.mrf.mxu0
    %v648 = vpop.f32.mrf.mxu0
    %649 = vdwg.mxu0
    %650 = vrot.lane.b32.xlu0 %v263, 88
    %v651 = vpop.permute.xlu0 %650
    %v654 = vsel %vm357, %v603, 0
    %656 = vmatprep.subr.bf16.mxu0 0
    %657 = vmatpush1.bf16.msra.mxu0 0
    %658 = vmatprep.subr.bf16.mxu0 0
    %659 = vmatpush1.bf16.msra.mxu0 0
    %660 = vmatprep.subr.bf16.mxu0 0
    %661 = vmatpush1.bf16.msra.mxu0 0
    %662 = vmatprep.subr.bf16.mxu0 0
    %663 = vmatpush1.bf16.msra.mxu0 0
    %664 = vmatprep.subr.bf16.mxu0 0
    %665 = vmatpush1.bf16.msra.mxu0 0
    %666 = vmatprep.subr.bf16.mxu0 0
    %667 = vmatpush1.bf16.msra.mxu0 0
    %668 = vmatprep.subr.bf16.mxu0 0
    %669 = vmatpush1.bf16.msra.mxu0 0
    %670 = vmatprep.subr.bf16.mxu0 0
    %671 = vmatpush1.bf16.msra.mxu0 %v651
    %672 = vmatprep.subr.bf16.mxu0 0
    %673 = vmatpush2.bf16.msra.mxu0 0
    %674 = vmatprep.subr.bf16.mxu0 0
    %675 = vmatpush2.bf16.msra.mxu0 0
    %676 = vmatprep.subr.bf16.mxu0 0
    %677 = vmatpush2.bf16.msra.mxu0 0
    %678 = vmatprep.subr.bf16.mxu0 0
    %679 = vmatpush2.bf16.msra.mxu0 0
    %680 = vmatprep.subr.bf16.mxu0 0
    %681 = vmatpush2.bf16.msra.mxu0 0
    %682 = vmatprep.subr.bf16.mxu0 0
    %683 = vmatpush2.bf16.msra.mxu0 0
    %684 = vmatprep.subr.bf16.mxu0 0
    %685 = vmatpush2.bf16.msra.mxu0 0
    %686 = vmatprep.subr.bf16.mxu0 0
    %687 = vmatpush2.bf16.msra.mxu0 0
    %688 = vmatprep.mubr.bf16.mxu0 0
    %689 = vmatmul.mubr.bf16.gmra.mxu0 %v654
    %v690 = vpop.f32.mrf.mxu0
    %v691 = vadd.f32 0.0, %v690
    %v692 = vpop.f32.mrf.mxu0
    %v693 = vpop.f32.mrf.mxu0
    %v694 = vpop.f32.mrf.mxu0
    %695 = vdwg.mxu0
    %698 = vrot.lane.b32.xlu0 %v645, 8
    %v699 = vpop.permute.xlu0 %698
    %700 = vrot.lane.b32.xlu0 %v691, 8
    %v701 = vpop.permute.xlu0 %700
    %vm704 = vcmask 130112
    %705 = vst.msk [vmem:[#allocation2] sm:$0xff] %vm704, %v699
    %706 = vst.msk [vmem:[#allocation2 + $0x8] sm:$0xff] %vm704, %v701
    %707 = vrot.lane.b32.xlu0 %v260, 112
    %v708 = vpop.permute.xlu0 %707
    %709 = vrot.lane.b32.xlu0 %v262, 112
    %v710 = vpop.permute.xlu0 %709
    %v712 = vsel %vm264, %v708, 0
    %v715 = vsel %vm264, %v710, 0
    %717 = vmatprep.subr.bf16.mxu0 0
    %718 = vmatpush1.bf16.xpose.msra.mxu0 0
    %719 = vmatprep.subr.bf16.mxu0 0
    %720 = vmatpush1.bf16.xpose.msra.mxu0 0
    %721 = vmatprep.subr.bf16.mxu0 0
    %722 = vmatpush1.bf16.xpose.msra.mxu0 0
    %723 = vmatprep.subr.bf16.mxu0 0
    %724 = vmatpush1.bf16.xpose.msra.mxu0 0
    %725 = vmatprep.subr.bf16.mxu0 0
    %726 = vmatpush1.bf16.xpose.msra.mxu0 0
    %727 = vmatprep.subr.bf16.mxu0 0
    %728 = vmatpush1.bf16.xpose.msra.mxu0 0
    %729 = vmatprep.subr.bf16.mxu0 0
    %730 = vmatpush1.bf16.xpose.msra.mxu0 0
    %731 = vmatprep.subr.bf16.mxu0 0
    %732 = vmatpush1.bf16.xpose.msra.mxu0 %v715
    %733 = vmatprep.subr.bf16.mxu0 0
    %734 = vmatpush2.bf16.xpose.msra.mxu0 0
    %735 = vmatprep.subr.bf16.mxu0 0
    %736 = vmatpush2.bf16.xpose.msra.mxu0 0
    %737 = vmatprep.subr.bf16.mxu0 0
    %738 = vmatpush2.bf16.xpose.msra.mxu0 0
    %739 = vmatprep.subr.bf16.mxu0 0
    %740 = vmatpush2.bf16.xpose.msra.mxu0 0
    %741 = vmatprep.subr.bf16.mxu0 0
    %742 = vmatpush2.bf16.xpose.msra.mxu0 0
    %743 = vmatprep.subr.bf16.mxu0 0
    %744 = vmatpush2.bf16.xpose.msra.mxu0 0
    %745 = vmatprep.subr.bf16.mxu0 0
    %746 = vmatpush2.bf16.xpose.msra.mxu0 0
    %747 = vmatprep.subr.bf16.mxu0 0
    %748 = vmatpush2.bf16.xpose.msra.mxu0 0
    %749 = vmatprep.mubr.bf16.mxu0 0
    %750 = vmatmul.mubr.bf16.gmra.mxu0 %v712
    %v751 = vpop.f32.mrf.mxu0
    %v752 = vadd.f32 0.0, %v751
    %v753 = vpop.f32.mrf.mxu0
    %v754 = vpop.f32.mrf.mxu0
    %v755 = vpop.f32.mrf.mxu0
    %756 = vdwg.mxu0
    %757 = vrot.lane.b32.xlu0 %v261, 112
    %v758 = vpop.permute.xlu0 %757
    %759 = vrot.lane.b32.xlu0 %v263, 112
    %v760 = vpop.permute.xlu0 %759
    %v762 = vsel %vm264, %v758, 0
    %v765 = vsel %vm264, %v760, 0
    %767 = vmatprep.subr.bf16.mxu0 0
    %768 = vmatpush1.bf16.xpose.msra.mxu0 0
    %769 = vmatprep.subr.bf16.mxu0 0
    %770 = vmatpush1.bf16.xpose.msra.mxu0 0
    %771 = vmatprep.subr.bf16.mxu0 0
    %772 = vmatpush1.bf16.xpose.msra.mxu0 0
    %773 = vmatprep.subr.bf16.mxu0 0
    %774 = vmatpush1.bf16.xpose.msra.mxu0 0
    %775 = vmatprep.subr.bf16.mxu0 0
    %776 = vmatpush1.bf16.xpose.msra.mxu0 0
    %777 = vmatprep.subr.bf16.mxu0 0
    %778 = vmatpush1.bf16.xpose.msra.mxu0 0
    %779 = vmatprep.subr.bf16.mxu0 0
    %780 = vmatpush1.bf16.xpose.msra.mxu0 0
    %781 = vmatprep.subr.bf16.mxu0 0
    %782 = vmatpush1.bf16.xpose.msra.mxu0 %v765
    %783 = vmatprep.subr.bf16.mxu0 0
    %784 = vmatpush2.bf16.xpose.msra.mxu0 0
    %785 = vmatprep.subr.bf16.mxu0 0
    %786 = vmatpush2.bf16.xpose.msra.mxu0 0
    %787 = vmatprep.subr.bf16.mxu0 0
    %788 = vmatpush2.bf16.xpose.msra.mxu0 0
    %789 = vmatprep.subr.bf16.mxu0 0
    %790 = vmatpush2.bf16.xpose.msra.mxu0 0
    %791 = vmatprep.subr.bf16.mxu0 0
    %792 = vmatpush2.bf16.xpose.msra.mxu0 0
    %793 = vmatprep.subr.bf16.mxu0 0
    %794 = vmatpush2.bf16.xpose.msra.mxu0 0
    %795 = vmatprep.subr.bf16.mxu0 0
    %796 = vmatpush2.bf16.xpose.msra.mxu0 0
    %797 = vmatprep.subr.bf16.mxu0 0
    %798 = vmatpush2.bf16.xpose.msra.mxu0 0
    %799 = vmatprep.mubr.bf16.mxu0 0
    %800 = vmatmul.mubr.bf16.gmra.mxu0 %v762
    %v801 = vpop.f32.mrf.mxu0
    %v802 = vadd.f32 0.0, %v801
    %v803 = vpop.f32.mrf.mxu0
    %v804 = vpop.f32.mrf.mxu0
    %v805 = vpop.f32.mrf.mxu0
    %806 = vdwg.mxu0
    %v807 = vsel %vm357, %v752, -inf
    %808 = vmax.xlane.f32.xlu0 %v807
    %v809 = vpop.xlane.xlu0 %808
    %v810 = vsel %vm357, %v802, -inf
    %811 = vmax.xlane.f32.xlu0 %v810
    %v812 = vpop.xlane.xlu0 %811
    %v813 = vsub.f32 %v752, %v809
    %v814 = vsub.f32 %v802, %v812
    %v815 = vmul.f32 %v813, 1.442695
    %v816 = vpow.pop %v815
    %v817 = vmul.f32 %v814, 1.442695
    %v818 = vpow.pop %v817
    %v819 = vsel %vm357, %v816, 0.0
    %820 = vadd.xlane.f32.xlu0 %v819
    %v821 = vpop.xlane.xlu0 %820
    %v822 = vsel %vm357, %v818, 0.0
    %823 = vadd.xlane.f32.xlu0 %v822
    %v824 = vpop.xlane.xlu0 %823
    %v825 = vrcp.pop %v821
    %v826 = vrcp.pop %v824
    %v827 = vmul.f32 %v816, %v825
    %v828 = vmul.f32 %v818, %v826
    %v829 = vpack.c.bf16 %v827, %v827
    %v830 = vpack.c.bf16 %v828, %v828
    %831 = vrot.lane.b32.xlu0 %v262, 80
    %v832 = vpop.permute.xlu0 %831
    %v835 = vsel %vm357, %v829, 0
    %837 = vmatprep.subr.bf16.mxu0 0
    %838 = vmatpush1.bf16.msra.mxu0 0
    %839 = vmatprep.subr.bf16.mxu0 0
    %840 = vmatpush1.bf16.msra.mxu0 0
    %841 = vmatprep.subr.bf16.mxu0 0
    %842 = vmatpush1.bf16.msra.mxu0 0
    %843 = vmatprep.subr.bf16.mxu0 0
    %844 = vmatpush1.bf16.msra.mxu0 0
    %845 = vmatprep.subr.bf16.mxu0 0
    %846 = vmatpush1.bf16.msra.mxu0 0
    %847 = vmatprep.subr.bf16.mxu0 0
    %848 = vmatpush1.bf16.msra.mxu0 0
    %849 = vmatprep.subr.bf16.mxu0 0
    %850 = vmatpush1.bf16.msra.mxu0 0
    %851 = vmatprep.subr.bf16.mxu0 0
    %852 = vmatpush1.bf16.msra.mxu0 %v832
    %853 = vmatprep.subr.bf16.mxu0 0
    %854 = vmatpush2.bf16.msra.mxu0 0
    %855 = vmatprep.subr.bf16.mxu0 0
    %856 = vmatpush2.bf16.msra.mxu0 0
    %857 = vmatprep.subr.bf16.mxu0 0
    %858 = vmatpush2.bf16.msra.mxu0 0
    %859 = vmatprep.subr.bf16.mxu0 0
    %860 = vmatpush2.bf16.msra.mxu0 0
    %861 = vmatprep.subr.bf16.mxu0 0
    %862 = vmatpush2.bf16.msra.mxu0 0
    %863 = vmatprep.subr.bf16.mxu0 0
    %864 = vmatpush2.bf16.msra.mxu0 0
    %865 = vmatprep.subr.bf16.mxu0 0
    %866 = vmatpush2.bf16.msra.mxu0 0
    %867 = vmatprep.subr.bf16.mxu0 0
    %868 = vmatpush2.bf16.msra.mxu0 0
    %869 = vmatprep.mubr.bf16.mxu0 0
    %870 = vmatmul.mubr.bf16.gmra.mxu0 %v835
    %v871 = vpop.f32.mrf.mxu0
    %v872 = vadd.f32 0.0, %v871
    %v873 = vpop.f32.mrf.mxu0
    %v874 = vpop.f32.mrf.mxu0
    %v875 = vpop.f32.mrf.mxu0
    %876 = vdwg.mxu0
    %877 = vrot.lane.b32.xlu0 %v263, 80
    %v878 = vpop.permute.xlu0 %877
    %v881 = vsel %vm357, %v830, 0
    %883 = vmatprep.subr.bf16.mxu0 0
    %884 = vmatpush1.bf16.msra.mxu0 0
    %885 = vmatprep.subr.bf16.mxu0 0
    %886 = vmatpush1.bf16.msra.mxu0 0
    %887 = vmatprep.subr.bf16.mxu0 0
    %888 = vmatpush1.bf16.msra.mxu0 0
    %889 = vmatprep.subr.bf16.mxu0 0
    %890 = vmatpush1.bf16.msra.mxu0 0
    %891 = vmatprep.subr.bf16.mxu0 0
    %892 = vmatpush1.bf16.msra.mxu0 0
    %893 = vmatprep.subr.bf16.mxu0 0
    %894 = vmatpush1.bf16.msra.mxu0 0
    %895 = vmatprep.subr.bf16.mxu0 0
    %896 = vmatpush1.bf16.msra.mxu0 0
    %897 = vmatprep.subr.bf16.mxu0 0
    %898 = vmatpush1.bf16.msra.mxu0 %v878
    %899 = vmatprep.subr.bf16.mxu0 0
    %900 = vmatpush2.bf16.msra.mxu0 0
    %901 = vmatprep.subr.bf16.mxu0 0
    %902 = vmatpush2.bf16.msra.mxu0 0
    %903 = vmatprep.subr.bf16.mxu0 0
    %904 = vmatpush2.bf16.msra.mxu0 0
    %905 = vmatprep.subr.bf16.mxu0 0
    %906 = vmatpush2.bf16.msra.mxu0 0
    %907 = vmatprep.subr.bf16.mxu0 0
    %908 = vmatpush2.bf16.msra.mxu0 0
    %909 = vmatprep.subr.bf16.mxu0 0
    %910 = vmatpush2.bf16.msra.mxu0 0
    %911 = vmatprep.subr.bf16.mxu0 0
    %912 = vmatpush2.bf16.msra.mxu0 0
    %913 = vmatprep.subr.bf16.mxu0 0
    %914 = vmatpush2.bf16.msra.mxu0 0
    %915 = vmatprep.mubr.bf16.mxu0 0
    %916 = vmatmul.mubr.bf16.gmra.mxu0 %v881
    %v917 = vpop.f32.mrf.mxu0
    %v918 = vadd.f32 0.0, %v917
    %v919 = vpop.f32.mrf.mxu0
    %v920 = vpop.f32.mrf.mxu0
    %v921 = vpop.f32.mrf.mxu0
    %922 = vdwg.mxu0
    %925 = vrot.lane.b32.xlu0 %v872, 16
    %v926 = vpop.permute.xlu0 %925
    %927 = vrot.lane.b32.xlu0 %v918, 16
    %v928 = vpop.permute.xlu0 %927
    %vm931 = vcmask 195712
    %932 = vst.msk [vmem:[#allocation2] sm:$0xff] %vm931, %v926
    %933 = vst.msk [vmem:[#allocation2 + $0x8] sm:$0xff] %vm931, %v928
    %934 = vrot.lane.b32.xlu0 %v260, 104
    %v935 = vpop.permute.xlu0 %934
    %936 = vrot.lane.b32.xlu0 %v262, 104
    %v937 = vpop.permute.xlu0 %936
    %v939 = vsel %vm264, %v935, 0
    %v942 = vsel %vm264, %v937, 0
    %944 = vmatprep.subr.bf16.mxu0 0
    %945 = vmatpush1.bf16.xpose.msra.mxu0 0
    %946 = vmatprep.subr.bf16.mxu0 0
    %947 = vmatpush1.bf16.xpose.msra.mxu0 0
    %948 = vmatprep.subr.bf16.mxu0 0
    %949 = vmatpush1.bf16.xpose.msra.mxu0 0
    %950 = vmatprep.subr.bf16.mxu0 0
    %951 = vmatpush1.bf16.xpose.msra.mxu0 0
    %952 = vmatprep.subr.bf16.mxu0 0
    %953 = vmatpush1.bf16.xpose.msra.mxu0 0
    %954 = vmatprep.subr.bf16.mxu0 0
    %955 = vmatpush1.bf16.xpose.msra.mxu0 0
    %956 = vmatprep.subr.bf16.mxu0 0
    %957 = vmatpush1.bf16.xpose.msra.mxu0 0
    %958 = vmatprep.subr.bf16.mxu0 0
    %959 = vmatpush1.bf16.xpose.msra.mxu0 %v942
    %960 = vmatprep.subr.bf16.mxu0 0
    %961 = vmatpush2.bf16.xpose.msra.mxu0 0
    %962 = vmatprep.subr.bf16.mxu0 0
    %963 = vmatpush2.bf16.xpose.msra.mxu0 0
    %964 = vmatprep.subr.bf16.mxu0 0
    %965 = vmatpush2.bf16.xpose.msra.mxu0 0
    %966 = vmatprep.subr.bf16.mxu0 0
    %967 = vmatpush2.bf16.xpose.msra.mxu0 0
    %968 = vmatprep.subr.bf16.mxu0 0
    %969 = vmatpush2.bf16.xpose.msra.mxu0 0
    %970 = vmatprep.subr.bf16.mxu0 0
    %971 = vmatpush2.bf16.xpose.msra.mxu0 0
    %972 = vmatprep.subr.bf16.mxu0 0
    %973 = vmatpush2.bf16.xpose.msra.mxu0 0
    %974 = vmatprep.subr.bf16.mxu0 0
    %975 = vmatpush2.bf16.xpose.msra.mxu0 0
    %976 = vmatprep.mubr.bf16.mxu0 0
    %977 = vmatmul.mubr.bf16.gmra.mxu0 %v939
    %v978 = vpop.f32.mrf.mxu0
    %v979 = vadd.f32 0.0, %v978
    %v980 = vpop.f32.mrf.mxu0
    %v981 = vpop.f32.mrf.mxu0
    %v982 = vpop.f32.mrf.mxu0
    %983 = vdwg.mxu0
    %984 = vrot.lane.b32.xlu0 %v261, 104
    %v985 = vpop.permute.xlu0 %984
    %986 = vrot.lane.b32.xlu0 %v263, 104
    %v987 = vpop.permute.xlu0 %986
    %v989 = vsel %vm264, %v985, 0
    %v992 = vsel %vm264, %v987, 0
    %994 = vmatprep.subr.bf16.mxu0 0
    %995 = vmatpush1.bf16.xpose.msra.mxu0 0
    %996 = vmatprep.subr.bf16.mxu0 0
    %997 = vmatpush1.bf16.xpose.msra.mxu0 0
    %998 = vmatprep.subr.bf16.mxu0 0
    %999 = vmatpush1.bf16.xpose.msra.mxu0 0
    %1000 = vmatprep.subr.bf16.mxu0 0
    %1001 = vmatpush1.bf16.xpose.msra.mxu0 0
    %1002 = vmatprep.subr.bf16.mxu0 0
    %1003 = vmatpush1.bf16.xpose.msra.mxu0 0
    %1004 = vmatprep.subr.bf16.mxu0 0
    %1005 = vmatpush1.bf16.xpose.msra.mxu0 0
    %1006 = vmatprep.subr.bf16.mxu0 0
    %1007 = vmatpush1.bf16.xpose.msra.mxu0 0
    %1008 = vmatprep.subr.bf16.mxu0 0
    %1009 = vmatpush1.bf16.xpose.msra.mxu0 %v992
    %1010 = vmatprep.subr.bf16.mxu0 0
    %1011 = vmatpush2.bf16.xpose.msra.mxu0 0
    %1012 = vmatprep.subr.bf16.mxu0 0
    %1013 = vmatpush2.bf16.xpose.msra.mxu0 0
    %1014 = vmatprep.subr.bf16.mxu0 0
    %1015 = vmatpush2.bf16.xpose.msra.mxu0 0
    %1016 = vmatprep.subr.bf16.mxu0 0
    %1017 = vmatpush2.bf16.xpose.msra.mxu0 0
    %1018 = vmatprep.subr.bf16.mxu0 0
    %1019 = vmatpush2.bf16.xpose.msra.mxu0 0
    %1020 = vmatprep.subr.bf16.mxu0 0
    %1021 = vmatpush2.bf16.xpose.msra.mxu0 0
    %1022 = vmatprep.subr.bf16.mxu0 0
    %1023 = vmatpush2.bf16.xpose.msra.mxu0 0
    %1024 = vmatprep.subr.bf16.mxu0 0
    %1025 = vmatpush2.bf16.xpose.msra.mxu0 0
    %1026 = vmatprep.mubr.bf16.mxu0 0
    %1027 = vmatmul.mubr.bf16.gmra.mxu0 %v989
    %v1028 = vpop.f32.mrf.mxu0
    %v1029 = vadd.f32 0.0, %v1028
    %v1030 = vpop.f32.mrf.mxu0
    %v1031 = vpop.f32.mrf.mxu0
    %v1032 = vpop.f32.mrf.mxu0
    %1033 = vdwg.mxu0
    %v1034 = vsel %vm357, %v979, -inf
    %1035 = vmax.xlane.f32.xlu0 %v1034
    %v1036 = vpop.xlane.xlu0 %1035
    %v1037 = vsel %vm357, %v1029, -inf
    %1038 = vmax.xlane.f32.xlu0 %v1037
    %v1039 = vpop.xlane.xlu0 %1038
    %v1040 = vsub.f32 %v979, %v1036
    %v1041 = vsub.f32 %v1029, %v1039
    %v1042 = vmul.f32 %v1040, 1.442695
    %v1043 = vpow.pop %v1042
    %v1044 = vmul.f32 %v1041, 1.442695
    %v1045 = vpow.pop %v1044
    %v1046 = vsel %vm357, %v1043, 0.0
    %1047 = vadd.xlane.f32.xlu0 %v1046
    %v1048 = vpop.xlane.xlu0 %1047
    %v1049 = vsel %vm357, %v1045, 0.0
    %1050 = vadd.xlane.f32.xlu0 %v1049
    %v1051 = vpop.xlane.xlu0 %1050
    %v1052 = vrcp.pop %v1048
    %v1053 = vrcp.pop %v1051
    %v1054 = vmul.f32 %v1043, %v1052
    %v1055 = vmul.f32 %v1045, %v1053
    %v1056 = vpack.c.bf16 %v1054, %v1054
    %v1057 = vpack.c.bf16 %v1055, %v1055
    %1058 = vrot.lane.b32.xlu0 %v262, 72
    %v1059 = vpop.permute.xlu0 %1058
    %v1062 = vsel %vm357, %v1056, 0
    %1064 = vmatprep.subr.bf16.mxu0 0
    %1065 = vmatpush1.bf16.msra.mxu0 0
    %1066 = vmatprep.subr.bf16.mxu0 0
    %1067 = vmatpush1.bf16.msra.mxu0 0
    %1068 = vmatprep.subr.bf16.mxu0 0
    %1069 = vmatpush1.bf16.msra.mxu0 0
    %1070 = vmatprep.subr.bf16.mxu0 0
    %1071 = vmatpush1.bf16.msra.mxu0 0
    %1072 = vmatprep.subr.bf16.mxu0 0
    %1073 = vmatpush1.bf16.msra.mxu0 0
    %1074 = vmatprep.subr.bf16.mxu0 0
    %1075 = vmatpush1.bf16.msra.mxu0 0
    %1076 = vmatprep.subr.bf16.mxu0 0
    %1077 = vmatpush1.bf16.msra.mxu0 0
    %1078 = vmatprep.subr.bf16.mxu0 0
    %1079 = vmatpush1.bf16.msra.mxu0 %v1059
    %1080 = vmatprep.subr.bf16.mxu0 0
    %1081 = vmatpush2.bf16.msra.mxu0 0
    %1082 = vmatprep.subr.bf16.mxu0 0
    %1083 = vmatpush2.bf16.msra.mxu0 0
    %1084 = vmatprep.subr.bf16.mxu0 0
    %1085 = vmatpush2.bf16.msra.mxu0 0
    %1086 = vmatprep.subr.bf16.mxu0 0
    %1087 = vmatpush2.bf16.msra.mxu0 0
    %1088 = vmatprep.subr.bf16.mxu0 0
    %1089 = vmatpush2.bf16.msra.mxu0 0
    %1090 = vmatprep.subr.bf16.mxu0 0
    %1091 = vmatpush2.bf16.msra.mxu0 0
    %1092 = vmatprep.subr.bf16.mxu0 0
    %1093 = vmatpush2.bf16.msra.mxu0 0
    %1094 = vmatprep.subr.bf16.mxu0 0
    %1095 = vmatpush2.bf16.msra.mxu0 0
    %1096 = vmatprep.mubr.bf16.mxu0 0
    %1097 = vmatmul.mubr.bf16.gmra.mxu0 %v1062
    %v1098 = vpop.f32.mrf.mxu0
    %v1099 = vadd.f32 0.0, %v1098
    %v1100 = vpop.f32.mrf.mxu0
    %v1101 = vpop.f32.mrf.mxu0
    %v1102 = vpop.f32.mrf.mxu0
    %1103 = vdwg.mxu0
    %1104 = vrot.lane.b32.xlu0 %v263, 72
    %v1105 = vpop.permute.xlu0 %1104
    %v1108 = vsel %vm357, %v1057, 0
    %1110 = vmatprep.subr.bf16.mxu0 0
    %1111 = vmatpush1.bf16.msra.mxu0 0
    %1112 = vmatprep.subr.bf16.mxu0 0
    %1113 = vmatpush1.bf16.msra.mxu0 0
    %1114 = vmatprep.subr.bf16.mxu0 0
    %1115 = vmatpush1.bf16.msra.mxu0 0
    %1116 = vmatprep.subr.bf16.mxu0 0
    %1117 = vmatpush1.bf16.msra.mxu0 0
    %1118 = vmatprep.subr.bf16.mxu0 0
    %1119 = vmatpush1.bf16.msra.mxu0 0
    %1120 = vmatprep.subr.bf16.mxu0 0
    %1121 = vmatpush1.bf16.msra.mxu0 0
    %1122 = vmatprep.subr.bf16.mxu0 0
    %1123 = vmatpush1.bf16.msra.mxu0 0
    %1124 = vmatprep.subr.bf16.mxu0 0
    %1125 = vmatpush1.bf16.msra.mxu0 %v1105
    %1126 = vmatprep.subr.bf16.mxu0 0
    %1127 = vmatpush2.bf16.msra.mxu0 0
    %1128 = vmatprep.subr.bf16.mxu0 0
    %1129 = vmatpush2.bf16.msra.mxu0 0
    %1130 = vmatprep.subr.bf16.mxu0 0
    %1131 = vmatpush2.bf16.msra.mxu0 0
    %1132 = vmatprep.subr.bf16.mxu0 0
    %1133 = vmatpush2.bf16.msra.mxu0 0
    %1134 = vmatprep.subr.bf16.mxu0 0
    %1135 = vmatpush2.bf16.msra.mxu0 0
    %1136 = vmatprep.subr.bf16.mxu0 0
    %1137 = vmatpush2.bf16.msra.mxu0 0
    %1138 = vmatprep.subr.bf16.mxu0 0
    %1139 = vmatpush2.bf16.msra.mxu0 0
    %1140 = vmatprep.subr.bf16.mxu0 0
    %1141 = vmatpush2.bf16.msra.mxu0 0
    %1142 = vmatprep.mubr.bf16.mxu0 0
    %1143 = vmatmul.mubr.bf16.gmra.mxu0 %v1108
    %v1144 = vpop.f32.mrf.mxu0
    %v1145 = vadd.f32 0.0, %v1144
    %v1146 = vpop.f32.mrf.mxu0
    %v1147 = vpop.f32.mrf.mxu0
    %v1148 = vpop.f32.mrf.mxu0
    %1149 = vdwg.mxu0
    %1152 = vrot.lane.b32.xlu0 %v1099, 24
    %v1153 = vpop.permute.xlu0 %1152
    %1154 = vrot.lane.b32.xlu0 %v1145, 24
    %v1155 = vpop.permute.xlu0 %1154
    %vm1158 = vcmask 261312
    %1159 = vst.msk [vmem:[#allocation2] sm:$0xff] %vm1158, %v1153
    %1160 = vst.msk [vmem:[#allocation2 + $0x8] sm:$0xff] %vm1158, %v1155
    %v1161 = vld [vmem:[#allocation2] sm:$0xff]
    %v1162 = vld [vmem:[#allocation2 + $0x8] sm:$0xff]
    %v1163 = vpack.c.bf16 %v1162, %v1161
    %v1164 = vld [vmem:[#allocation11] sm:$0xf]
    %v1165 = vld [vmem:[#allocation11 + $0x4] sm:$0xf]
    %v1166 = vld [vmem:[#allocation11 + $0x8] sm:$0xf]
    %v1167 = vld [vmem:[#allocation11 + $0xc] sm:$0xf]
    %v1172 = vunpack.c.l.b16 %v1164
    %v1173 = vunpack.c.l.b16 %v1165
    %v1174 = vunpack.c.l.b16 %v1166
    %v1175 = vunpack.c.l.b16 %v1167
    %v1176 = vpack.c.b16 %v1173, %v1172
    %v1177 = vpack.c.b16 %v1175, %v1174
    %v1181 = vsel %vm135, %v1163, 0
    %1183 = vmatprep.subr.bf16.mxu0 0
    %1184 = vmatpush1.bf16.msra.mxu0 0
    %1185 = vmatprep.subr.bf16.mxu0 0
    %1186 = vmatpush1.bf16.msra.mxu0 0
    %1187 = vmatprep.subr.bf16.mxu0 0
    %1188 = vmatpush1.bf16.msra.mxu0 0
    %1189 = vmatprep.subr.bf16.mxu0 0
    %1190 = vmatpush1.bf16.msra.mxu0 0
    %1191 = vmatprep.subr.bf16.mxu0 0
    %1192 = vmatpush1.bf16.msra.mxu0 0
    %1193 = vmatprep.subr.bf16.mxu0 0
    %1194 = vmatpush1.bf16.msra.mxu0 0
    %1195 = vmatprep.subr.bf16.mxu0 0
    %1196 = vmatpush1.bf16.msra.mxu0 %v1177
    %1197 = vmatprep.subr.bf16.mxu0 0
    %1198 = vmatpush1.bf16.msra.mxu0 %v1176
    %1199 = vmatprep.subr.bf16.mxu0 0
    %1200 = vmatpush2.bf16.msra.mxu0 0
    %1201 = vmatprep.subr.bf16.mxu0 0
    %1202 = vmatpush2.bf16.msra.mxu0 0
    %1203 = vmatprep.subr.bf16.mxu0 0
    %1204 = vmatpush2.bf16.msra.mxu0 0
    %1205 = vmatprep.subr.bf16.mxu0 0
    %1206 = vmatpush2.bf16.msra.mxu0 0
    %1207 = vmatprep.subr.bf16.mxu0 0
    %1208 = vmatpush2.bf16.msra.mxu0 0
    %1209 = vmatprep.subr.bf16.mxu0 0
    %1210 = vmatpush2.bf16.msra.mxu0 0
    %1211 = vmatprep.subr.bf16.mxu0 0
    %1212 = vmatpush2.bf16.msra.mxu0 0
    %1213 = vmatprep.subr.bf16.mxu0 0
    %1214 = vmatpush2.bf16.msra.mxu0 0
    %1215 = vmatprep.mubr.bf16.mxu0 0
    %1216 = vmatmul.mubr.bf16.gmra.mxu0 %v1181
    %v1217 = vpop.f32.mrf.mxu0
    %v1218 = vadd.f32 0.0, %v1217
    %v1219 = vpop.f32.mrf.mxu0
    %v1220 = vpop.f32.mrf.mxu0
    %v1221 = vadd.f32 0.0, %v1220
    %v1222 = vpop.f32.mrf.mxu0
    %1223 = vdwg.mxu0
    %v1224 = vadd.f32 %v105, %v1218
    %v1225 = vadd.f32 %v106, %v1221
    %v1226 = vld [vmem:[%s7] sm:$0x1]
    %v1228 = vlaneseq
    %v1229 = vshrl.u32 %v1228, 7
    %v1230 = vsub.s32 0, %v1229
    %v1231 = vrot.slane %v1226, %v1230
    %v1233 = vadd.f32 %v1224, %v1231
    %v1234 = vadd.f32 %v1225, %v1231
    %v1235 = vsel %vm135, %v1233, 0.0
    %1236 = vadd.xlane.f32.xlu0 %v1235
    %v1237 = vpop.xlane.xlu0 %1236
    %v1238 = vsel %vm135, %v1234, 0.0
    %1239 = vadd.xlane.f32.xlu0 %v1238
    %v1240 = vpop.xlane.xlu0 %1239
    %v1241 = vrcp.pop 32.0
    %v1242 = vmul.f32 %v1237, %v1241
    %v1243 = vmul.f32 %v1240, %v1241
    %v1244 = vsub.f32 %v1233, %v1242
    %v1245 = vsub.f32 %v1234, %v1243
    %v1246 = vmul.f32 %v1244, %v1244
    %v1247 = vmul.f32 %v1245, %v1245
    %v1248 = vsel %vm135, %v1246, 0.0
    %1249 = vadd.xlane.f32.xlu0 %v1248
    %v1250 = vpop.xlane.xlu0 %1249
    %v1251 = vsel %vm135, %v1247, 0.0
    %1252 = vadd.xlane.f32.xlu0 %v1251
    %v1253 = vpop.xlane.xlu0 %1252
    %v1254 = vmul.f32 %v1250, %v1241
    %v1255 = vmul.f32 %v1253, %v1241
    %v1256 = vadd.f32 %v1254, 1e-05
    %v1257 = vadd.f32 %v1255, 1e-05
    %v1258 = vrsqrt.pop %v1256
    %v1259 = vrsqrt.pop %v1257
    %v1260 = vmul.f32 %v1244, %v1258
    %v1261 = vmul.f32 %v1245, %v1259
    %v1262 = vld [vmem:[%s8] sm:$0x1]
    %v1264 = vlaneseq
    %v1265 = vshrl.u32 %v1264, 7
    %v1266 = vsub.s32 0, %v1265
    %v1267 = vrot.slane %v1262, %v1266
    %v1269 = vmul.f32 %v1260, %v1267
    %v1270 = vmul.f32 %v1261, %v1267
    %v1271 = vld [vmem:[%s9] sm:$0x1]
    %v1273 = vlaneseq
    %v1274 = vshrl.u32 %v1273, 7
    %v1275 = vsub.s32 0, %v1274
    %v1276 = vrot.slane %v1271, %v1275
    %v1278 = vadd.f32 %v1269, %v1276
    %v1279 = vadd.f32 %v1270, %v1276
    %1280 = vst.msk [vmem:[#allocation12] sm:$0xff] %vm135, %v1278
    %1281 = vst.msk [vmem:[#allocation12 + $0x8] sm:$0xff] %vm135, %v1279
    // Predicated region
    $region62: #{tpu_custom_call.1} parent=1 // pred_check
      _
    $region63: #{tpu_custom_call.1} parent=1 // pred_check_branch
      %1283 = sbr.rel (0) target = $region65
    $region64: #{tpu_custom_call.1} parent=1 // pred_region
      %s1285 = ssub.s32 256, 256
      %1286 = vsyncadd [#allocation5], %s1285
      %s1287 = sshll.u32 [#allocation12], 4
      %s1288 = int_to_ptr.vmem [resolvable:$true] %s1287
      %1293 = dma.vmem_to_hbm [thread:$0]  %s1288, 256, %s10, [#allocation5], 128, 128, 8
    $region65: #{tpu_custom_call.1} parent=1 // pred_fallthru
      _
    // Predicated region
    $region66: #{tpu_custom_call.1} parent=1 // pred_check
      _
    $region67: #{tpu_custom_call.1} parent=1 // pred_check_branch
      %1295 = sbr.rel (0) target = $region69
    $region68: #{tpu_custom_call.1} parent=1 // pred_region
      %1296 = dma.done [#allocation5], 256
    $region69: #{tpu_custom_call.1} parent=1 // pred_fallthru
      _
    %1297 = vsyncpa [#allocation4], 1
    %1298 = vsyncpa [#allocation7], 1
    %1299 = vsyncpa [#allocation10], 1
    %1300 = vsyncpa [#allocation5], 1

</llo_original>
